<compile_context>
chip_gen: v7x
topology: tpu7x:2x2x1
jax: 0.10.0
libtpu: 0.0.40
codegen_flags: <defaults>
</compile_context>

<pallas_src>
import functools
import math

import jax
import jax.numpy as jnp
from jax import lax
from jax.experimental import pallas as pl
from jax.experimental.pallas import tpu as pltpu


# ----------------------------------------------------------------------------
# Kernel 1: unit_gtcn_34 spatial attention, all subsets + conv_d fused, one
#           batch block per grid step, plus partial gcn-BN statistics.
# ----------------------------------------------------------------------------
def _gcn_kernel(x_ref, pa_ref, wbig_ref, y_ref, ps_ref, *, num_subset, ict, oct_):
    nb, V, CT = x_ref.shape
    attn_base = num_subset * oct_            # conv_d feature blocks come first

    x = x_ref[...]                                           # (nb, V, CT) f32
    xr = x.reshape(nb * V, CT).astype(jnp.bfloat16)

    # ONE wide MXU matmul: the 3 conv_d feature maps u_i = x @ Wd_i followed
    # by all 18 attention feature maps (query blocks pre-scaled by 1/(IC*T)).
    # Single f32->bf16 cast of the fused output (replaces 18 per-slice casts).
    feats = jnp.dot(xr, wbig_ref[...],
                    preferred_element_type=jnp.float32).astype(jnp.bfloat16)
    f3 = feats.reshape(nb, V, feats.shape[-1])               # (nb, V, WBIG)

    # Per-subset attention matrices, kept in "column" orientation:
    #   a_cols[n, v2, i*V + v1] = (PA[i] + 3 softmaxes)[v1, v2]
    a_blocks = []
    for i in range(num_subset):
        a_i = None
        for p in range(3):                    # (conv_a,b) / (conv_T1,T2) / (ST11,ST12)
            off = attn_base + (i * 6 + 2 * p) * ict
            fq = f3[:, :, off:off + ict]                     # (nb, V, ict) bf16
            fk = f3[:, :, off + ict:off + 2 * ict]
            # s[n, v2, v1] = sum_d fk[n, v2, d] * fq[n, v1, d]  (q pre-scaled)
            s = lax.dot_general(fk, fq, (((2,), (2,)), ((0,), (0,))),
                                preferred_element_type=jnp.float32)
            # torch nn.Softmax(-2): normalise over v1 (last axis here)
            s = s - jnp.max(s, axis=-1, keepdims=True)
            e = jnp.exp(s)
            sm = e * pl.reciprocal(jnp.sum(e, axis=-1, keepdims=True), approx=True)
            a_i = sm if a_i is None else a_i + sm
        a_blocks.append(a_i + pa_ref[i][None])               # pa_ref holds PA^T
    a_cols = jnp.concatenate(a_blocks, axis=2)               # (nb, V, S*V) f32

    # conv_d features stacked on rows: u_rows[n, i*V + v1, :] = (x @ Wd_i)[n, v1, :]
    u_rows = jnp.concatenate(
        [f3[:, :, i * oct_:(i + 1) * oct_] for i in range(num_subset)],
        axis=1)                                              # (nb, S*V, OCT) bf16

    # y[n, v2, o] = sum_{i, v1} A_i[n, v1, v2] * (x @ Wd_i)[n, v1, o]
    y = lax.dot_general(a_cols.astype(jnp.bfloat16), u_rows,
                        (((2,), (1,)), ((0,), (0,))),
                        preferred_element_type=jnp.float32)  # (nb, V, OCT)
    y_ref[...] = y.astype(y_ref.dtype)

    # per-block partial gcn-BN statistics (finished in tiny XLA glue).
    yf = y.reshape(nb * V, oct_)
    ps_ref[0, 0:1, :] = jnp.sum(yf, axis=0, keepdims=True)
    ps_ref[0, 1:2, :] = jnp.sum(yf * yf, axis=0, keepdims=True)


def gcn_spatial(xT, paT, w_big, *, num_subset, ict, oct_, batch_block):
    N, V, CT = xT.shape
    nb = batch_block
    num_blocks = N // nb
    kernel = functools.partial(_gcn_kernel, num_subset=num_subset,
                               ict=ict, oct_=oct_)
    return pl.pallas_call(
        kernel,
        out_shape=(jax.ShapeDtypeStruct((N, V, oct_), jnp.bfloat16),
                   jax.ShapeDtypeStruct((num_blocks, 2, oct_), jnp.float32)),
        grid=(num_blocks,),
        in_specs=[pl.BlockSpec((nb, V, CT), lambda b: (b, 0, 0)),       # x
                  pl.BlockSpec(paT.shape, lambda b: (0, 0, 0)),         # PA^T
                  pl.BlockSpec(w_big.shape, lambda b: (0, 0))],         # fused weights
        out_specs=(pl.BlockSpec((nb, V, oct_), lambda b: (b, 0, 0)),    # y (bf16)
                   pl.BlockSpec((1, 2, oct_), lambda b: (b, 0, 0))),    # partial BN sums
        compiler_params=pltpu.CompilerParams(
            dimension_semantics=("parallel",),
            vmem_limit_bytes=32 * 1024 * 1024),
    )(xT, paT, w_big)


# ----------------------------------------------------------------------------
# Kernel 2: relu(bn_gcn(y) + x) -> (9,1) temporal conv -> partial tcn-BN sums
# ----------------------------------------------------------------------------
def _tcn_conv_kernel(y_ref, x_ref, sc1_ref, sh1_ref, wt_ref, t_ref, ps_ref):
    nb, V, OCT = y_ref.shape
    # gcn epilogue: relu(bn_gcn(y) + down(x)); down == identity here.
    g = jnp.maximum(y_ref[...].astype(jnp.float32) * sc1_ref[...]
                    + sh1_ref[...] + x_ref[...], 0.0)
    gr = g.reshape(nb * V, OCT).astype(jnp.bfloat16)
    # unit_tcn (9,1) 'same' conv as one banded (OCT, OCT) matmul (lane dense).
    t = jnp.dot(gr, wt_ref[...], preferred_element_type=jnp.float32)
    t_ref[...] = t.reshape(nb, V, OCT).astype(t_ref.dtype)
    ps_ref[0, 0:1, :] = jnp.sum(t, axis=0, keepdims=True)
    ps_ref[0, 1:2, :] = jnp.sum(t * t, axis=0, keepdims=True)


def tcn_conv(yT, xT, sc1, sh1, w_tcn, *, batch_block):
    N, V, OCT = yT.shape
    CT = xT.shape[2]
    nb = batch_block
    num_blocks = N // nb
    return pl.pallas_call(
        _tcn_conv_kernel,
        out_shape=(jax.ShapeDtypeStruct((N, V, OCT), jnp.bfloat16),
                   jax.ShapeDtypeStruct((num_blocks, 2, OCT), jnp.float32)),
        grid=(num_blocks,),
        in_specs=[pl.BlockSpec((nb, V, OCT), lambda b: (b, 0, 0)),      # y (gcn out)
                  pl.BlockSpec((nb, V, CT), lambda b: (b, 0, 0)),       # x (residual)
                  pl.BlockSpec((1, OCT), lambda b: (0, 0)),             # gcn-BN scale
                  pl.BlockSpec((1, OCT), lambda b: (0, 0)),             # gcn-BN shift
                  pl.BlockSpec((OCT, OCT), lambda b: (0, 0))],          # temporal conv W^T
        out_specs=(pl.BlockSpec((nb, V, OCT), lambda b: (b, 0, 0)),     # t (bf16)
                   pl.BlockSpec((1, 2, OCT), lambda b: (b, 0, 0))),     # partial BN sums
        compiler_params=pltpu.CompilerParams(
            dimension_semantics=("parallel",),
            vmem_limit_bytes=32 * 1024 * 1024),
    )(yT, xT, sc1, sh1, w_tcn)


# ----------------------------------------------------------------------------
# Kernel 3: apply tcn-BN + residual + ReLU (pure elementwise, parallel)
# ----------------------------------------------------------------------------
def _bn_res_relu_kernel(t_ref, x_ref, sc2_ref, sh2_ref, o_ref):
    o_ref[...] = jnp.maximum(t_ref[...].astype(jnp.float32) * sc2_ref[...]
                             + sh2_ref[...] + x_ref[...], 0.0)


def bn_residual_relu(tT, xT, sc2, sh2, *, batch_block):
    N, V, OCT = tT.shape
    nb = batch_block
    num_blocks = N // nb
    return pl.pallas_call(
        _bn_res_relu_kernel,
        out_shape=jax.ShapeDtypeStruct((N, V, OCT), jnp.float32),
        grid=(num_blocks,),
        in_specs=[pl.BlockSpec((nb, V, OCT), lambda b: (b, 0, 0)),
                  pl.BlockSpec((nb, V, OCT), lambda b: (b, 0, 0)),
                  pl.BlockSpec((1, OCT), lambda b: (0, 0)),
                  pl.BlockSpec((1, OCT), lambda b: (0, 0))],
        out_specs=pl.BlockSpec((nb, V, OCT), lambda b: (b, 0, 0)),
        compiler_params=pltpu.CompilerParams(
            dimension_semantics=("parallel",)),
    )(tT, xT, sc2, sh2)


# ----------------------------------------------------------------------------
# Glue: flattened-weight construction, BN-statistics finishing, init.
# ----------------------------------------------------------------------------
def _kron_eye(w, T):
    """1x1 channel conv (O, C) -> flattened (O*T, C*T) block matrix."""
    return jnp.kron(w, jnp.eye(T, dtype=w.dtype))


def _band_tconv(w, T, pad):
    """(K,1) temporal conv (O, C, K), stride 1, 'same' pad -> (O*T, C*T)."""
    O, C, K = w.shape
    t_out = jnp.arange(T)[:, None]
    t_in = jnp.arange(T)[None, :]
    k = t_in - t_out + pad                          # tap index, (T_out, T_in)
    valid = (k >= 0) & (k < K)
    band = jnp.where(valid[None, None], w[:, :, jnp.clip(k, 0, K - 1)], 0.0)
    return band.transpose(0, 2, 1, 3).reshape(O * T, C * T)


def _bn_rows_from_psum(psum, C, T, count, gamma, beta, eps=1e-5):
    """Finish training-mode BN stats from per-block partial sums -> lane rows."""
    s = jnp.sum(psum, axis=0).reshape(2, C, T).sum(axis=-1)    # (2, C)
    mean = s[0] / count
    var = s[1] / count - mean * mean                           # biased variance
    scale = gamma * lax.rsqrt(var + eps)
    shift = beta - mean * scale
    return jnp.repeat(scale, T)[None, :], jnp.repeat(shift, T)[None, :]


def init_raw_params(key, C_in, C_out, T, V, num_subset=3, coff=4, K=9):
    """Deterministic torch-layout parameters mirroring the module's init."""
    IC = C_out // coff
    ks = iter(jax.random.split(key, 64))

    def kaiming(shape, fan_out):     # conv_init: kaiming_normal(mode='fan_out')
        return jax.random.normal(next(ks), shape, jnp.float32) * math.sqrt(2.0 / fan_out)

    raw = dict(
        PA=jnp.full((num_subset, V, V), 1e-6, jnp.float32),    # init.constant(PA, 1e-6)
        conv_a=[], conv_b=[], conv_T1=[], conv_T2=[],
        conv_ST11=[], conv_ST12=[], conv_d=[],
        bn1_gamma=jnp.full((C_out,), 1e-6, jnp.float32),       # bn_init(gcn.bn, 1e-6)
        bn1_beta=jnp.zeros((C_out,), jnp.float32),
        bn2_gamma=jnp.ones((C_out,), jnp.float32),             # bn_init(tcn.bn, 1)
        bn2_beta=jnp.zeros((C_out,), jnp.float32),
    )
    for i in range(num_subset):
        raw['conv_a'].append(kaiming((IC, C_in), IC))
        raw['conv_b'].append(kaiming((IC, C_in), IC))
        raw['conv_T1'].append(kaiming((IC, C_in, K), IC * K))
        raw['conv_T2'].append(kaiming((IC, C_in, K), IC * K))
        # conv_ST11/12 ModuleLists alternate 1x1 / (9,1); forward indexes [i]:
        # i=0 -> 1x1, i=1 -> (9,1), i=2 -> 1x1.
        if i % 2 == 0:
            raw['conv_ST11'].append(kaiming((IC, C_in), IC))
            raw['conv_ST12'].append(kaiming((IC, C_in), IC))
        else:
            raw['conv_ST11'].append(kaiming((IC, C_in, K), IC * K))
            raw['conv_ST12'].append(kaiming((IC, C_in, K), IC * K))
        # conv_branch_init: normal(0, sqrt(2/(n*k1*k2*branches)))
        raw['conv_d'].append(
            jax.random.normal(next(ks), (C_out, C_in), jnp.float32)
            * math.sqrt(2.0 / (C_out * C_in * 1 * num_subset)))
    raw['conv_tcn'] = kaiming((C_out, C_out, K), C_out * K)    # unit_tcn conv
    return raw


def build_kernel_params(raw, T):
    """Pack raw conv weights into the fused lane-dense matrices for the kernels."""
    num_subset = raw['PA'].shape[0]
    IC = raw['conv_a'][0].shape[0]
    K = raw['conv_T1'][0].shape[-1]
    pad = (K - 1) // 2
    inv_ict = 1.0 / float(IC * T)

    def flat(w):     # (O, C) 1x1 conv or (O, C, K) (K,1) conv -> (C*T, O*T)
        m = _kron_eye(w, T) if w.ndim == 2 else _band_tconv(w, T, pad)
        return m.T

    # conv_d feature blocks first (128-lane aligned), then the 18 attention
    # blocks; query-side blocks carry the 1/(IC*T) attention scale.
    blocks = [flat(raw['conv_d'][i]) for i in range(num_subset)]
    for i in range(num_subset):
        blocks += [flat(raw['conv_a'][i]) * inv_ict, flat(raw['conv_b'][i]),
                   flat(raw['conv_T1'][i]) * inv_ict, flat(raw['conv_T2'][i]),
                   flat(raw['conv_ST11'][i]) * inv_ict, flat(raw['conv_ST12'][i])]
    w_big = jnp.concatenate(blocks, axis=1).astype(jnp.bfloat16)
    w_tcn = _band_tconv(raw['conv_tcn'], T, pad).T.astype(jnp.bfloat16)
    return dict(PA=raw['PA'], w_big=w_big, w_tcn=w_tcn,
                bn1_gamma=raw['bn1_gamma'], bn1_beta=raw['bn1_beta'],
                bn2_gamma=raw['bn2_gamma'], bn2_beta=raw['bn2_beta'])


# ----------------------------------------------------------------------------
# Full TCN_GCN_unit_34 forward.
# ----------------------------------------------------------------------------
def tcn_gcn_unit_34_forward(x, params, *, batch_block=None):
    """x: (N, C, T, V) float32 (PyTorch NCHW, H=T, W=V); C_in == C_out.

    batch_block: batch elements per grid step (default: whole batch, which is
    best on the single-TensorCore v5e/v6e; on v7x pass N//2 so the "parallel"
    grid axis keeps both TensorCores busy).
    """
    N, C, T, V = x.shape
    CT = C * T
    OCT = params['w_tcn'].shape[0]
    num_subset = params['PA'].shape[0]
    assert OCT == CT, "identity residual/down requires in_channels == out_channels"
    WBIG = params['w_big'].shape[1]
    ICT = (WBIG - num_subset * OCT) // (6 * num_subset)
    nb = N if batch_block is None else batch_block
    assert N % nb == 0
    count = float(N * T * V)

    # lane-dense activation layout: rows = (n, v), lanes = (c, t)
    xT = jnp.transpose(x.reshape(N, CT, V), (0, 2, 1))
    paT = jnp.swapaxes(params['PA'], 1, 2)        # kernel holds PA^T per subset

    # unit_gtcn_34 spatial attention + partial gcn-BN statistics
    yT, ps1 = gcn_spatial(xT, paT, params['w_big'],
                          num_subset=num_subset, ict=ICT, oct_=OCT, batch_block=nb)
    sc1, sh1 = _bn_rows_from_psum(ps1, C, T, count,
                                  params['bn1_gamma'], params['bn1_beta'])

    # relu(bn_gcn(y) + x) -> (9,1) temporal conv -> partial tcn-BN statistics
    tT, ps2 = tcn_conv(yT, xT, sc1, sh1, params['w_tcn'], batch_block=nb)
    sc2, sh2 = _bn_rows_from_psum(ps2, C, T, count,
                                  params['bn2_gamma'], params['bn2_beta'])

    # bn_tcn -> + residual(x) -> relu
    outT = bn_residual_relu(tT, xT, sc2, sh2, batch_block=nb)
    return jnp.transpose(outT, (0, 2, 1)).reshape(N, C, T, V)


# ----------------------------------------------------------------------------
# Pure-JAX f32 reference of the PyTorch forward (for tolerance assertion).
# ----------------------------------------------------------------------------
def _ref_conv1x1(x, w):
    return jnp.einsum('oc,nctv->notv', w, x)


def _ref_conv9(x, w):
    K = w.shape[-1]
    pad = (K - 1) // 2
    T = x.shape[2]
    xp = jnp.pad(x, ((0, 0), (0, 0), (pad, pad), (0, 0)))
    out = 0.0
    for k in range(K):
        out = out + jnp.einsum('oc,nctv->notv', w[:, :, k], xp[:, :, k:k + T, :])
    return out


def _ref_conv(x, w):
    return _ref_conv1x1(x, w) if w.ndim == 2 else _ref_conv9(x, w)


def _ref_bn(x, gamma, beta, eps=1e-5):
    mean = jnp.mean(x, axis=(0, 2, 3), keepdims=True)
    var = jnp.mean((x - mean) ** 2, axis=(0, 2, 3), keepdims=True)
    return ((x - mean) * lax.rsqrt(var + eps) * gamma[None, :, None, None]
            + beta[None, :, None, None])


def reference_forward(x, raw):
    N, C, T, V = x.shape
    IC = raw['conv_a'][0].shape[0]
    num_subset = raw['PA'].shape[0]
    y = None
    for i in range(num_subset):
        pairs = [(raw['conv_a'][i], raw['conv_b'][i]),
                 (raw['conv_T1'][i], raw['conv_T2'][i]),
                 (raw['conv_ST11'][i], raw['conv_ST12'][i])]
        a_i = raw['PA'][i][None]
        for wq, wk in pairs:
            A1 = jnp.transpose(_ref_conv(x, wq), (0, 3, 1, 2)).reshape(N, V, IC * T)
            A2 = _ref_conv(x, wk).reshape(N, IC * T, V)
            a_i = a_i + jax.nn.softmax(jnp.matmul(A1, A2) / (IC * T), axis=-2)
        xa = jnp.matmul(x.reshape(N, C * T, V), a_i).reshape(N, C, T, V)
        z = _ref_conv1x1(xa, raw['conv_d'][i])
        y = z if y is None else y + z
    y = jax.nn.relu(_ref_bn(y, raw['bn1_gamma'], raw['bn1_beta']) + x)
    t = _ref_bn(_ref_conv9(y, raw['conv_tcn']), raw['bn2_gamma'], raw['bn2_beta'])
    return jax.nn.relu(t + x)


if __name__ == "__main__":
    N, C, T, V = 2, 8, 16, 16          # in_channels == out_channels == 8, stride 1
    key = jax.random.PRNGKey(0)
    kx, kp = jax.random.split(key)
    x = jax.random.normal(kx, (N, C, T, V), jnp.float32)

    raw = init_raw_params(kp, C, C, T, V)
    params = build_kernel_params(raw, T)

    out = jax.jit(tcn_gcn_unit_34_forward)(x, params)
    jax.block_until_ready(out)
    assert out.shape == (N, C, T, V) and out.dtype == jnp.float32

    # tolerance-asserted pure-JAX f32 reference (bf16 MXU operands, bf16
    # inter-kernel activations and approx softmax reciprocal are the only
    # numerics deviations).
    ref = jax.jit(reference_forward)(x, raw)
    max_err = float(jnp.max(jnp.abs(out - ref)))
    assert max_err < 1e-1, f"mismatch vs reference: max abs err {max_err}"

    print("KERNEL_OK")
</pallas_src>

<mosaic_0001>
module attributes {stable_mosaic.version = 11 : i64} {
  func.func @_gcn_kernel(%arg0: i32, %arg1: memref<2x16x128xf32, #tpu.memory_space<vmem>>, %arg2: memref<3x16x16xf32, #tpu.memory_space<vmem>>, %arg3: memref<128x960xbf16, #tpu.memory_space<vmem>>, %arg4: memref<2x16x128xbf16, #tpu.memory_space<vmem>>, %arg5: memref<1x2x128xf32, #tpu.memory_space<vmem>>) attributes {dimension_semantics = [#tpu.dimension_semantics<parallel>], iteration_bounds = array<i64: 1>, scalar_prefetch = 0 : i64, scratch_operands = 0 : i64, tpu.core_type = #tpu.core_type<tc>, window_params = [{transform_indices = @transform_0, window_bounds = array<i64: 2, 16, 128>}, {pipeline_mode = #tpu.pipeline_mode<synchronous>, transform_indices = @transform_1, window_bounds = array<i64: 3, 16, 16>}, {pipeline_mode = #tpu.pipeline_mode<synchronous>, transform_indices = @transform_2, window_bounds = array<i64: 128, 960>}, {transform_indices = @transform_3, window_bounds = array<i64: 2, 16, 128>}, {transform_indices = @transform_4, window_bounds = array<i64: 1, 2, 128>}]} {
    %c0 = arith.constant 0 : index
    %c0_0 = arith.constant 0 : index
    %c0_1 = arith.constant 0 : index
    %0 = vector.load %arg1[%c0, %c0_0, %c0_1] : memref<2x16x128xf32, #tpu.memory_space<vmem>>, vector<2x16x128xf32>
    %1 = vector.shape_cast %0 : vector<2x16x128xf32> to vector<32x128xf32>
    %2 = arith.truncf %1 : vector<32x128xf32> to vector<32x128xbf16>
    %c0_2 = arith.constant 0 : index
    %c0_3 = arith.constant 0 : index
    %3 = vector.load %arg3[%c0_2, %c0_3] : memref<128x960xbf16, #tpu.memory_space<vmem>>, vector<128x960xbf16>
    %cst = arith.constant dense<0.000000e+00> : vector<32x960xf32>
    %4 = tpu.matmul %2, %3, %cst {dimension_numbers = #tpu.dot_dimension_numbers<[1], [0], [0], [1], [0, 0, 1, 1], [], []>} : vector<32x128xbf16>, vector<128x960xbf16>, vector<32x960xf32> -> vector<32x960xf32>
    %5 = arith.truncf %4 : vector<32x960xf32> to vector<32x960xbf16>
    %6 = vector.shape_cast %5 : vector<32x960xbf16> to vector<2x16x960xbf16>
    %7 = vector.extract_strided_slice %6 {offsets = [0, 0, 384], sizes = [2, 16, 32], strides = [1, 1, 1]} : vector<2x16x960xbf16> to vector<2x16x32xbf16>
    %8 = vector.extract_strided_slice %6 {offsets = [0, 0, 416], sizes = [2, 16, 32], strides = [1, 1, 1]} : vector<2x16x960xbf16> to vector<2x16x32xbf16>
    %cst_4 = arith.constant dense<0.000000e+00> : vector<2x16x16xf32>
    %9 = tpu.matmul %8, %7, %cst_4 {dimension_numbers = #tpu.dot_dimension_numbers<[2], [2], [1], [1], [0, 0, 0, 1, 1, 1], [0], [0]>} : vector<2x16x32xbf16>, vector<2x16x32xbf16>, vector<2x16x16xf32> -> vector<2x16x16xf32>
    %cst_5 = arith.constant dense<0xFF800000> : vector<2x16xf32>
    %10 = vector.multi_reduction <maximumf>, %9, %cst_5 [2] : vector<2x16x16xf32> to vector<2x16xf32>
    %11 = vector.shape_cast %10 : vector<2x16xf32> to vector<2x16x1xf32>
    %12 = vector.broadcast %11 : vector<2x16x1xf32> to vector<2x16x16xf32>
    %13 = arith.subf %9, %12 : vector<2x16x16xf32>
    %14 = math.exp %13 : vector<2x16x16xf32>
    %cst_6 = arith.constant dense<0.000000e+00> : vector<2x16xf32>
    %15 = vector.multi_reduction <add>, %14, %cst_6 [2] : vector<2x16x16xf32> to vector<2x16xf32>
    %16 = vector.shape_cast %15 : vector<2x16xf32> to vector<2x16x1xf32>
    %17 = tpu.reciprocal %16 {approx = true} : vector<2x16x1xf32> -> vector<2x16x1xf32>
    %18 = vector.broadcast %17 : vector<2x16x1xf32> to vector<2x16x16xf32>
    %19 = arith.mulf %14, %18 : vector<2x16x16xf32>
    %20 = vector.extract_strided_slice %6 {offsets = [0, 0, 448], sizes = [2, 16, 32], strides = [1, 1, 1]} : vector<2x16x960xbf16> to vector<2x16x32xbf16>
    %21 = vector.extract_strided_slice %6 {offsets = [0, 0, 480], sizes = [2, 16, 32], strides = [1, 1, 1]} : vector<2x16x960xbf16> to vector<2x16x32xbf16>
    %cst_7 = arith.constant dense<0.000000e+00> : vector<2x16x16xf32>
    %22 = tpu.matmul %21, %20, %cst_7 {dimension_numbers = #tpu.dot_dimension_numbers<[2], [2], [1], [1], [0, 0, 0, 1, 1, 1], [0], [0]>} : vector<2x16x32xbf16>, vector<2x16x32xbf16>, vector<2x16x16xf32> -> vector<2x16x16xf32>
    %cst_8 = arith.constant dense<0xFF800000> : vector<2x16xf32>
    %23 = vector.multi_reduction <maximumf>, %22, %cst_8 [2] : vector<2x16x16xf32> to vector<2x16xf32>
    %24 = vector.shape_cast %23 : vector<2x16xf32> to vector<2x16x1xf32>
    %25 = vector.broadcast %24 : vector<2x16x1xf32> to vector<2x16x16xf32>
    %26 = arith.subf %22, %25 : vector<2x16x16xf32>
    %27 = math.exp %26 : vector<2x16x16xf32>
    %cst_9 = arith.constant dense<0.000000e+00> : vector<2x16xf32>
    %28 = vector.multi_reduction <add>, %27, %cst_9 [2] : vector<2x16x16xf32> to vector<2x16xf32>
    %29 = vector.shape_cast %28 : vector<2x16xf32> to vector<2x16x1xf32>
    %30 = tpu.reciprocal %29 {approx = true} : vector<2x16x1xf32> -> vector<2x16x1xf32>
    %31 = vector.broadcast %30 : vector<2x16x1xf32> to vector<2x16x16xf32>
    %32 = arith.mulf %27, %31 : vector<2x16x16xf32>
    %33 = arith.addf %19, %32 : vector<2x16x16xf32>
    %34 = vector.extract_strided_slice %6 {offsets = [0, 0, 512], sizes = [2, 16, 32], strides = [1, 1, 1]} : vector<2x16x960xbf16> to vector<2x16x32xbf16>
    %35 = vector.extract_strided_slice %6 {offsets = [0, 0, 544], sizes = [2, 16, 32], strides = [1, 1, 1]} : vector<2x16x960xbf16> to vector<2x16x32xbf16>
    %cst_10 = arith.constant dense<0.000000e+00> : vector<2x16x16xf32>
    %36 = tpu.matmul %35, %34, %cst_10 {dimension_numbers = #tpu.dot_dimension_numbers<[2], [2], [1], [1], [0, 0, 0, 1, 1, 1], [0], [0]>} : vector<2x16x32xbf16>, vector<2x16x32xbf16>, vector<2x16x16xf32> -> vector<2x16x16xf32>
    %cst_11 = arith.constant dense<0xFF800000> : vector<2x16xf32>
    %37 = vector.multi_reduction <maximumf>, %36, %cst_11 [2] : vector<2x16x16xf32> to vector<2x16xf32>
    %38 = vector.shape_cast %37 : vector<2x16xf32> to vector<2x16x1xf32>
    %39 = vector.broadcast %38 : vector<2x16x1xf32> to vector<2x16x16xf32>
    %40 = arith.subf %36, %39 : vector<2x16x16xf32>
    %41 = math.exp %40 : vector<2x16x16xf32>
    %cst_12 = arith.constant dense<0.000000e+00> : vector<2x16xf32>
    %42 = vector.multi_reduction <add>, %41, %cst_12 [2] : vector<2x16x16xf32> to vector<2x16xf32>
    %43 = vector.shape_cast %42 : vector<2x16xf32> to vector<2x16x1xf32>
    %44 = tpu.reciprocal %43 {approx = true} : vector<2x16x1xf32> -> vector<2x16x1xf32>
    %45 = vector.broadcast %44 : vector<2x16x1xf32> to vector<2x16x16xf32>
    %46 = arith.mulf %41, %45 : vector<2x16x16xf32>
    %47 = arith.addf %33, %46 : vector<2x16x16xf32>
    %c0_13 = arith.constant 0 : index
    %c0_14 = arith.constant 0 : index
    %c0_15 = arith.constant 0 : index
    %48 = vector.load %arg2[%c0_13, %c0_14, %c0_15] : memref<3x16x16xf32, #tpu.memory_space<vmem>>, vector<1x16x16xf32>
    %49 = vector.shape_cast %48 : vector<1x16x16xf32> to vector<16x16xf32>
    %50 = vector.shape_cast %49 : vector<16x16xf32> to vector<1x16x16xf32>
    %51 = vector.broadcast %50 : vector<1x16x16xf32> to vector<2x16x16xf32>
    %52 = arith.addf %47, %51 : vector<2x16x16xf32>
    %53 = vector.extract_strided_slice %6 {offsets = [0, 0, 576], sizes = [2, 16, 32], strides = [1, 1, 1]} : vector<2x16x960xbf16> to vector<2x16x32xbf16>
    %54 = vector.extract_strided_slice %6 {offsets = [0, 0, 608], sizes = [2, 16, 32], strides = [1, 1, 1]} : vector<2x16x960xbf16> to vector<2x16x32xbf16>
    %cst_16 = arith.constant dense<0.000000e+00> : vector<2x16x16xf32>
    %55 = tpu.matmul %54, %53, %cst_16 {dimension_numbers = #tpu.dot_dimension_numbers<[2], [2], [1], [1], [0, 0, 0, 1, 1, 1], [0], [0]>} : vector<2x16x32xbf16>, vector<2x16x32xbf16>, vector<2x16x16xf32> -> vector<2x16x16xf32>
    %cst_17 = arith.constant dense<0xFF800000> : vector<2x16xf32>
    %56 = vector.multi_reduction <maximumf>, %55, %cst_17 [2] : vector<2x16x16xf32> to vector<2x16xf32>
    %57 = vector.shape_cast %56 : vector<2x16xf32> to vector<2x16x1xf32>
    %58 = vector.broadcast %57 : vector<2x16x1xf32> to vector<2x16x16xf32>
    %59 = arith.subf %55, %58 : vector<2x16x16xf32>
    %60 = math.exp %59 : vector<2x16x16xf32>
    %cst_18 = arith.constant dense<0.000000e+00> : vector<2x16xf32>
    %61 = vector.multi_reduction <add>, %60, %cst_18 [2] : vector<2x16x16xf32> to vector<2x16xf32>
    %62 = vector.shape_cast %61 : vector<2x16xf32> to vector<2x16x1xf32>
    %63 = tpu.reciprocal %62 {approx = true} : vector<2x16x1xf32> -> vector<2x16x1xf32>
    %64 = vector.broadcast %63 : vector<2x16x1xf32> to vector<2x16x16xf32>
    %65 = arith.mulf %60, %64 : vector<2x16x16xf32>
    %66 = vector.extract_strided_slice %6 {offsets = [0, 0, 640], sizes = [2, 16, 32], strides = [1, 1, 1]} : vector<2x16x960xbf16> to vector<2x16x32xbf16>
    %67 = vector.extract_strided_slice %6 {offsets = [0, 0, 672], sizes = [2, 16, 32], strides = [1, 1, 1]} : vector<2x16x960xbf16> to vector<2x16x32xbf16>
    %cst_19 = arith.constant dense<0.000000e+00> : vector<2x16x16xf32>
    %68 = tpu.matmul %67, %66, %cst_19 {dimension_numbers = #tpu.dot_dimension_numbers<[2], [2], [1], [1], [0, 0, 0, 1, 1, 1], [0], [0]>} : vector<2x16x32xbf16>, vector<2x16x32xbf16>, vector<2x16x16xf32> -> vector<2x16x16xf32>
    %cst_20 = arith.constant dense<0xFF800000> : vector<2x16xf32>
    %69 = vector.multi_reduction <maximumf>, %68, %cst_20 [2] : vector<2x16x16xf32> to vector<2x16xf32>
    %70 = vector.shape_cast %69 : vector<2x16xf32> to vector<2x16x1xf32>
    %71 = vector.broadcast %70 : vector<2x16x1xf32> to vector<2x16x16xf32>
    %72 = arith.subf %68, %71 : vector<2x16x16xf32>
    %73 = math.exp %72 : vector<2x16x16xf32>
    %cst_21 = arith.constant dense<0.000000e+00> : vector<2x16xf32>
    %74 = vector.multi_reduction <add>, %73, %cst_21 [2] : vector<2x16x16xf32> to vector<2x16xf32>
    %75 = vector.shape_cast %74 : vector<2x16xf32> to vector<2x16x1xf32>
    %76 = tpu.reciprocal %75 {approx = true} : vector<2x16x1xf32> -> vector<2x16x1xf32>
    %77 = vector.broadcast %76 : vector<2x16x1xf32> to vector<2x16x16xf32>
    %78 = arith.mulf %73, %77 : vector<2x16x16xf32>
    %79 = arith.addf %65, %78 : vector<2x16x16xf32>
    %80 = vector.extract_strided_slice %6 {offsets = [0, 0, 704], sizes = [2, 16, 32], strides = [1, 1, 1]} : vector<2x16x960xbf16> to vector<2x16x32xbf16>
    %81 = vector.extract_strided_slice %6 {offsets = [0, 0, 736], sizes = [2, 16, 32], strides = [1, 1, 1]} : vector<2x16x960xbf16> to vector<2x16x32xbf16>
    %cst_22 = arith.constant dense<0.000000e+00> : vector<2x16x16xf32>
    %82 = tpu.matmul %81, %80, %cst_22 {dimension_numbers = #tpu.dot_dimension_numbers<[2], [2], [1], [1], [0, 0, 0, 1, 1, 1], [0], [0]>} : vector<2x16x32xbf16>, vector<2x16x32xbf16>, vector<2x16x16xf32> -> vector<2x16x16xf32>
    %cst_23 = arith.constant dense<0xFF800000> : vector<2x16xf32>
    %83 = vector.multi_reduction <maximumf>, %82, %cst_23 [2] : vector<2x16x16xf32> to vector<2x16xf32>
    %84 = vector.shape_cast %83 : vector<2x16xf32> to vector<2x16x1xf32>
    %85 = vector.broadcast %84 : vector<2x16x1xf32> to vector<2x16x16xf32>
    %86 = arith.subf %82, %85 : vector<2x16x16xf32>
    %87 = math.exp %86 : vector<2x16x16xf32>
    %cst_24 = arith.constant dense<0.000000e+00> : vector<2x16xf32>
    %88 = vector.multi_reduction <add>, %87, %cst_24 [2] : vector<2x16x16xf32> to vector<2x16xf32>
    %89 = vector.shape_cast %88 : vector<2x16xf32> to vector<2x16x1xf32>
    %90 = tpu.reciprocal %89 {approx = true} : vector<2x16x1xf32> -> vector<2x16x1xf32>
    %91 = vector.broadcast %90 : vector<2x16x1xf32> to vector<2x16x16xf32>
    %92 = arith.mulf %87, %91 : vector<2x16x16xf32>
    %93 = arith.addf %79, %92 : vector<2x16x16xf32>
    %c1 = arith.constant 1 : index
    %c0_25 = arith.constant 0 : index
    %c0_26 = arith.constant 0 : index
    %94 = vector.load %arg2[%c1, %c0_25, %c0_26] : memref<3x16x16xf32, #tpu.memory_space<vmem>>, vector<1x16x16xf32>
    %95 = vector.shape_cast %94 : vector<1x16x16xf32> to vector<16x16xf32>
    %96 = vector.shape_cast %95 : vector<16x16xf32> to vector<1x16x16xf32>
    %97 = vector.broadcast %96 : vector<1x16x16xf32> to vector<2x16x16xf32>
    %98 = arith.addf %93, %97 : vector<2x16x16xf32>
    %99 = vector.extract_strided_slice %6 {offsets = [0, 0, 768], sizes = [2, 16, 32], strides = [1, 1, 1]} : vector<2x16x960xbf16> to vector<2x16x32xbf16>
    %100 = vector.extract_strided_slice %6 {offsets = [0, 0, 800], sizes = [2, 16, 32], strides = [1, 1, 1]} : vector<2x16x960xbf16> to vector<2x16x32xbf16>
    %cst_27 = arith.constant dense<0.000000e+00> : vector<2x16x16xf32>
    %101 = tpu.matmul %100, %99, %cst_27 {dimension_numbers = #tpu.dot_dimension_numbers<[2], [2], [1], [1], [0, 0, 0, 1, 1, 1], [0], [0]>} : vector<2x16x32xbf16>, vector<2x16x32xbf16>, vector<2x16x16xf32> -> vector<2x16x16xf32>
    %cst_28 = arith.constant dense<0xFF800000> : vector<2x16xf32>
    %102 = vector.multi_reduction <maximumf>, %101, %cst_28 [2] : vector<2x16x16xf32> to vector<2x16xf32>
    %103 = vector.shape_cast %102 : vector<2x16xf32> to vector<2x16x1xf32>
    %104 = vector.broadcast %103 : vector<2x16x1xf32> to vector<2x16x16xf32>
    %105 = arith.subf %101, %104 : vector<2x16x16xf32>
    %106 = math.exp %105 : vector<2x16x16xf32>
    %cst_29 = arith.constant dense<0.000000e+00> : vector<2x16xf32>
    %107 = vector.multi_reduction <add>, %106, %cst_29 [2] : vector<2x16x16xf32> to vector<2x16xf32>
    %108 = vector.shape_cast %107 : vector<2x16xf32> to vector<2x16x1xf32>
    %109 = tpu.reciprocal %108 {approx = true} : vector<2x16x1xf32> -> vector<2x16x1xf32>
    %110 = vector.broadcast %109 : vector<2x16x1xf32> to vector<2x16x16xf32>
    %111 = arith.mulf %106, %110 : vector<2x16x16xf32>
    %112 = vector.extract_strided_slice %6 {offsets = [0, 0, 832], sizes = [2, 16, 32], strides = [1, 1, 1]} : vector<2x16x960xbf16> to vector<2x16x32xbf16>
    %113 = vector.extract_strided_slice %6 {offsets = [0, 0, 864], sizes = [2, 16, 32], strides = [1, 1, 1]} : vector<2x16x960xbf16> to vector<2x16x32xbf16>
    %cst_30 = arith.constant dense<0.000000e+00> : vector<2x16x16xf32>
    %114 = tpu.matmul %113, %112, %cst_30 {dimension_numbers = #tpu.dot_dimension_numbers<[2], [2], [1], [1], [0, 0, 0, 1, 1, 1], [0], [0]>} : vector<2x16x32xbf16>, vector<2x16x32xbf16>, vector<2x16x16xf32> -> vector<2x16x16xf32>
    %cst_31 = arith.constant dense<0xFF800000> : vector<2x16xf32>
    %115 = vector.multi_reduction <maximumf>, %114, %cst_31 [2] : vector<2x16x16xf32> to vector<2x16xf32>
    %116 = vector.shape_cast %115 : vector<2x16xf32> to vector<2x16x1xf32>
    %117 = vector.broadcast %116 : vector<2x16x1xf32> to vector<2x16x16xf32>
    %118 = arith.subf %114, %117 : vector<2x16x16xf32>
    %119 = math.exp %118 : vector<2x16x16xf32>
    %cst_32 = arith.constant dense<0.000000e+00> : vector<2x16xf32>
    %120 = vector.multi_reduction <add>, %119, %cst_32 [2] : vector<2x16x16xf32> to vector<2x16xf32>
    %121 = vector.shape_cast %120 : vector<2x16xf32> to vector<2x16x1xf32>
    %122 = tpu.reciprocal %121 {approx = true} : vector<2x16x1xf32> -> vector<2x16x1xf32>
    %123 = vector.broadcast %122 : vector<2x16x1xf32> to vector<2x16x16xf32>
    %124 = arith.mulf %119, %123 : vector<2x16x16xf32>
    %125 = arith.addf %111, %124 : vector<2x16x16xf32>
    %126 = vector.extract_strided_slice %6 {offsets = [0, 0, 896], sizes = [2, 16, 32], strides = [1, 1, 1]} : vector<2x16x960xbf16> to vector<2x16x32xbf16>
    %127 = vector.extract_strided_slice %6 {offsets = [0, 0, 928], sizes = [2, 16, 32], strides = [1, 1, 1]} : vector<2x16x960xbf16> to vector<2x16x32xbf16>
    %cst_33 = arith.constant dense<0.000000e+00> : vector<2x16x16xf32>
    %128 = tpu.matmul %127, %126, %cst_33 {dimension_numbers = #tpu.dot_dimension_numbers<[2], [2], [1], [1], [0, 0, 0, 1, 1, 1], [0], [0]>} : vector<2x16x32xbf16>, vector<2x16x32xbf16>, vector<2x16x16xf32> -> vector<2x16x16xf32>
    %cst_34 = arith.constant dense<0xFF800000> : vector<2x16xf32>
    %129 = vector.multi_reduction <maximumf>, %128, %cst_34 [2] : vector<2x16x16xf32> to vector<2x16xf32>
    %130 = vector.shape_cast %129 : vector<2x16xf32> to vector<2x16x1xf32>
    %131 = vector.broadcast %130 : vector<2x16x1xf32> to vector<2x16x16xf32>
    %132 = arith.subf %128, %131 : vector<2x16x16xf32>
    %133 = math.exp %132 : vector<2x16x16xf32>
    %cst_35 = arith.constant dense<0.000000e+00> : vector<2x16xf32>
    %134 = vector.multi_reduction <add>, %133, %cst_35 [2] : vector<2x16x16xf32> to vector<2x16xf32>
    %135 = vector.shape_cast %134 : vector<2x16xf32> to vector<2x16x1xf32>
    %136 = tpu.reciprocal %135 {approx = true} : vector<2x16x1xf32> -> vector<2x16x1xf32>
    %137 = vector.broadcast %136 : vector<2x16x1xf32> to vector<2x16x16xf32>
    %138 = arith.mulf %133, %137 : vector<2x16x16xf32>
    %139 = arith.addf %125, %138 : vector<2x16x16xf32>
    %c2 = arith.constant 2 : index
    %c0_36 = arith.constant 0 : index
    %c0_37 = arith.constant 0 : index
    %140 = vector.load %arg2[%c2, %c0_36, %c0_37] : memref<3x16x16xf32, #tpu.memory_space<vmem>>, vector<1x16x16xf32>
    %141 = vector.shape_cast %140 : vector<1x16x16xf32> to vector<16x16xf32>
    %142 = vector.shape_cast %141 : vector<16x16xf32> to vector<1x16x16xf32>
    %143 = vector.broadcast %142 : vector<1x16x16xf32> to vector<2x16x16xf32>
    %144 = arith.addf %139, %143 : vector<2x16x16xf32>
    %145 = tpu.concatenate %52, %98, %144 in 2 : vector<2x16x16xf32>, vector<2x16x16xf32>, vector<2x16x16xf32> -> vector<2x16x48xf32>
    %146 = vector.extract_strided_slice %6 {offsets = [0, 0, 0], sizes = [2, 16, 128], strides = [1, 1, 1]} : vector<2x16x960xbf16> to vector<2x16x128xbf16>
    %147 = vector.extract_strided_slice %6 {offsets = [0, 0, 128], sizes = [2, 16, 128], strides = [1, 1, 1]} : vector<2x16x960xbf16> to vector<2x16x128xbf16>
    %148 = vector.extract_strided_slice %6 {offsets = [0, 0, 256], sizes = [2, 16, 128], strides = [1, 1, 1]} : vector<2x16x960xbf16> to vector<2x16x128xbf16>
    %149 = tpu.concatenate %146, %147, %148 in 1 : vector<2x16x128xbf16>, vector<2x16x128xbf16>, vector<2x16x128xbf16> -> vector<2x48x128xbf16>
    %150 = arith.truncf %145 : vector<2x16x48xf32> to vector<2x16x48xbf16>
    %cst_38 = arith.constant dense<0.000000e+00> : vector<2x16x128xf32>
    %151 = tpu.matmul %150, %149, %cst_38 {dimension_numbers = #tpu.dot_dimension_numbers<[2], [1], [1], [2], [0, 0, 0, 1, 1, 2], [0], [0]>} : vector<2x16x48xbf16>, vector<2x48x128xbf16>, vector<2x16x128xf32> -> vector<2x16x128xf32>
    %152 = arith.truncf %151 : vector<2x16x128xf32> to vector<2x16x128xbf16>
    %c0_39 = arith.constant 0 : index
    %c0_40 = arith.constant 0 : index
    %c0_41 = arith.constant 0 : index
    %153 = vector.load %arg4[%c0_39, %c0_40, %c0_41] : memref<2x16x128xbf16, #tpu.memory_space<vmem>>, vector<2x16x128xbf16>
    tpu.vector_store %arg4[%c0_39, %c0_40, %c0_41], %152 {strides = array<i32>} : memref<2x16x128xbf16, #tpu.memory_space<vmem>>, vector<2x16x128xbf16>,
    %154 = vector.shape_cast %151 : vector<2x16x128xf32> to vector<32x128xf32>
    %cst_42 = arith.constant dense<0.000000e+00> : vector<128xf32>
    %155 = vector.multi_reduction <add>, %154, %cst_42 [0] : vector<32x128xf32> to vector<128xf32>
    %156 = vector.shape_cast %155 : vector<128xf32> to vector<1x128xf32>
    %c0_43 = arith.constant 0 : index
    %c0_44 = arith.constant 0 : index
    %c0_45 = arith.constant 0 : index
    %157 = vector.load %arg5[%c0_43, %c0_44, %c0_45] : memref<1x2x128xf32, #tpu.memory_space<vmem>>, vector<1x1x128xf32>
    %158 = vector.shape_cast %157 : vector<1x1x128xf32> to vector<1x128xf32>
    %159 = vector.shape_cast %156 : vector<1x128xf32> to vector<1x1x128xf32>
    tpu.vector_store %arg5[%c0_43, %c0_44, %c0_45], %159 {strides = array<i32>} : memref<1x2x128xf32, #tpu.memory_space<vmem>>, vector<1x1x128xf32>,
    %160 = arith.mulf %154, %154 : vector<32x128xf32>
    %cst_46 = arith.constant dense<0.000000e+00> : vector<128xf32>
    %161 = vector.multi_reduction <add>, %160, %cst_46 [0] : vector<32x128xf32> to vector<128xf32>
    %162 = vector.shape_cast %161 : vector<128xf32> to vector<1x128xf32>
    %c0_47 = arith.constant 0 : index
    %c1_48 = arith.constant 1 : index
    %c0_49 = arith.constant 0 : index
    %163 = vector.load %arg5[%c0_47, %c1_48, %c0_49] : memref<1x2x128xf32, #tpu.memory_space<vmem>>, vector<1x1x128xf32>
    %164 = vector.shape_cast %163 : vector<1x1x128xf32> to vector<1x128xf32>
    %165 = vector.shape_cast %162 : vector<1x128xf32> to vector<1x1x128xf32>
    tpu.vector_store %arg5[%c0_47, %c1_48, %c0_49], %165 {strides = array<i32>} : memref<1x2x128xf32, #tpu.memory_space<vmem>>, vector<1x1x128xf32>,
    return
  }
  func.func @transform_0(%arg0: i32) -> (i32, i32, i32) {
    %c0_i32 = arith.constant 0 : i32
    %c0_i32_0 = arith.constant 0 : i32
    %c0_i32_1 = arith.constant 0 : i32
    return %arg0, %c0_i32, %c0_i32_0 : i32, i32, i32
  }
  func.func @transform_1(%arg0: i32) -> (i32, i32, i32) {
    %c0_i32 = arith.constant 0 : i32
    %c0_i32_0 = arith.constant 0 : i32
    %c0_i32_1 = arith.constant 0 : i32
    %c0_i32_2 = arith.constant 0 : i32
    return %c0_i32, %c0_i32_0, %c0_i32_1 : i32, i32, i32
  }
  func.func @transform_2(%arg0: i32) -> (i32, i32) {
    %c0_i32 = arith.constant 0 : i32
    %c0_i32_0 = arith.constant 0 : i32
    %c0_i32_1 = arith.constant 0 : i32
    return %c0_i32, %c0_i32_0 : i32, i32
  }
  func.func @transform_3(%arg0: i32) -> (i32, i32, i32) {
    %c0_i32 = arith.constant 0 : i32
    %c0_i32_0 = arith.constant 0 : i32
    %c0_i32_1 = arith.constant 0 : i32
    return %arg0, %c0_i32, %c0_i32_0 : i32, i32, i32
  }
  func.func @transform_4(%arg0: i32) -> (i32, i32, i32) {
    %c0_i32 = arith.constant 0 : i32
    %c0_i32_0 = arith.constant 0 : i32
    %c0_i32_1 = arith.constant 0 : i32
    return %arg0, %c0_i32, %c0_i32_0 : i32, i32, i32
  }
}

module attributes {stable_mosaic.version = 11 : i64} {
  func.func @_tcn_conv_kernel(%arg0: i32, %arg1: memref<2x16x128xbf16, #tpu.memory_space<vmem>>, %arg2: memref<2x16x128xf32, #tpu.memory_space<vmem>>, %arg3: memref<1x128xf32, #tpu.memory_space<vmem>>, %arg4: memref<1x128xf32, #tpu.memory_space<vmem>>, %arg5: memref<128x128xbf16, #tpu.memory_space<vmem>>, %arg6: memref<2x16x128xbf16, #tpu.memory_space<vmem>>, %arg7: memref<1x2x128xf32, #tpu.memory_space<vmem>>) attributes {dimension_semantics = [#tpu.dimension_semantics<parallel>], iteration_bounds = array<i64: 1>, scalar_prefetch = 0 : i64, scratch_operands = 0 : i64, tpu.core_type = #tpu.core_type<tc>, window_params = [{transform_indices = @transform_0, window_bounds = array<i64: 2, 16, 128>}, {transform_indices = @transform_1, window_bounds = array<i64: 2, 16, 128>}, {pipeline_mode = #tpu.pipeline_mode<synchronous>, transform_indices = @transform_2, window_bounds = array<i64: 1, 128>}, {pipeline_mode = #tpu.pipeline_mode<synchronous>, transform_indices = @transform_3, window_bounds = array<i64: 1, 128>}, {pipeline_mode = #tpu.pipeline_mode<synchronous>, transform_indices = @transform_4, window_bounds = array<i64: 128, 128>}, {transform_indices = @transform_5, window_bounds = array<i64: 2, 16, 128>}, {transform_indices = @transform_6, window_bounds = array<i64: 1, 2, 128>}]} {
    %c0 = arith.constant 0 : index
    %c0_0 = arith.constant 0 : index
    %c0_1 = arith.constant 0 : index
    %0 = vector.load %arg1[%c0, %c0_0, %c0_1] : memref<2x16x128xbf16, #tpu.memory_space<vmem>>, vector<2x16x128xbf16>
    %1 = arith.extf %0 : vector<2x16x128xbf16> to vector<2x16x128xf32>
    %c0_2 = arith.constant 0 : index
    %c0_3 = arith.constant 0 : index
    %2 = vector.load %arg3[%c0_2, %c0_3] : memref<1x128xf32, #tpu.memory_space<vmem>>, vector<1x128xf32>
    %3 = vector.shape_cast %2 : vector<1x128xf32> to vector<1x1x128xf32>
    %4 = vector.broadcast %3 : vector<1x1x128xf32> to vector<2x16x128xf32>
    %5 = arith.mulf %1, %4 : vector<2x16x128xf32>
    %c0_4 = arith.constant 0 : index
    %c0_5 = arith.constant 0 : index
    %6 = vector.load %arg4[%c0_4, %c0_5] : memref<1x128xf32, #tpu.memory_space<vmem>>, vector<1x128xf32>
    %7 = vector.shape_cast %6 : vector<1x128xf32> to vector<1x1x128xf32>
    %8 = vector.broadcast %7 : vector<1x1x128xf32> to vector<2x16x128xf32>
    %9 = arith.addf %5, %8 : vector<2x16x128xf32>
    %c0_6 = arith.constant 0 : index
    %c0_7 = arith.constant 0 : index
    %c0_8 = arith.constant 0 : index
    %10 = vector.load %arg2[%c0_6, %c0_7, %c0_8] : memref<2x16x128xf32, #tpu.memory_space<vmem>>, vector<2x16x128xf32>
    %11 = arith.addf %9, %10 : vector<2x16x128xf32>
    %cst = arith.constant 0.000000e+00 : f32
    %12 = vector.broadcast %cst : f32 to vector<2x16x128xf32>
    %13 = arith.maximumf %11, %12 : vector<2x16x128xf32>
    %14 = vector.shape_cast %13 : vector<2x16x128xf32> to vector<32x128xf32>
    %15 = arith.truncf %14 : vector<32x128xf32> to vector<32x128xbf16>
    %c0_9 = arith.constant 0 : index
    %c0_10 = arith.constant 0 : index
    %16 = vector.load %arg5[%c0_9, %c0_10] : memref<128x128xbf16, #tpu.memory_space<vmem>>, vector<128x128xbf16>
    %cst_11 = arith.constant dense<0.000000e+00> : vector<32x128xf32>
    %17 = tpu.matmul %15, %16, %cst_11 {dimension_numbers = #tpu.dot_dimension_numbers<[1], [0], [0], [1], [0, 0, 1, 1], [], []>} : vector<32x128xbf16>, vector<128x128xbf16>, vector<32x128xf32> -> vector<32x128xf32>
    %18 = vector.shape_cast %17 : vector<32x128xf32> to vector<2x16x128xf32>
    %19 = arith.truncf %18 : vector<2x16x128xf32> to vector<2x16x128xbf16>
    %c0_12 = arith.constant 0 : index
    %c0_13 = arith.constant 0 : index
    %c0_14 = arith.constant 0 : index
    %20 = vector.load %arg6[%c0_12, %c0_13, %c0_14] : memref<2x16x128xbf16, #tpu.memory_space<vmem>>, vector<2x16x128xbf16>
    tpu.vector_store %arg6[%c0_12, %c0_13, %c0_14], %19 {strides = array<i32>} : memref<2x16x128xbf16, #tpu.memory_space<vmem>>, vector<2x16x128xbf16>,
    %cst_15 = arith.constant dense<0.000000e+00> : vector<128xf32>
    %21 = vector.multi_reduction <add>, %17, %cst_15 [0] : vector<32x128xf32> to vector<128xf32>
    %22 = vector.shape_cast %21 : vector<128xf32> to vector<1x128xf32>
    %c0_16 = arith.constant 0 : index
    %c0_17 = arith.constant 0 : index
    %c0_18 = arith.constant 0 : index
    %23 = vector.load %arg7[%c0_16, %c0_17, %c0_18] : memref<1x2x128xf32, #tpu.memory_space<vmem>>, vector<1x1x128xf32>
    %24 = vector.shape_cast %23 : vector<1x1x128xf32> to vector<1x128xf32>
    %25 = vector.shape_cast %22 : vector<1x128xf32> to vector<1x1x128xf32>
    tpu.vector_store %arg7[%c0_16, %c0_17, %c0_18], %25 {strides = array<i32>} : memref<1x2x128xf32, #tpu.memory_space<vmem>>, vector<1x1x128xf32>,
    %26 = arith.mulf %17, %17 : vector<32x128xf32>
    %cst_19 = arith.constant dense<0.000000e+00> : vector<128xf32>
    %27 = vector.multi_reduction <add>, %26, %cst_19 [0] : vector<32x128xf32> to vector<128xf32>
    %28 = vector.shape_cast %27 : vector<128xf32> to vector<1x128xf32>
    %c0_20 = arith.constant 0 : index
    %c1 = arith.constant 1 : index
    %c0_21 = arith.constant 0 : index
    %29 = vector.load %arg7[%c0_20, %c1, %c0_21] : memref<1x2x128xf32, #tpu.memory_space<vmem>>, vector<1x1x128xf32>
    %30 = vector.shape_cast %29 : vector<1x1x128xf32> to vector<1x128xf32>
    %31 = vector.shape_cast %28 : vector<1x128xf32> to vector<1x1x128xf32>
    tpu.vector_store %arg7[%c0_20, %c1, %c0_21], %31 {strides = array<i32>} : memref<1x2x128xf32, #tpu.memory_space<vmem>>, vector<1x1x128xf32>,
    return
  }
  func.func @transform_0(%arg0: i32) -> (i32, i32, i32) {
    %c0_i32 = arith.constant 0 : i32
    %c0_i32_0 = arith.constant 0 : i32
    %c0_i32_1 = arith.constant 0 : i32
    return %arg0, %c0_i32, %c0_i32_0 : i32, i32, i32
  }
  func.func @transform_1(%arg0: i32) -> (i32, i32, i32) {
    %c0_i32 = arith.constant 0 : i32
    %c0_i32_0 = arith.constant 0 : i32
    %c0_i32_1 = arith.constant 0 : i32
    return %arg0, %c0_i32, %c0_i32_0 : i32, i32, i32
  }
  func.func @transform_2(%arg0: i32) -> (i32, i32) {
    %c0_i32 = arith.constant 0 : i32
    %c0_i32_0 = arith.constant 0 : i32
    %c0_i32_1 = arith.constant 0 : i32
    return %c0_i32, %c0_i32_0 : i32, i32
  }
  func.func @transform_3(%arg0: i32) -> (i32, i32) {
    %c0_i32 = arith.constant 0 : i32
    %c0_i32_0 = arith.constant 0 : i32
    %c0_i32_1 = arith.constant 0 : i32
    return %c0_i32, %c0_i32_0 : i32, i32
  }
  func.func @transform_4(%arg0: i32) -> (i32, i32) {
    %c0_i32 = arith.constant 0 : i32
    %c0_i32_0 = arith.constant 0 : i32
    %c0_i32_1 = arith.constant 0 : i32
    return %c0_i32, %c0_i32_0 : i32, i32
  }
  func.func @transform_5(%arg0: i32) -> (i32, i32, i32) {
    %c0_i32 = arith.constant 0 : i32
    %c0_i32_0 = arith.constant 0 : i32
    %c0_i32_1 = arith.constant 0 : i32
    return %arg0, %c0_i32, %c0_i32_0 : i32, i32, i32
  }
  func.func @transform_6(%arg0: i32) -> (i32, i32, i32) {
    %c0_i32 = arith.constant 0 : i32
    %c0_i32_0 = arith.constant 0 : i32
    %c0_i32_1 = arith.constant 0 : i32
    return %arg0, %c0_i32, %c0_i32_0 : i32, i32, i32
  }
}

module attributes {stable_mosaic.version = 11 : i64} {
  func.func @_bn_res_relu_kernel(%arg0: i32, %arg1: memref<2x16x128xbf16, #tpu.memory_space<vmem>>, %arg2: memref<2x16x128xf32, #tpu.memory_space<vmem>>, %arg3: memref<1x128xf32, #tpu.memory_space<vmem>>, %arg4: memref<1x128xf32, #tpu.memory_space<vmem>>, %arg5: memref<2x16x128xf32, #tpu.memory_space<vmem>>) attributes {dimension_semantics = [#tpu.dimension_semantics<parallel>], iteration_bounds = array<i64: 1>, scalar_prefetch = 0 : i64, scratch_operands = 0 : i64, tpu.core_type = #tpu.core_type<tc>, window_params = [{transform_indices = @transform_0, window_bounds = array<i64: 2, 16, 128>}, {transform_indices = @transform_1, window_bounds = array<i64: 2, 16, 128>}, {pipeline_mode = #tpu.pipeline_mode<synchronous>, transform_indices = @transform_2, window_bounds = array<i64: 1, 128>}, {pipeline_mode = #tpu.pipeline_mode<synchronous>, transform_indices = @transform_3, window_bounds = array<i64: 1, 128>}, {transform_indices = @transform_4, window_bounds = array<i64: 2, 16, 128>}]} {
    %c0 = arith.constant 0 : index
    %c0_0 = arith.constant 0 : index
    %c0_1 = arith.constant 0 : index
    %0 = vector.load %arg1[%c0, %c0_0, %c0_1] : memref<2x16x128xbf16, #tpu.memory_space<vmem>>, vector<2x16x128xbf16>
    %1 = arith.extf %0 : vector<2x16x128xbf16> to vector<2x16x128xf32>
    %c0_2 = arith.constant 0 : index
    %c0_3 = arith.constant 0 : index
    %2 = vector.load %arg3[%c0_2, %c0_3] : memref<1x128xf32, #tpu.memory_space<vmem>>, vector<1x128xf32>
    %3 = vector.shape_cast %2 : vector<1x128xf32> to vector<1x1x128xf32>
    %4 = vector.broadcast %3 : vector<1x1x128xf32> to vector<2x16x128xf32>
    %5 = arith.mulf %1, %4 : vector<2x16x128xf32>
    %c0_4 = arith.constant 0 : index
    %c0_5 = arith.constant 0 : index
    %6 = vector.load %arg4[%c0_4, %c0_5] : memref<1x128xf32, #tpu.memory_space<vmem>>, vector<1x128xf32>
    %7 = vector.shape_cast %6 : vector<1x128xf32> to vector<1x1x128xf32>
    %8 = vector.broadcast %7 : vector<1x1x128xf32> to vector<2x16x128xf32>
    %9 = arith.addf %5, %8 : vector<2x16x128xf32>
    %c0_6 = arith.constant 0 : index
    %c0_7 = arith.constant 0 : index
    %c0_8 = arith.constant 0 : index
    %10 = vector.load %arg2[%c0_6, %c0_7, %c0_8] : memref<2x16x128xf32, #tpu.memory_space<vmem>>, vector<2x16x128xf32>
    %11 = arith.addf %9, %10 : vector<2x16x128xf32>
    %cst = arith.constant 0.000000e+00 : f32
    %12 = vector.broadcast %cst : f32 to vector<2x16x128xf32>
    %13 = arith.maximumf %11, %12 : vector<2x16x128xf32>
    %c0_9 = arith.constant 0 : index
    %c0_10 = arith.constant 0 : index
    %c0_11 = arith.constant 0 : index
    %14 = vector.load %arg5[%c0_9, %c0_10, %c0_11] : memref<2x16x128xf32, #tpu.memory_space<vmem>>, vector<2x16x128xf32>
    tpu.vector_store %arg5[%c0_9, %c0_10, %c0_11], %13 {strides = array<i32>} : memref<2x16x128xf32, #tpu.memory_space<vmem>>, vector<2x16x128xf32>,
    return
  }
  func.func @transform_0(%arg0: i32) -> (i32, i32, i32) {
    %c0_i32 = arith.constant 0 : i32
    %c0_i32_0 = arith.constant 0 : i32
    %c0_i32_1 = arith.constant 0 : i32
    return %arg0, %c0_i32, %c0_i32_0 : i32, i32, i32
  }
  func.func @transform_1(%arg0: i32) -> (i32, i32, i32) {
    %c0_i32 = arith.constant 0 : i32
    %c0_i32_0 = arith.constant 0 : i32
    %c0_i32_1 = arith.constant 0 : i32
    return %arg0, %c0_i32, %c0_i32_0 : i32, i32, i32
  }
  func.func @transform_2(%arg0: i32) -> (i32, i32) {
    %c0_i32 = arith.constant 0 : i32
    %c0_i32_0 = arith.constant 0 : i32
    %c0_i32_1 = arith.constant 0 : i32
    return %c0_i32, %c0_i32_0 : i32, i32
  }
  func.func @transform_3(%arg0: i32) -> (i32, i32) {
    %c0_i32 = arith.constant 0 : i32
    %c0_i32_0 = arith.constant 0 : i32
    %c0_i32_1 = arith.constant 0 : i32
    return %c0_i32, %c0_i32_0 : i32, i32
  }
  func.func @transform_4(%arg0: i32) -> (i32, i32, i32) {
    %c0_i32 = arith.constant 0 : i32
    %c0_i32_0 = arith.constant 0 : i32
    %c0_i32_1 = arith.constant 0 : i32
    return %arg0, %c0_i32, %c0_i32_0 : i32, i32, i32
  }
}

</mosaic_0001>

<llo_original>
// kernel: tcn_gcn_unit_34_forward.5
$region0: #{tcn_gcn_unit_34_forward.5}
  #allocation0 [shape = 'u32[]', space=smem, size = 0x4, offset = 0x4, fixed_abs, tag = 'smem constant byte address 0x4 - core index']
  #allocation1 [shape = 'u32[144,128]{1,0:T(1,128)}', space=vmem, size = 0x12000, scoped, tag = 'internal scratch']
  %s0 = inlined_call_operand.vmem [shape: bf16[2,16,128], index: 0, kind: input, shape index: {}]
  %s1 = inlined_call_operand.vmem [shape: f32[2,16,128], index: 1, kind: input, shape index: {}]
  %s2 = inlined_call_operand.vmem [shape: f32[1,128], index: 2, kind: input, shape index: {}]
  %s3 = inlined_call_operand.vmem [shape: f32[1,128], index: 3, kind: input, shape index: {}]
  %s4 = inlined_call_operand.vmem [shape: f32[2,16,128], index: 4, kind: output, shape index: {}]
  %s5 = sld [smem:[#allocation0]]
  $region26: #{tcn_gcn_unit_34_forward.5} parent=0
    _
  %s7 = ssub.s32 1, %s5
  %s8 = scalar_select 0, %s7, %s5
  // Predicated region
  $region2: #{tcn_gcn_unit_34_forward.5} parent=0 // pred_check
    _
  $region3: #{tcn_gcn_unit_34_forward.5} parent=0 // pred_check_branch
    %10 = sbr.rel (0) target = $region5
  $region4: #{tcn_gcn_unit_34_forward.5} parent=0 // pred_region
    _
  $region5: #{tcn_gcn_unit_34_forward.5} parent=0 // pred_fallthru
    _
  // Predicated region
  $region6: #{tcn_gcn_unit_34_forward.5} parent=0 // pred_check
    _
  $region7: #{tcn_gcn_unit_34_forward.5} parent=0 // pred_check_branch
    %12 = sbr.rel (0) target = $region9
  $region8: #{tcn_gcn_unit_34_forward.5} parent=0 // pred_region
    _
  $region9: #{tcn_gcn_unit_34_forward.5} parent=0 // pred_fallthru
    _
  // Predicated region
  $region10: #{tcn_gcn_unit_34_forward.5} parent=0 // pred_check
    _
  $region11: #{tcn_gcn_unit_34_forward.5} parent=0 // pred_check_branch
    %14 = sbr.rel (0) target = $region13
  $region12: #{tcn_gcn_unit_34_forward.5} parent=0 // pred_region
    _
  $region13: #{tcn_gcn_unit_34_forward.5} parent=0 // pred_fallthru
    _
  // Predicated region
  $region14: #{tcn_gcn_unit_34_forward.5} parent=0 // pred_check
    _
  $region15: #{tcn_gcn_unit_34_forward.5} parent=0 // pred_check_branch
    %16 = sbr.rel (0) target = $region17
  $region16: #{tcn_gcn_unit_34_forward.5} parent=0 // pred_region
    _
  $region17: #{tcn_gcn_unit_34_forward.5} parent=0 // pred_fallthru
    _
  %v17 = vld [vmem:[%s0] sm:$0xf]
  %v18 = vld [vmem:[%s0 + $0x4] sm:$0xf]
  %v19 = vld [vmem:[%s0 + $0x8] sm:$0xf]
  %v20 = vld [vmem:[%s0 + $0xc] sm:$0xf]
  %v21 = vunpack.c.l.bf16 %v17
  %v22 = vunpack.c.l.bf16 %v18
  %v23 = vunpack.c.l.bf16 %v19
  %v24 = vunpack.c.l.bf16 %v20
  %v25 = vld [vmem:[%s2] sm:$0x1]
  %v27 = vlaneseq
  %v28 = vshrl.u32 %v27, 7
  %v29 = vsub.s32 0, %v28
  %v30 = vrot.slane %v25, %v29
  %v32 = vmul.f32 %v21, %v30
  %v33 = vmul.f32 %v22, %v30
  %v34 = vmul.f32 %v23, %v30
  %v35 = vmul.f32 %v24, %v30
  %v36 = vld [vmem:[%s3] sm:$0x1]
  %v38 = vlaneseq
  %v39 = vshrl.u32 %v38, 7
  %v40 = vsub.s32 0, %v39
  %v41 = vrot.slane %v36, %v40
  %v43 = vadd.f32 %v32, %v41
  %v44 = vadd.f32 %v33, %v41
  %v45 = vadd.f32 %v34, %v41
  %v46 = vadd.f32 %v35, %v41
  %v47 = vld [vmem:[%s1] sm:$0xff]
  %v48 = vld [vmem:[%s1 + $0x8] sm:$0xff]
  %v49 = vld [vmem:[%s1 + $0x10] sm:$0xff]
  %v50 = vld [vmem:[%s1 + $0x18] sm:$0xff]
  %v51 = vadd.f32 %v43, %v47
  %v52 = vadd.f32 %v44, %v48
  %v53 = vadd.f32 %v45, %v49
  %v54 = vadd.f32 %v46, %v50
  %v55 = vmax.f32 %v51, 0.0
  %v56 = vmax.f32 %v52, 0.0
  %v57 = vmax.f32 %v53, 0.0
  %v58 = vmax.f32 %v54, 0.0
  %59 = vst [vmem:[%s4] sm:$0xff] %v55
  %60 = vst [vmem:[%s4 + $0x8] sm:$0xff] %v56
  %61 = vst [vmem:[%s4 + $0x10] sm:$0xff] %v57
  %62 = vst [vmem:[%s4 + $0x18] sm:$0xff] %v58
  // Predicated region
  $region18: #{tcn_gcn_unit_34_forward.5} parent=0 // pred_check
    _
  $region19: #{tcn_gcn_unit_34_forward.5} parent=0 // pred_check_branch
    %64 = sbr.rel (0) target = $region21
  $region20: #{tcn_gcn_unit_34_forward.5} parent=0 // pred_region
    _
  $region21: #{tcn_gcn_unit_34_forward.5} parent=0 // pred_fallthru
    _
  // Predicated region
  $region22: #{tcn_gcn_unit_34_forward.5} parent=0 // pred_check
    _
  $region23: #{tcn_gcn_unit_34_forward.5} parent=0 // pred_check_branch
    %66 = sbr.rel (0) target = $region25
  $region24: #{tcn_gcn_unit_34_forward.5} parent=0 // pred_region
    _
  $region25: #{tcn_gcn_unit_34_forward.5} parent=0 // pred_fallthru
    _

// kernel: tcn_gcn_unit_34_forward.4
$region0: #{tcn_gcn_unit_34_forward.4}
  #allocation0 [shape = 'u32[]', space=smem, size = 0x4, offset = 0x4, fixed_abs, tag = 'smem constant byte address 0x4 - core index']
  #allocation1 [shape = 'u32[144,128]{1,0:T(1,128)}', space=vmem, size = 0x12000, scoped, tag = 'internal scratch']
  %s0 = inlined_call_operand.vmem [shape: bf16[2,16,128], index: 0, kind: input, shape index: {}]
  %s1 = inlined_call_operand.vmem [shape: f32[2,16,128], index: 1, kind: input, shape index: {}]
  %s2 = inlined_call_operand.vmem [shape: f32[1,128], index: 2, kind: input, shape index: {}]
  %s3 = inlined_call_operand.vmem [shape: f32[1,128], index: 3, kind: input, shape index: {}]
  %s4 = inlined_call_operand.vmem [shape: bf16[128,128], index: 4, kind: input, shape index: {}]
  %s5 = inlined_call_operand.vmem [shape: bf16[2,16,128], index: 5, kind: output, shape index: {0}]
  %s6 = inlined_call_operand.vmem [shape: f32[1,2,128], index: 6, kind: output, shape index: {1}]
  %7 = xla_tuple %s5, %s6
  %s8 = sld [smem:[#allocation0]]
  $region38: #{tcn_gcn_unit_34_forward.4} parent=0
    _
  %s10 = ssub.s32 1, %s8
  %s11 = scalar_select 0, %s10, %s8
  // Predicated region
  $region2: #{tcn_gcn_unit_34_forward.4} parent=0 // pred_check
    _
  $region3: #{tcn_gcn_unit_34_forward.4} parent=0 // pred_check_branch
    %13 = sbr.rel (0) target = $region5
  $region4: #{tcn_gcn_unit_34_forward.4} parent=0 // pred_region
    _
  $region5: #{tcn_gcn_unit_34_forward.4} parent=0 // pred_fallthru
    _
  // Predicated region
  $region6: #{tcn_gcn_unit_34_forward.4} parent=0 // pred_check
    _
  $region7: #{tcn_gcn_unit_34_forward.4} parent=0 // pred_check_branch
    %15 = sbr.rel (0) target = $region9
  $region8: #{tcn_gcn_unit_34_forward.4} parent=0 // pred_region
    _
  $region9: #{tcn_gcn_unit_34_forward.4} parent=0 // pred_fallthru
    _
  // Predicated region
  $region10: #{tcn_gcn_unit_34_forward.4} parent=0 // pred_check
    _
  $region11: #{tcn_gcn_unit_34_forward.4} parent=0 // pred_check_branch
    %17 = sbr.rel (0) target = $region13
  $region12: #{tcn_gcn_unit_34_forward.4} parent=0 // pred_region
    _
  $region13: #{tcn_gcn_unit_34_forward.4} parent=0 // pred_fallthru
    _
  // Predicated region
  $region14: #{tcn_gcn_unit_34_forward.4} parent=0 // pred_check
    _
  $region15: #{tcn_gcn_unit_34_forward.4} parent=0 // pred_check_branch
    %19 = sbr.rel (0) target = $region17
  $region16: #{tcn_gcn_unit_34_forward.4} parent=0 // pred_region
    _
  $region17: #{tcn_gcn_unit_34_forward.4} parent=0 // pred_fallthru
    _
  // Predicated region
  $region18: #{tcn_gcn_unit_34_forward.4} parent=0 // pred_check
    _
  $region19: #{tcn_gcn_unit_34_forward.4} parent=0 // pred_check_branch
    %21 = sbr.rel (0) target = $region21
  $region20: #{tcn_gcn_unit_34_forward.4} parent=0 // pred_region
    _
  $region21: #{tcn_gcn_unit_34_forward.4} parent=0 // pred_fallthru
    _
  %v23 = vld [vmem:[%s0] sm:$0xf]
  %v24 = vld [vmem:[%s0 + $0x4] sm:$0xf]
  %v25 = vld [vmem:[%s0 + $0x8] sm:$0xf]
  %v26 = vld [vmem:[%s0 + $0xc] sm:$0xf]
  %v27 = vunpack.c.l.bf16 %v23
  %v28 = vunpack.c.l.bf16 %v24
  %v29 = vunpack.c.l.bf16 %v25
  %v30 = vunpack.c.l.bf16 %v26
  %v31 = vld [vmem:[%s2] sm:$0x1]
  %v33 = vlaneseq
  %v34 = vshrl.u32 %v33, 7
  %v35 = vsub.s32 0, %v34
  %v36 = vrot.slane %v31, %v35
  %v38 = vmul.f32 %v27, %v36
  %v39 = vmul.f32 %v28, %v36
  %v40 = vmul.f32 %v29, %v36
  %v41 = vmul.f32 %v30, %v36
  %v42 = vld [vmem:[%s3] sm:$0x1]
  %v44 = vlaneseq
  %v45 = vshrl.u32 %v44, 7
  %v46 = vsub.s32 0, %v45
  %v47 = vrot.slane %v42, %v46
  %v49 = vadd.f32 %v38, %v47
  %v50 = vadd.f32 %v39, %v47
  %v51 = vadd.f32 %v40, %v47
  %v52 = vadd.f32 %v41, %v47
  %v53 = vld [vmem:[%s1] sm:$0xff]
  %v54 = vld [vmem:[%s1 + $0x8] sm:$0xff]
  %v55 = vld [vmem:[%s1 + $0x10] sm:$0xff]
  %v56 = vld [vmem:[%s1 + $0x18] sm:$0xff]
  %v57 = vadd.f32 %v49, %v53
  %v58 = vadd.f32 %v50, %v54
  %v59 = vadd.f32 %v51, %v55
  %v60 = vadd.f32 %v52, %v56
  %v61 = vmax.f32 %v57, 0.0
  %v62 = vmax.f32 %v58, 0.0
  %v63 = vmax.f32 %v59, 0.0
  %v64 = vmax.f32 %v60, 0.0
  %v65 = vpack.c.bf16 %v62, %v61
  %v66 = vpack.c.bf16 %v64, %v63
  %v67 = vld [vmem:[%s4] sm:$0xf]
  %v68 = vld [vmem:[%s4 + $0x4] sm:$0xf]
  %v69 = vld [vmem:[%s4 + $0x8] sm:$0xf]
  %v70 = vld [vmem:[%s4 + $0xc] sm:$0xf]
  %v71 = vld [vmem:[%s4 + $0x10] sm:$0xf]
  %v72 = vld [vmem:[%s4 + $0x14] sm:$0xf]
  %v73 = vld [vmem:[%s4 + $0x18] sm:$0xf]
  %v74 = vld [vmem:[%s4 + $0x1c] sm:$0xf]
  %v75 = vld [vmem:[%s4 + $0x20] sm:$0xf]
  %v76 = vld [vmem:[%s4 + $0x24] sm:$0xf]
  %v77 = vld [vmem:[%s4 + $0x28] sm:$0xf]
  %v78 = vld [vmem:[%s4 + $0x2c] sm:$0xf]
  %v79 = vld [vmem:[%s4 + $0x30] sm:$0xf]
  %v80 = vld [vmem:[%s4 + $0x34] sm:$0xf]
  %v81 = vld [vmem:[%s4 + $0x38] sm:$0xf]
  %v82 = vld [vmem:[%s4 + $0x3c] sm:$0xf]
  %v99 = vunpack.c.l.b16 %v67
  %v100 = vunpack.c.l.b16 %v68
  %v101 = vunpack.c.l.b16 %v69
  %v102 = vunpack.c.l.b16 %v70
  %v103 = vunpack.c.l.b16 %v71
  %v104 = vunpack.c.l.b16 %v72
  %v105 = vunpack.c.l.b16 %v73
  %v106 = vunpack.c.l.b16 %v74
  %v107 = vunpack.c.l.b16 %v75
  %v108 = vunpack.c.l.b16 %v76
  %v109 = vunpack.c.l.b16 %v77
  %v110 = vunpack.c.l.b16 %v78
  %v111 = vunpack.c.l.b16 %v79
  %v112 = vunpack.c.l.b16 %v80
  %v113 = vunpack.c.l.b16 %v81
  %v114 = vunpack.c.l.b16 %v82
  %v115 = vpack.c.b16 %v100, %v99
  %v116 = vpack.c.b16 %v102, %v101
  %v117 = vpack.c.b16 %v104, %v103
  %v118 = vpack.c.b16 %v106, %v105
  %v119 = vpack.c.b16 %v108, %v107
  %v120 = vpack.c.b16 %v110, %v109
  %v121 = vpack.c.b16 %v112, %v111
  %v122 = vpack.c.b16 %v114, %v113
  %131 = vmatprep.subr.bf16.mxu0 0
  %132 = vmatpush1.bf16.msra.mxu0 %v115
  %133 = vmatprep.subr.bf16.mxu0 0
  %134 = vmatpush1.bf16.msra.mxu0 %v116
  %135 = vmatprep.subr.bf16.mxu0 0
  %136 = vmatpush1.bf16.msra.mxu0 %v117
  %137 = vmatprep.subr.bf16.mxu0 0
  %138 = vmatpush1.bf16.msra.mxu0 %v118
  %139 = vmatprep.subr.bf16.mxu0 0
  %140 = vmatpush1.bf16.msra.mxu0 %v119
  %141 = vmatprep.subr.bf16.mxu0 0
  %142 = vmatpush1.bf16.msra.mxu0 %v120
  %143 = vmatprep.subr.bf16.mxu0 0
  %144 = vmatpush1.bf16.msra.mxu0 %v121
  %145 = vmatprep.subr.bf16.mxu0 0
  %146 = vmatpush1.bf16.msra.mxu0 %v122
  %147 = vmatprep.subr.bf16.mxu0 0
  %148 = vmatpush1.bf16.msra.mxu0 0
  %149 = vmatprep.subr.bf16.mxu0 0
  %150 = vmatpush1.bf16.msra.mxu0 0
  %151 = vmatprep.subr.bf16.mxu0 0
  %152 = vmatpush1.bf16.msra.mxu0 0
  %153 = vmatprep.subr.bf16.mxu0 0
  %154 = vmatpush1.bf16.msra.mxu0 0
  %155 = vmatprep.subr.bf16.mxu0 0
  %156 = vmatpush1.bf16.msra.mxu0 0
  %157 = vmatprep.subr.bf16.mxu0 0
  %158 = vmatpush1.bf16.msra.mxu0 0
  %159 = vmatprep.subr.bf16.mxu0 0
  %160 = vmatpush1.bf16.msra.mxu0 0
  %161 = vmatprep.subr.bf16.mxu0 0
  %162 = vmatpush1.bf16.msra.mxu0 0
  %163 = vmatprep.mubr.bf16.mxu0 0
  %164 = vmatmul.mubr.bf16.gmra.mrb[0].mxu0 %v65
  %v165 = vpop.f32.mrb[0].mxu0
  %v166 = vadd.f32 0.0, %v165
  %v167 = vpop.f32.mrb[0].mxu0
  %v168 = vpop.f32.mrb[0].mxu0
  %v169 = vadd.f32 0.0, %v168
  %v170 = vpop.f32.mrb[0].mxu0
  %171 = vmatprep.mubr.bf16.mxu0 0
  %172 = vmatmul.mubr.bf16.gmra.mrb[0].mxu0 %v66
  %v173 = vpop.f32.mrb[0].mxu0
  %v174 = vadd.f32 0.0, %v173
  %v175 = vpop.f32.mrb[0].mxu0
  %v176 = vpop.f32.mrb[0].mxu0
  %v177 = vadd.f32 0.0, %v176
  %v178 = vpop.f32.mrb[0].mxu0
  %179 = vdwg.mxu0
  %v180 = vpack.c.bf16 %v169, %v166
  %v181 = vpack.c.bf16 %v177, %v174
  %v184 = vunpack.c.l.b16 %v180
  %v185 = vunpack.c.h.b16 %v180
  %v186 = vunpack.c.l.b16 %v181
  %v187 = vunpack.c.h.b16 %v181
  %v188 = vpack.c.b16 %v184, %v184
  %v189 = vpack.c.b16 %v185, %v185
  %v190 = vpack.c.b16 %v186, %v186
  %v191 = vpack.c.b16 %v187, %v187
  %196 = vst [vmem:[%s5] sm:$0xf] %v188
  %197 = vst [vmem:[%s5 + $0x4] sm:$0xf] %v189
  %198 = vst [vmem:[%s5 + $0x8] sm:$0xf] %v190
  %199 = vst [vmem:[%s5 + $0xc] sm:$0xf] %v191
  %v200 = vadd.f32 %v166, %v169
  %v201 = vadd.f32 %v200, %v174
  %v202 = vadd.f32 %v201, %v177
  %v203 = vrot.slane %v202, 4
  %v204 = vadd.f32 %v202, %v203
  %v205 = vrot.slane %v204, 2
  %v206 = vadd.f32 %v204, %v205
  %v207 = vrot.slane %v206, 1
  %v208 = vadd.f32 %v206, %v207
  %209 = vst [vmem:[%s6] sm:$0x1] %v208
  %v210 = vmul.f32 %v166, %v166
  %v211 = vmul.f32 %v169, %v169
  %v212 = vmul.f32 %v174, %v174
  %v213 = vmul.f32 %v177, %v177
  %v214 = vadd.f32 %v210, %v211
  %v215 = vadd.f32 %v214, %v212
  %v216 = vadd.f32 %v215, %v213
  %v217 = vrot.slane %v216, 4
  %v218 = vadd.f32 %v216, %v217
  %v219 = vrot.slane %v218, 2
  %v220 = vadd.f32 %v218, %v219
  %v221 = vrot.slane %v220, 1
  %v222 = vadd.f32 %v220, %v221
  %223 = vst [vmem:[%s6 + $0x1] sm:$0x1] %v222
  // Predicated region
  $region22: #{tcn_gcn_unit_34_forward.4} parent=0 // pred_check
    _
  $region23: #{tcn_gcn_unit_34_forward.4} parent=0 // pred_check_branch
    %225 = sbr.rel (0) target = $region25
  $region24: #{tcn_gcn_unit_34_forward.4} parent=0 // pred_region
    _
  $region25: #{tcn_gcn_unit_34_forward.4} parent=0 // pred_fallthru
    _
  // Predicated region
  $region26: #{tcn_gcn_unit_34_forward.4} parent=0 // pred_check
    _
  $region27: #{tcn_gcn_unit_34_forward.4} parent=0 // pred_check_branch
    %227 = sbr.rel (0) target = $region29
  $region28: #{tcn_gcn_unit_34_forward.4} parent=0 // pred_region
    _
  $region29: #{tcn_gcn_unit_34_forward.4} parent=0 // pred_fallthru
    _
  // Predicated region
  $region30: #{tcn_gcn_unit_34_forward.4} parent=0 // pred_check
    _
  $region31: #{tcn_gcn_unit_34_forward.4} parent=0 // pred_check_branch
    %229 = sbr.rel (0) target = $region33
  $region32: #{tcn_gcn_unit_34_forward.4} parent=0 // pred_region
    _
  $region33: #{tcn_gcn_unit_34_forward.4} parent=0 // pred_fallthru
    _
  // Predicated region
  $region34: #{tcn_gcn_unit_34_forward.4} parent=0 // pred_check
    _
  $region35: #{tcn_gcn_unit_34_forward.4} parent=0 // pred_check_branch
    %231 = sbr.rel (0) target = $region37
  $region36: #{tcn_gcn_unit_34_forward.4} parent=0 // pred_region
    _
  $region37: #{tcn_gcn_unit_34_forward.4} parent=0 // pred_fallthru
    _

// kernel: tcn_gcn_unit_34_forward.3
$region0: #{tcn_gcn_unit_34_forward.3}
  #allocation0 [shape = 'u32[]', space=smem, size = 0x4, offset = 0x4, fixed_abs, tag = 'smem constant byte address 0x4 - core index']
  #allocation1 [shape = 'u32[144,128]{1,0:T(1,128)}', space=vmem, size = 0x12000, scoped, tag = 'internal scratch']
  %s0 = inlined_call_operand.vmem [shape: f32[2,16,128], index: 0, kind: input, shape index: {}]
  %s1 = inlined_call_operand.vmem [shape: f32[3,16,16], index: 1, kind: input, shape index: {}]
  %s2 = inlined_call_operand.vmem [shape: bf16[128,960], index: 2, kind: input, shape index: {}]
  %s3 = inlined_call_operand.vmem [shape: bf16[2,16,128], index: 3, kind: output, shape index: {0}]
  %s4 = inlined_call_operand.vmem [shape: f32[1,2,128], index: 4, kind: output, shape index: {1}]
  %5 = xla_tuple %s3, %s4
  %s6 = sld [smem:[#allocation0]]
  $region30: #{tcn_gcn_unit_34_forward.3} parent=0
    _
  %s8 = ssub.s32 1, %s6
  %s9 = scalar_select 0, %s8, %s6
  // Predicated region
  $region2: #{tcn_gcn_unit_34_forward.3} parent=0 // pred_check
    _
  $region3: #{tcn_gcn_unit_34_forward.3} parent=0 // pred_check_branch
    %11 = sbr.rel (0) target = $region5
  $region4: #{tcn_gcn_unit_34_forward.3} parent=0 // pred_region
    _
  $region5: #{tcn_gcn_unit_34_forward.3} parent=0 // pred_fallthru
    _
  // Predicated region
  $region6: #{tcn_gcn_unit_34_forward.3} parent=0 // pred_check
    _
  $region7: #{tcn_gcn_unit_34_forward.3} parent=0 // pred_check_branch
    %13 = sbr.rel (0) target = $region9
  $region8: #{tcn_gcn_unit_34_forward.3} parent=0 // pred_region
    _
  $region9: #{tcn_gcn_unit_34_forward.3} parent=0 // pred_fallthru
    _
  // Predicated region
  $region10: #{tcn_gcn_unit_34_forward.3} parent=0 // pred_check
    _
  $region11: #{tcn_gcn_unit_34_forward.3} parent=0 // pred_check_branch
    %15 = sbr.rel (0) target = $region13
  $region12: #{tcn_gcn_unit_34_forward.3} parent=0 // pred_region
    _
  $region13: #{tcn_gcn_unit_34_forward.3} parent=0 // pred_fallthru
    _
  %v17 = vld [vmem:[%s0] sm:$0xff]
  %v18 = vld [vmem:[%s0 + $0x8] sm:$0xff]
  %v19 = vld [vmem:[%s0 + $0x10] sm:$0xff]
  %v20 = vld [vmem:[%s0 + $0x18] sm:$0xff]
  %v21 = vpack.c.bf16 %v18, %v17
  %v22 = vpack.c.bf16 %v20, %v19
  %v23 = vld [vmem:[%s2] sm:$0xff]
  %v24 = vld [vmem:[%s2 + $0x8] sm:$0xff]
  %v25 = vld [vmem:[%s2 + $0x10] sm:$0xff]
  %v26 = vld [vmem:[%s2 + $0x18] sm:$0xff]
  %v27 = vld [vmem:[%s2 + $0x20] sm:$0xff]
  %v28 = vld [vmem:[%s2 + $0x28] sm:$0xff]
  %v29 = vld [vmem:[%s2 + $0x30] sm:$0xff]
  %v30 = vld [vmem:[%s2 + $0x38] sm:$0xff]
  %v31 = vld [vmem:[%s2 + $0x40] sm:$0xff]
  %v32 = vld [vmem:[%s2 + $0x48] sm:$0xff]
  %v33 = vld [vmem:[%s2 + $0x50] sm:$0xff]
  %v34 = vld [vmem:[%s2 + $0x58] sm:$0xff]
  %v35 = vld [vmem:[%s2 + $0x60] sm:$0xff]
  %v36 = vld [vmem:[%s2 + $0x68] sm:$0xff]
  %v37 = vld [vmem:[%s2 + $0x70] sm:$0xff]
  %v38 = vld [vmem:[%s2 + $0x78] sm:$0xff]
  %v39 = vld [vmem:[%s2 + $0x80] sm:$0xff]
  %v40 = vld [vmem:[%s2 + $0x88] sm:$0xff]
  %v41 = vld [vmem:[%s2 + $0x90] sm:$0xff]
  %v42 = vld [vmem:[%s2 + $0x98] sm:$0xff]
  %v43 = vld [vmem:[%s2 + $0xa0] sm:$0xff]
  %v44 = vld [vmem:[%s2 + $0xa8] sm:$0xff]
  %v45 = vld [vmem:[%s2 + $0xb0] sm:$0xff]
  %v46 = vld [vmem:[%s2 + $0xb8] sm:$0xff]
  %v47 = vld [vmem:[%s2 + $0xc0] sm:$0xff]
  %v48 = vld [vmem:[%s2 + $0xc8] sm:$0xff]
  %v49 = vld [vmem:[%s2 + $0xd0] sm:$0xff]
  %v50 = vld [vmem:[%s2 + $0xd8] sm:$0xff]
  %v51 = vld [vmem:[%s2 + $0xe0] sm:$0xff]
  %v52 = vld [vmem:[%s2 + $0xe8] sm:$0xff]
  %v53 = vld [vmem:[%s2 + $0xf0] sm:$0xff]
  %v54 = vld [vmem:[%s2 + $0xf8] sm:$0xff]
  %v55 = vld [vmem:[%s2 + $0x100] sm:$0xff]
  %v56 = vld [vmem:[%s2 + $0x108] sm:$0xff]
  %v57 = vld [vmem:[%s2 + $0x110] sm:$0xff]
  %v58 = vld [vmem:[%s2 + $0x118] sm:$0xff]
  %v59 = vld [vmem:[%s2 + $0x120] sm:$0xff]
  %v60 = vld [vmem:[%s2 + $0x128] sm:$0xff]
  %v61 = vld [vmem:[%s2 + $0x130] sm:$0xff]
  %v62 = vld [vmem:[%s2 + $0x138] sm:$0xff]
  %v63 = vld [vmem:[%s2 + $0x140] sm:$0xff]
  %v64 = vld [vmem:[%s2 + $0x148] sm:$0xff]
  %v65 = vld [vmem:[%s2 + $0x150] sm:$0xff]
  %v66 = vld [vmem:[%s2 + $0x158] sm:$0xff]
  %v67 = vld [vmem:[%s2 + $0x160] sm:$0xff]
  %v68 = vld [vmem:[%s2 + $0x168] sm:$0xff]
  %v69 = vld [vmem:[%s2 + $0x170] sm:$0xff]
  %v70 = vld [vmem:[%s2 + $0x178] sm:$0xff]
  %v71 = vld [vmem:[%s2 + $0x180] sm:$0xff]
  %v72 = vld [vmem:[%s2 + $0x188] sm:$0xff]
  %v73 = vld [vmem:[%s2 + $0x190] sm:$0xff]
  %v74 = vld [vmem:[%s2 + $0x198] sm:$0xff]
  %v75 = vld [vmem:[%s2 + $0x1a0] sm:$0xff]
  %v76 = vld [vmem:[%s2 + $0x1a8] sm:$0xff]
  %v77 = vld [vmem:[%s2 + $0x1b0] sm:$0xff]
  %v78 = vld [vmem:[%s2 + $0x1b8] sm:$0xff]
  %v79 = vld [vmem:[%s2 + $0x1c0] sm:$0xff]
  %v80 = vld [vmem:[%s2 + $0x1c8] sm:$0xff]
  %v81 = vld [vmem:[%s2 + $0x1d0] sm:$0xff]
  %v82 = vld [vmem:[%s2 + $0x1d8] sm:$0xff]
  %v83 = vld [vmem:[%s2 + $0x1e0] sm:$0xff]
  %v84 = vld [vmem:[%s2 + $0x1e8] sm:$0xff]
  %v85 = vld [vmem:[%s2 + $0x1f0] sm:$0xff]
  %v86 = vld [vmem:[%s2 + $0x1f8] sm:$0xff]
  %v151 = vunpack.c.l.b16 %v23
  %v152 = vunpack.c.h.b16 %v23
  %v153 = vunpack.c.l.b16 %v24
  %v154 = vunpack.c.h.b16 %v24
  %v155 = vunpack.c.l.b16 %v25
  %v156 = vunpack.c.h.b16 %v25
  %v157 = vunpack.c.l.b16 %v26
  %v158 = vunpack.c.h.b16 %v26
  %v159 = vunpack.c.l.b16 %v27
  %v160 = vunpack.c.h.b16 %v27
  %v161 = vunpack.c.l.b16 %v28
  %v162 = vunpack.c.h.b16 %v28
  %v163 = vunpack.c.l.b16 %v29
  %v164 = vunpack.c.h.b16 %v29
  %v165 = vunpack.c.l.b16 %v30
  %v166 = vunpack.c.h.b16 %v30
  %v167 = vunpack.c.l.b16 %v31
  %v168 = vunpack.c.h.b16 %v31
  %v169 = vunpack.c.l.b16 %v32
  %v170 = vunpack.c.h.b16 %v32
  %v171 = vunpack.c.l.b16 %v33
  %v172 = vunpack.c.h.b16 %v33
  %v173 = vunpack.c.l.b16 %v34
  %v174 = vunpack.c.h.b16 %v34
  %v175 = vunpack.c.l.b16 %v35
  %v176 = vunpack.c.h.b16 %v35
  %v177 = vunpack.c.l.b16 %v36
  %v178 = vunpack.c.h.b16 %v36
  %v179 = vunpack.c.l.b16 %v37
  %v180 = vunpack.c.h.b16 %v37
  %v181 = vunpack.c.l.b16 %v38
  %v182 = vunpack.c.h.b16 %v38
  %v183 = vunpack.c.l.b16 %v39
  %v184 = vunpack.c.h.b16 %v39
  %v185 = vunpack.c.l.b16 %v40
  %v186 = vunpack.c.h.b16 %v40
  %v187 = vunpack.c.l.b16 %v41
  %v188 = vunpack.c.h.b16 %v41
  %v189 = vunpack.c.l.b16 %v42
  %v190 = vunpack.c.h.b16 %v42
  %v191 = vunpack.c.l.b16 %v43
  %v192 = vunpack.c.h.b16 %v43
  %v193 = vunpack.c.l.b16 %v44
  %v194 = vunpack.c.h.b16 %v44
  %v195 = vunpack.c.l.b16 %v45
  %v196 = vunpack.c.h.b16 %v45
  %v197 = vunpack.c.l.b16 %v46
  %v198 = vunpack.c.h.b16 %v46
  %v199 = vunpack.c.l.b16 %v47
  %v200 = vunpack.c.h.b16 %v47
  %v201 = vunpack.c.l.b16 %v48
  %v202 = vunpack.c.h.b16 %v48
  %v203 = vunpack.c.l.b16 %v49
  %v204 = vunpack.c.h.b16 %v49
  %v205 = vunpack.c.l.b16 %v50
  %v206 = vunpack.c.h.b16 %v50
  %v207 = vunpack.c.l.b16 %v51
  %v208 = vunpack.c.h.b16 %v51
  %v209 = vunpack.c.l.b16 %v52
  %v210 = vunpack.c.h.b16 %v52
  %v211 = vunpack.c.l.b16 %v53
  %v212 = vunpack.c.h.b16 %v53
  %v213 = vunpack.c.l.b16 %v54
  %v214 = vunpack.c.h.b16 %v54
  %v215 = vunpack.c.l.b16 %v55
  %v216 = vunpack.c.h.b16 %v55
  %v217 = vunpack.c.l.b16 %v56
  %v218 = vunpack.c.h.b16 %v56
  %v219 = vunpack.c.l.b16 %v57
  %v220 = vunpack.c.h.b16 %v57
  %v221 = vunpack.c.l.b16 %v58
  %v222 = vunpack.c.h.b16 %v58
  %v223 = vunpack.c.l.b16 %v59
  %v224 = vunpack.c.h.b16 %v59
  %v225 = vunpack.c.l.b16 %v60
  %v226 = vunpack.c.h.b16 %v60
  %v227 = vunpack.c.l.b16 %v61
  %v228 = vunpack.c.h.b16 %v61
  %v229 = vunpack.c.l.b16 %v62
  %v230 = vunpack.c.h.b16 %v62
  %v231 = vunpack.c.l.b16 %v63
  %v232 = vunpack.c.h.b16 %v63
  %v233 = vunpack.c.l.b16 %v64
  %v234 = vunpack.c.h.b16 %v64
  %v235 = vunpack.c.l.b16 %v65
  %v236 = vunpack.c.h.b16 %v65
  %v237 = vunpack.c.l.b16 %v66
  %v238 = vunpack.c.h.b16 %v66
  %v239 = vunpack.c.l.b16 %v67
  %v240 = vunpack.c.h.b16 %v67
  %v241 = vunpack.c.l.b16 %v68
  %v242 = vunpack.c.h.b16 %v68
  %v243 = vunpack.c.l.b16 %v69
  %v244 = vunpack.c.h.b16 %v69
  %v245 = vunpack.c.l.b16 %v70
  %v246 = vunpack.c.h.b16 %v70
  %v247 = vunpack.c.l.b16 %v71
  %v248 = vunpack.c.h.b16 %v71
  %v249 = vunpack.c.l.b16 %v72
  %v250 = vunpack.c.h.b16 %v72
  %v251 = vunpack.c.l.b16 %v73
  %v252 = vunpack.c.h.b16 %v73
  %v253 = vunpack.c.l.b16 %v74
  %v254 = vunpack.c.h.b16 %v74
  %v255 = vunpack.c.l.b16 %v75
  %v256 = vunpack.c.h.b16 %v75
  %v257 = vunpack.c.l.b16 %v76
  %v258 = vunpack.c.h.b16 %v76
  %v259 = vunpack.c.l.b16 %v77
  %v260 = vunpack.c.h.b16 %v77
  %v261 = vunpack.c.l.b16 %v78
  %v262 = vunpack.c.h.b16 %v78
  %v263 = vunpack.c.l.b16 %v79
  %v264 = vunpack.c.h.b16 %v79
  %v265 = vunpack.c.l.b16 %v80
  %v266 = vunpack.c.h.b16 %v80
  %v267 = vunpack.c.l.b16 %v81
  %v268 = vunpack.c.h.b16 %v81
  %v269 = vunpack.c.l.b16 %v82
  %v270 = vunpack.c.h.b16 %v82
  %v271 = vunpack.c.l.b16 %v83
  %v272 = vunpack.c.h.b16 %v83
  %v273 = vunpack.c.l.b16 %v84
  %v274 = vunpack.c.h.b16 %v84
  %v275 = vunpack.c.l.b16 %v85
  %v276 = vunpack.c.h.b16 %v85
  %v277 = vunpack.c.l.b16 %v86
  %v278 = vunpack.c.h.b16 %v86
  %v279 = vpack.c.b16 %v159, %v151
  %v280 = vpack.c.b16 %v160, %v152
  %v281 = vpack.c.b16 %v161, %v153
  %v282 = vpack.c.b16 %v162, %v154
  %v283 = vpack.c.b16 %v163, %v155
  %v284 = vpack.c.b16 %v164, %v156
  %v285 = vpack.c.b16 %v165, %v157
  %v286 = vpack.c.b16 %v166, %v158
  %v287 = vpack.c.b16 %v175, %v167
  %v288 = vpack.c.b16 %v176, %v168
  %v289 = vpack.c.b16 %v177, %v169
  %v290 = vpack.c.b16 %v178, %v170
  %v291 = vpack.c.b16 %v179, %v171
  %v292 = vpack.c.b16 %v180, %v172
  %v293 = vpack.c.b16 %v181, %v173
  %v294 = vpack.c.b16 %v182, %v174
  %v295 = vpack.c.b16 %v191, %v183
  %v296 = vpack.c.b16 %v192, %v184
  %v297 = vpack.c.b16 %v193, %v185
  %v298 = vpack.c.b16 %v194, %v186
  %v299 = vpack.c.b16 %v195, %v187
  %v300 = vpack.c.b16 %v196, %v188
  %v301 = vpack.c.b16 %v197, %v189
  %v302 = vpack.c.b16 %v198, %v190
  %v303 = vpack.c.b16 %v207, %v199
  %v304 = vpack.c.b16 %v208, %v200
  %v305 = vpack.c.b16 %v209, %v201
  %v306 = vpack.c.b16 %v210, %v202
  %v307 = vpack.c.b16 %v211, %v203
  %v308 = vpack.c.b16 %v212, %v204
  %v309 = vpack.c.b16 %v213, %v205
  %v310 = vpack.c.b16 %v214, %v206
  %v311 = vpack.c.b16 %v223, %v215
  %v312 = vpack.c.b16 %v224, %v216
  %v313 = vpack.c.b16 %v225, %v217
  %v314 = vpack.c.b16 %v226, %v218
  %v315 = vpack.c.b16 %v227, %v219
  %v316 = vpack.c.b16 %v228, %v220
  %v317 = vpack.c.b16 %v229, %v221
  %v318 = vpack.c.b16 %v230, %v222
  %v319 = vpack.c.b16 %v239, %v231
  %v320 = vpack.c.b16 %v240, %v232
  %v321 = vpack.c.b16 %v241, %v233
  %v322 = vpack.c.b16 %v242, %v234
  %v323 = vpack.c.b16 %v243, %v235
  %v324 = vpack.c.b16 %v244, %v236
  %v325 = vpack.c.b16 %v245, %v237
  %v326 = vpack.c.b16 %v246, %v238
  %v327 = vpack.c.b16 %v255, %v247
  %v328 = vpack.c.b16 %v256, %v248
  %v329 = vpack.c.b16 %v257, %v249
  %v330 = vpack.c.b16 %v258, %v250
  %v331 = vpack.c.b16 %v259, %v251
  %v332 = vpack.c.b16 %v260, %v252
  %v333 = vpack.c.b16 %v261, %v253
  %v334 = vpack.c.b16 %v262, %v254
  %v335 = vpack.c.b16 %v271, %v263
  %v336 = vpack.c.b16 %v272, %v264
  %v337 = vpack.c.b16 %v273, %v265
  %v338 = vpack.c.b16 %v274, %v266
  %v339 = vpack.c.b16 %v275, %v267
  %v340 = vpack.c.b16 %v276, %v268
  %v341 = vpack.c.b16 %v277, %v269
  %v342 = vpack.c.b16 %v278, %v270
  %407 = vmatprep.subr.bf16.mxu0 %v280
  %408 = vmatpush1.bf16.msra.mxu0 %v279
  %409 = vmatprep.subr.bf16.mxu0 %v288
  %410 = vmatpush1.bf16.msra.mxu0 %v287
  %411 = vmatprep.subr.bf16.mxu0 %v296
  %412 = vmatpush1.bf16.msra.mxu0 %v295
  %413 = vmatprep.subr.bf16.mxu0 %v304
  %414 = vmatpush1.bf16.msra.mxu0 %v303
  %415 = vmatprep.subr.bf16.mxu0 %v312
  %416 = vmatpush1.bf16.msra.mxu0 %v311
  %417 = vmatprep.subr.bf16.mxu0 %v320
  %418 = vmatpush1.bf16.msra.mxu0 %v319
  %419 = vmatprep.subr.bf16.mxu0 %v328
  %420 = vmatpush1.bf16.msra.mxu0 %v327
  %421 = vmatprep.subr.bf16.mxu0 %v336
  %422 = vmatpush1.bf16.msra.mxu0 %v335
  %423 = vmatprep.subr.bf16.mxu0 0
  %424 = vmatpush1.bf16.msra.mxu0 0
  %425 = vmatprep.subr.bf16.mxu0 0
  %426 = vmatpush1.bf16.msra.mxu0 0
  %427 = vmatprep.subr.bf16.mxu0 0
  %428 = vmatpush1.bf16.msra.mxu0 0
  %429 = vmatprep.subr.bf16.mxu0 0
  %430 = vmatpush1.bf16.msra.mxu0 0
  %431 = vmatprep.subr.bf16.mxu0 0
  %432 = vmatpush1.bf16.msra.mxu0 0
  %433 = vmatprep.subr.bf16.mxu0 0
  %434 = vmatpush1.bf16.msra.mxu0 0
  %435 = vmatprep.subr.bf16.mxu0 0
  %436 = vmatpush1.bf16.msra.mxu0 0
  %437 = vmatprep.subr.bf16.mxu0 0
  %438 = vmatpush1.bf16.msra.mxu0 0
  %439 = vmatprep.mubr.bf16.mxu0 0
  %440 = vmatmul.mubr.bf16.gmra.mrb[0].mxu0 %v21
  %v441 = vpop.f32.mrb[0].mxu0
  %v442 = vadd.f32 0.0, %v441
  %v443 = vpop.f32.mrb[0].mxu0
  %v444 = vadd.f32 0.0, %v443
  %v445 = vpop.f32.mrb[0].mxu0
  %v446 = vadd.f32 0.0, %v445
  %v447 = vpop.f32.mrb[0].mxu0
  %v448 = vadd.f32 0.0, %v447
  %449 = vmatprep.mubr.bf16.mxu0 0
  %450 = vmatmul.mubr.bf16.gmra.mrb[0].mxu0 %v22
  %v451 = vpop.f32.mrb[0].mxu0
  %v452 = vadd.f32 0.0, %v451
  %v453 = vpop.f32.mrb[0].mxu0
  %v454 = vadd.f32 0.0, %v453
  %v455 = vpop.f32.mrb[0].mxu0
  %v456 = vadd.f32 0.0, %v455
  %v457 = vpop.f32.mrb[0].mxu0
  %v458 = vadd.f32 0.0, %v457
  %459 = vdwg.mxu0
  %460 = vmatprep.subr.bf16.mxu0 %v282
  %461 = vmatpush1.bf16.msra.mxu0 %v281
  %462 = vmatprep.subr.bf16.mxu0 %v290
  %463 = vmatpush1.bf16.msra.mxu0 %v289
  %464 = vmatprep.subr.bf16.mxu0 %v298
  %465 = vmatpush1.bf16.msra.mxu0 %v297
  %466 = vmatprep.subr.bf16.mxu0 %v306
  %467 = vmatpush1.bf16.msra.mxu0 %v305
  %468 = vmatprep.subr.bf16.mxu0 %v314
  %469 = vmatpush1.bf16.msra.mxu0 %v313
  %470 = vmatprep.subr.bf16.mxu0 %v322
  %471 = vmatpush1.bf16.msra.mxu0 %v321
  %472 = vmatprep.subr.bf16.mxu0 %v330
  %473 = vmatpush1.bf16.msra.mxu0 %v329
  %474 = vmatprep.subr.bf16.mxu0 %v338
  %475 = vmatpush1.bf16.msra.mxu0 %v337
  %476 = vmatprep.subr.bf16.mxu0 0
  %477 = vmatpush1.bf16.msra.mxu0 0
  %478 = vmatprep.subr.bf16.mxu0 0
  %479 = vmatpush1.bf16.msra.mxu0 0
  %480 = vmatprep.subr.bf16.mxu0 0
  %481 = vmatpush1.bf16.msra.mxu0 0
  %482 = vmatprep.subr.bf16.mxu0 0
  %483 = vmatpush1.bf16.msra.mxu0 0
  %484 = vmatprep.subr.bf16.mxu0 0
  %485 = vmatpush1.bf16.msra.mxu0 0
  %486 = vmatprep.subr.bf16.mxu0 0
  %487 = vmatpush1.bf16.msra.mxu0 0
  %488 = vmatprep.subr.bf16.mxu0 0
  %489 = vmatpush1.bf16.msra.mxu0 0
  %490 = vmatprep.subr.bf16.mxu0 0
  %491 = vmatpush1.bf16.msra.mxu0 0
  %492 = vmatprep.mubr.bf16.mxu0 0
  %493 = vmatmul.mubr.bf16.gmra.mrb[0].mxu0 %v21
  %v494 = vpop.f32.mrb[0].mxu0
  %v495 = vadd.f32 0.0, %v494
  %v496 = vpop.f32.mrb[0].mxu0
  %v497 = vadd.f32 0.0, %v496
  %v498 = vpop.f32.mrb[0].mxu0
  %v499 = vadd.f32 0.0, %v498
  %v500 = vpop.f32.mrb[0].mxu0
  %v501 = vadd.f32 0.0, %v500
  %502 = vmatprep.mubr.bf16.mxu0 0
  %503 = vmatmul.mubr.bf16.gmra.mrb[0].mxu0 %v22
  %v504 = vpop.f32.mrb[0].mxu0
  %v505 = vadd.f32 0.0, %v504
  %v506 = vpop.f32.mrb[0].mxu0
  %v507 = vadd.f32 0.0, %v506
  %v508 = vpop.f32.mrb[0].mxu0
  %v509 = vadd.f32 0.0, %v508
  %v510 = vpop.f32.mrb[0].mxu0
  %v511 = vadd.f32 0.0, %v510
  %512 = vdwg.mxu0
  %513 = vmatprep.subr.bf16.mxu0 %v284
  %514 = vmatpush1.bf16.msra.mxu0 %v283
  %515 = vmatprep.subr.bf16.mxu0 %v292
  %516 = vmatpush1.bf16.msra.mxu0 %v291
  %517 = vmatprep.subr.bf16.mxu0 %v300
  %518 = vmatpush1.bf16.msra.mxu0 %v299
  %519 = vmatprep.subr.bf16.mxu0 %v308
  %520 = vmatpush1.bf16.msra.mxu0 %v307
  %521 = vmatprep.subr.bf16.mxu0 %v316
  %522 = vmatpush1.bf16.msra.mxu0 %v315
  %523 = vmatprep.subr.bf16.mxu0 %v324
  %524 = vmatpush1.bf16.msra.mxu0 %v323
  %525 = vmatprep.subr.bf16.mxu0 %v332
  %526 = vmatpush1.bf16.msra.mxu0 %v331
  %527 = vmatprep.subr.bf16.mxu0 %v340
  %528 = vmatpush1.bf16.msra.mxu0 %v339
  %529 = vmatprep.subr.bf16.mxu0 0
  %530 = vmatpush1.bf16.msra.mxu0 0
  %531 = vmatprep.subr.bf16.mxu0 0
  %532 = vmatpush1.bf16.msra.mxu0 0
  %533 = vmatprep.subr.bf16.mxu0 0
  %534 = vmatpush1.bf16.msra.mxu0 0
  %535 = vmatprep.subr.bf16.mxu0 0
  %536 = vmatpush1.bf16.msra.mxu0 0
  %537 = vmatprep.subr.bf16.mxu0 0
  %538 = vmatpush1.bf16.msra.mxu0 0
  %539 = vmatprep.subr.bf16.mxu0 0
  %540 = vmatpush1.bf16.msra.mxu0 0
  %541 = vmatprep.subr.bf16.mxu0 0
  %542 = vmatpush1.bf16.msra.mxu0 0
  %543 = vmatprep.subr.bf16.mxu0 0
  %544 = vmatpush1.bf16.msra.mxu0 0
  %545 = vmatprep.mubr.bf16.mxu0 0
  %546 = vmatmul.mubr.bf16.gmra.mrb[0].mxu0 %v21
  %v547 = vpop.f32.mrb[0].mxu0
  %v548 = vadd.f32 0.0, %v547
  %v549 = vpop.f32.mrb[0].mxu0
  %v550 = vadd.f32 0.0, %v549
  %v551 = vpop.f32.mrb[0].mxu0
  %v552 = vadd.f32 0.0, %v551
  %v553 = vpop.f32.mrb[0].mxu0
  %v554 = vadd.f32 0.0, %v553
  %555 = vmatprep.mubr.bf16.mxu0 0
  %556 = vmatmul.mubr.bf16.gmra.mrb[0].mxu0 %v22
  %v557 = vpop.f32.mrb[0].mxu0
  %v558 = vadd.f32 0.0, %v557
  %v559 = vpop.f32.mrb[0].mxu0
  %v560 = vadd.f32 0.0, %v559
  %v561 = vpop.f32.mrb[0].mxu0
  %v562 = vadd.f32 0.0, %v561
  %v563 = vpop.f32.mrb[0].mxu0
  %v564 = vadd.f32 0.0, %v563
  %565 = vdwg.mxu0
  %566 = vmatprep.subr.bf16.mxu0 %v286
  %567 = vmatpush1.bf16.msra.mxu0 %v285
  %568 = vmatprep.subr.bf16.mxu0 %v294
  %569 = vmatpush1.bf16.msra.mxu0 %v293
  %570 = vmatprep.subr.bf16.mxu0 %v302
  %571 = vmatpush1.bf16.msra.mxu0 %v301
  %572 = vmatprep.subr.bf16.mxu0 %v310
  %573 = vmatpush1.bf16.msra.mxu0 %v309
  %574 = vmatprep.subr.bf16.mxu0 %v318
  %575 = vmatpush1.bf16.msra.mxu0 %v317
  %576 = vmatprep.subr.bf16.mxu0 %v326
  %577 = vmatpush1.bf16.msra.mxu0 %v325
  %578 = vmatprep.subr.bf16.mxu0 %v334
  %579 = vmatpush1.bf16.msra.mxu0 %v333
  %580 = vmatprep.subr.bf16.mxu0 %v342
  %581 = vmatpush1.bf16.msra.mxu0 %v341
  %582 = vmatprep.subr.bf16.mxu0 0
  %583 = vmatpush1.bf16.msra.mxu0 0
  %584 = vmatprep.subr.bf16.mxu0 0
  %585 = vmatpush1.bf16.msra.mxu0 0
  %586 = vmatprep.subr.bf16.mxu0 0
  %587 = vmatpush1.bf16.msra.mxu0 0
  %588 = vmatprep.subr.bf16.mxu0 0
  %589 = vmatpush1.bf16.msra.mxu0 0
  %590 = vmatprep.subr.bf16.mxu0 0
  %591 = vmatpush1.bf16.msra.mxu0 0
  %592 = vmatprep.subr.bf16.mxu0 0
  %593 = vmatpush1.bf16.msra.mxu0 0
  %594 = vmatprep.subr.bf16.mxu0 0
  %595 = vmatpush1.bf16.msra.mxu0 0
  %596 = vmatprep.subr.bf16.mxu0 0
  %597 = vmatpush1.bf16.msra.mxu0 0
  %598 = vmatprep.mubr.bf16.mxu0 0
  %599 = vmatmul.mubr.bf16.gmra.mrb[0].mxu0 %v21
  %v600 = vpop.f32.mrb[0].mxu0
  %v601 = vadd.f32 0.0, %v600
  %v602 = vpop.f32.mrb[0].mxu0
  %v603 = vadd.f32 0.0, %v602
  %v604 = vpop.f32.mrb[0].mxu0
  %v605 = vadd.f32 0.0, %v604
  %v606 = vpop.f32.mrb[0].mxu0
  %v607 = vadd.f32 0.0, %v606
  %608 = vmatprep.mubr.bf16.mxu0 0
  %609 = vmatmul.mubr.bf16.gmra.mrb[0].mxu0 %v22
  %v610 = vpop.f32.mrb[0].mxu0
  %v611 = vadd.f32 0.0, %v610
  %v612 = vpop.f32.mrb[0].mxu0
  %v613 = vadd.f32 0.0, %v612
  %v614 = vpop.f32.mrb[0].mxu0
  %v615 = vadd.f32 0.0, %v614
  %v616 = vpop.f32.mrb[0].mxu0
  %v617 = vadd.f32 0.0, %v616
  %618 = vdwg.mxu0
  %v619 = vpack.c.bf16 %v446, %v442
  %v620 = vpack.c.bf16 %v448, %v444
  %v621 = vpack.c.bf16 %v499, %v495
  %v622 = vpack.c.bf16 %v501, %v497
  %v623 = vpack.c.bf16 %v552, %v548
  %v624 = vpack.c.bf16 %v554, %v550
  %v625 = vpack.c.bf16 %v605, %v601
  %v626 = vpack.c.bf16 %v607, %v603
  %v627 = vpack.c.bf16 %v456, %v452
  %v628 = vpack.c.bf16 %v458, %v454
  %v629 = vpack.c.bf16 %v509, %v505
  %v630 = vpack.c.bf16 %v511, %v507
  %v631 = vpack.c.bf16 %v562, %v558
  %v632 = vpack.c.bf16 %v564, %v560
  %v633 = vpack.c.bf16 %v615, %v611
  %v634 = vpack.c.bf16 %v617, %v613
  %636 = vrot.lane.b32.xlu0 %v622, 96
  %v637 = vpop.permute.xlu0 %636
  %vm638 = vcmask 261120
  %v640 = vsel %vm638, %v637, 0
  %v643 = vsel %vm638, %v622, 0
  %645 = vmatprep.subr.bf16.mxu0 0
  %646 = vmatpush1.bf16.xpose.msra.mxu0 %v643
  %647 = vmatprep.subr.bf16.mxu0 0
  %648 = vmatpush1.bf16.xpose.msra.mxu0 0
  %649 = vmatprep.subr.bf16.mxu0 0
  %650 = vmatpush1.bf16.xpose.msra.mxu0 0
  %651 = vmatprep.subr.bf16.mxu0 0
  %652 = vmatpush1.bf16.xpose.msra.mxu0 0
  %653 = vmatprep.subr.bf16.mxu0 0
  %654 = vmatpush1.bf16.xpose.msra.mxu0 0
  %655 = vmatprep.subr.bf16.mxu0 0
  %656 = vmatpush1.bf16.xpose.msra.mxu0 0
  %657 = vmatprep.subr.bf16.mxu0 0
  %658 = vmatpush1.bf16.xpose.msra.mxu0 0
  %659 = vmatprep.subr.bf16.mxu0 0
  %660 = vmatpush1.bf16.xpose.msra.mxu0 0
  %661 = vmatprep.subr.bf16.mxu0 0
  %662 = vmatpush1.bf16.xpose.msra.mxu0 0
  %663 = vmatprep.subr.bf16.mxu0 0
  %664 = vmatpush1.bf16.xpose.msra.mxu0 0
  %665 = vmatprep.subr.bf16.mxu0 0
  %666 = vmatpush1.bf16.xpose.msra.mxu0 0
  %667 = vmatprep.subr.bf16.mxu0 0
  %668 = vmatpush1.bf16.xpose.msra.mxu0 0
  %669 = vmatprep.subr.bf16.mxu0 0
  %670 = vmatpush1.bf16.xpose.msra.mxu0 0
  %671 = vmatprep.subr.bf16.mxu0 0
  %672 = vmatpush1.bf16.xpose.msra.mxu0 0
  %673 = vmatprep.subr.bf16.mxu0 0
  %674 = vmatpush1.bf16.xpose.msra.mxu0 0
  %675 = vmatprep.subr.bf16.mxu0 0
  %676 = vmatpush1.bf16.xpose.msra.mxu0 0
  %677 = vmatprep.mubr.bf16.mxu0 0
  %678 = vmatmul.mubr.bf16.gmra.mrb[0].mxu0 %v640
  %v679 = vpop.f32.mrb[0].mxu0
  %v680 = vadd.f32 0.0, %v679
  %v681 = vpop.f32.mrb[0].mxu0
  %v682 = vpop.f32.mrb[0].mxu0
  %v683 = vadd.f32 0.0, %v682
  %v684 = vpop.f32.mrb[0].mxu0
  %685 = vdwg.mxu0
  %687 = vrot.lane.b32.xlu0 %v630, 96
  %v688 = vpop.permute.xlu0 %687
  %v690 = vsel %vm638, %v688, 0
  %v693 = vsel %vm638, %v630, 0
  %695 = vmatprep.subr.bf16.mxu0 0
  %696 = vmatpush1.bf16.xpose.msra.mxu0 %v693
  %697 = vmatprep.subr.bf16.mxu0 0
  %698 = vmatpush1.bf16.xpose.msra.mxu0 0
  %699 = vmatprep.subr.bf16.mxu0 0
  %700 = vmatpush1.bf16.xpose.msra.mxu0 0
  %701 = vmatprep.subr.bf16.mxu0 0
  %702 = vmatpush1.bf16.xpose.msra.mxu0 0
  %703 = vmatprep.subr.bf16.mxu0 0
  %704 = vmatpush1.bf16.xpose.msra.mxu0 0
  %705 = vmatprep.subr.bf16.mxu0 0
  %706 = vmatpush1.bf16.xpose.msra.mxu0 0
  %707 = vmatprep.subr.bf16.mxu0 0
  %708 = vmatpush1.bf16.xpose.msra.mxu0 0
  %709 = vmatprep.subr.bf16.mxu0 0
  %710 = vmatpush1.bf16.xpose.msra.mxu0 0
  %711 = vmatprep.subr.bf16.mxu0 0
  %712 = vmatpush1.bf16.xpose.msra.mxu0 0
  %713 = vmatprep.subr.bf16.mxu0 0
  %714 = vmatpush1.bf16.xpose.msra.mxu0 0
  %715 = vmatprep.subr.bf16.mxu0 0
  %716 = vmatpush1.bf16.xpose.msra.mxu0 0
  %717 = vmatprep.subr.bf16.mxu0 0
  %718 = vmatpush1.bf16.xpose.msra.mxu0 0
  %719 = vmatprep.subr.bf16.mxu0 0
  %720 = vmatpush1.bf16.xpose.msra.mxu0 0
  %721 = vmatprep.subr.bf16.mxu0 0
  %722 = vmatpush1.bf16.xpose.msra.mxu0 0
  %723 = vmatprep.subr.bf16.mxu0 0
  %724 = vmatpush1.bf16.xpose.msra.mxu0 0
  %725 = vmatprep.subr.bf16.mxu0 0
  %726 = vmatpush1.bf16.xpose.msra.mxu0 0
  %727 = vmatprep.mubr.bf16.mxu0 0
  %728 = vmatmul.mubr.bf16.gmra.mrb[0].mxu0 %v690
  %v729 = vpop.f32.mrb[0].mxu0
  %v730 = vadd.f32 0.0, %v729
  %v731 = vpop.f32.mrb[0].mxu0
  %v732 = vpop.f32.mrb[0].mxu0
  %v733 = vadd.f32 0.0, %v732
  %v734 = vpop.f32.mrb[0].mxu0
  %735 = vdwg.mxu0
  %vm736 = vcmask 130048
  %v737 = vsel %vm736, %v680, -inf
  %738 = vmax.xlane.f32.xlu0 %v737
  %v739 = vpop.xlane.xlu0 %738
  %v740 = vsel %vm736, %v683, -inf
  %741 = vmax.xlane.f32.xlu0 %v740
  %v742 = vpop.xlane.xlu0 %741
  %v743 = vsel %vm736, %v730, -inf
  %744 = vmax.xlane.f32.xlu0 %v743
  %v745 = vpop.xlane.xlu0 %744
  %v746 = vsel %vm736, %v733, -inf
  %747 = vmax.xlane.f32.xlu0 %v746
  %v748 = vpop.xlane.xlu0 %747
  %v749 = vsub.f32 %v680, %v739
  %v750 = vsub.f32 %v683, %v742
  %v751 = vsub.f32 %v730, %v745
  %v752 = vsub.f32 %v733, %v748
  %v753 = vmul.f32 %v749, 1.442695
  %v754 = vpow.pop %v753
  %v755 = vmul.f32 %v750, 1.442695
  %v756 = vpow.pop %v755
  %v757 = vmul.f32 %v751, 1.442695
  %v758 = vpow.pop %v757
  %v759 = vmul.f32 %v752, 1.442695
  %v760 = vpow.pop %v759
  %v761 = vsel %vm736, %v754, 0.0
  %762 = vadd.xlane.f32.xlu0 %v761
  %v763 = vpop.xlane.xlu0 %762
  %v764 = vsel %vm736, %v756, 0.0
  %765 = vadd.xlane.f32.xlu0 %v764
  %v766 = vpop.xlane.xlu0 %765
  %v767 = vsel %vm736, %v758, 0.0
  %768 = vadd.xlane.f32.xlu0 %v767
  %v769 = vpop.xlane.xlu0 %768
  %v770 = vsel %vm736, %v760, 0.0
  %771 = vadd.xlane.f32.xlu0 %v770
  %v772 = vpop.xlane.xlu0 %771
  %v773 = vrcp.pop %v763
  %v774 = vrcp.pop %v766
  %v775 = vrcp.pop %v769
  %v776 = vrcp.pop %v772
  %v777 = vmul.f32 %v754, %v773
  %v778 = vmul.f32 %v756, %v774
  %v779 = vmul.f32 %v758, %v775
  %v780 = vmul.f32 %v760, %v776
  %781 = vrot.lane.b32.xlu0 %v622, 32
  %v782 = vpop.permute.xlu0 %781
  %783 = vrot.lane.b32.xlu0 %v622, 64
  %v784 = vpop.permute.xlu0 %783
  %v786 = vsel %vm638, %v782, 0
  %v789 = vsel %vm638, %v784, 0
  %791 = vmatprep.subr.bf16.mxu0 0
  %792 = vmatpush1.bf16.xpose.msra.mxu0 %v789
  %793 = vmatprep.subr.bf16.mxu0 0
  %794 = vmatpush1.bf16.xpose.msra.mxu0 0
  %795 = vmatprep.subr.bf16.mxu0 0
  %796 = vmatpush1.bf16.xpose.msra.mxu0 0
  %797 = vmatprep.subr.bf16.mxu0 0
  %798 = vmatpush1.bf16.xpose.msra.mxu0 0
  %799 = vmatprep.subr.bf16.mxu0 0
  %800 = vmatpush1.bf16.xpose.msra.mxu0 0
  %801 = vmatprep.subr.bf16.mxu0 0
  %802 = vmatpush1.bf16.xpose.msra.mxu0 0
  %803 = vmatprep.subr.bf16.mxu0 0
  %804 = vmatpush1.bf16.xpose.msra.mxu0 0
  %805 = vmatprep.subr.bf16.mxu0 0
  %806 = vmatpush1.bf16.xpose.msra.mxu0 0
  %807 = vmatprep.subr.bf16.mxu0 0
  %808 = vmatpush1.bf16.xpose.msra.mxu0 0
  %809 = vmatprep.subr.bf16.mxu0 0
  %810 = vmatpush1.bf16.xpose.msra.mxu0 0
  %811 = vmatprep.subr.bf16.mxu0 0
  %812 = vmatpush1.bf16.xpose.msra.mxu0 0
  %813 = vmatprep.subr.bf16.mxu0 0
  %814 = vmatpush1.bf16.xpose.msra.mxu0 0
  %815 = vmatprep.subr.bf16.mxu0 0
  %816 = vmatpush1.bf16.xpose.msra.mxu0 0
  %817 = vmatprep.subr.bf16.mxu0 0
  %818 = vmatpush1.bf16.xpose.msra.mxu0 0
  %819 = vmatprep.subr.bf16.mxu0 0
  %820 = vmatpush1.bf16.xpose.msra.mxu0 0
  %821 = vmatprep.subr.bf16.mxu0 0
  %822 = vmatpush1.bf16.xpose.msra.mxu0 0
  %823 = vmatprep.mubr.bf16.mxu0 0
  %824 = vmatmul.mubr.bf16.gmra.mrb[0].mxu0 %v786
  %v825 = vpop.f32.mrb[0].mxu0
  %v826 = vadd.f32 0.0, %v825
  %v827 = vpop.f32.mrb[0].mxu0
  %v828 = vpop.f32.mrb[0].mxu0
  %v829 = vadd.f32 0.0, %v828
  %v830 = vpop.f32.mrb[0].mxu0
  %831 = vdwg.mxu0
  %832 = vrot.lane.b32.xlu0 %v630, 32
  %v833 = vpop.permute.xlu0 %832
  %834 = vrot.lane.b32.xlu0 %v630, 64
  %v835 = vpop.permute.xlu0 %834
  %v837 = vsel %vm638, %v833, 0
  %v840 = vsel %vm638, %v835, 0
  %842 = vmatprep.subr.bf16.mxu0 0
  %843 = vmatpush1.bf16.xpose.msra.mxu0 %v840
  %844 = vmatprep.subr.bf16.mxu0 0
  %845 = vmatpush1.bf16.xpose.msra.mxu0 0
  %846 = vmatprep.subr.bf16.mxu0 0
  %847 = vmatpush1.bf16.xpose.msra.mxu0 0
  %848 = vmatprep.subr.bf16.mxu0 0
  %849 = vmatpush1.bf16.xpose.msra.mxu0 0
  %850 = vmatprep.subr.bf16.mxu0 0
  %851 = vmatpush1.bf16.xpose.msra.mxu0 0
  %852 = vmatprep.subr.bf16.mxu0 0
  %853 = vmatpush1.bf16.xpose.msra.mxu0 0
  %854 = vmatprep.subr.bf16.mxu0 0
  %855 = vmatpush1.bf16.xpose.msra.mxu0 0
  %856 = vmatprep.subr.bf16.mxu0 0
  %857 = vmatpush1.bf16.xpose.msra.mxu0 0
  %858 = vmatprep.subr.bf16.mxu0 0
  %859 = vmatpush1.bf16.xpose.msra.mxu0 0
  %860 = vmatprep.subr.bf16.mxu0 0
  %861 = vmatpush1.bf16.xpose.msra.mxu0 0
  %862 = vmatprep.subr.bf16.mxu0 0
  %863 = vmatpush1.bf16.xpose.msra.mxu0 0
  %864 = vmatprep.subr.bf16.mxu0 0
  %865 = vmatpush1.bf16.xpose.msra.mxu0 0
  %866 = vmatprep.subr.bf16.mxu0 0
  %867 = vmatpush1.bf16.xpose.msra.mxu0 0
  %868 = vmatprep.subr.bf16.mxu0 0
  %869 = vmatpush1.bf16.xpose.msra.mxu0 0
  %870 = vmatprep.subr.bf16.mxu0 0
  %871 = vmatpush1.bf16.xpose.msra.mxu0 0
  %872 = vmatprep.subr.bf16.mxu0 0
  %873 = vmatpush1.bf16.xpose.msra.mxu0 0
  %874 = vmatprep.mubr.bf16.mxu0 0
  %875 = vmatmul.mubr.bf16.gmra.mrb[0].mxu0 %v837
  %v876 = vpop.f32.mrb[0].mxu0
  %v877 = vadd.f32 0.0, %v876
  %v878 = vpop.f32.mrb[0].mxu0
  %v879 = vpop.f32.mrb[0].mxu0
  %v880 = vadd.f32 0.0, %v879
  %v881 = vpop.f32.mrb[0].mxu0
  %882 = vdwg.mxu0
  %v883 = vsel %vm736, %v826, -inf
  %884 = vmax.xlane.f32.xlu0 %v883
  %v885 = vpop.xlane.xlu0 %884
  %v886 = vsel %vm736, %v829, -inf
  %887 = vmax.xlane.f32.xlu0 %v886
  %v888 = vpop.xlane.xlu0 %887
  %v889 = vsel %vm736, %v877, -inf
  %890 = vmax.xlane.f32.xlu0 %v889
  %v891 = vpop.xlane.xlu0 %890
  %v892 = vsel %vm736, %v880, -inf
  %893 = vmax.xlane.f32.xlu0 %v892
  %v894 = vpop.xlane.xlu0 %893
  %v895 = vsub.f32 %v826, %v885
  %v896 = vsub.f32 %v829, %v888
  %v897 = vsub.f32 %v877, %v891
  %v898 = vsub.f32 %v880, %v894
  %v899 = vmul.f32 %v895, 1.442695
  %v900 = vpow.pop %v899
  %v901 = vmul.f32 %v896, 1.442695
  %v902 = vpow.pop %v901
  %v903 = vmul.f32 %v897, 1.442695
  %v904 = vpow.pop %v903
  %v905 = vmul.f32 %v898, 1.442695
  %v906 = vpow.pop %v905
  %v907 = vsel %vm736, %v900, 0.0
  %908 = vadd.xlane.f32.xlu0 %v907
  %v909 = vpop.xlane.xlu0 %908
  %v910 = vsel %vm736, %v902, 0.0
  %911 = vadd.xlane.f32.xlu0 %v910
  %v912 = vpop.xlane.xlu0 %911
  %v913 = vsel %vm736, %v904, 0.0
  %914 = vadd.xlane.f32.xlu0 %v913
  %v915 = vpop.xlane.xlu0 %914
  %v916 = vsel %vm736, %v906, 0.0
  %917 = vadd.xlane.f32.xlu0 %v916
  %v918 = vpop.xlane.xlu0 %917
  %v919 = vrcp.pop %v909
  %v920 = vrcp.pop %v912
  %v921 = vrcp.pop %v915
  %v922 = vrcp.pop %v918
  %v923 = vmul.f32 %v900, %v919
  %v924 = vmul.f32 %v902, %v920
  %v925 = vmul.f32 %v904, %v921
  %v926 = vmul.f32 %v906, %v922
  %v927 = vadd.f32 %v777, %v923
  %v928 = vadd.f32 %v778, %v924
  %v929 = vadd.f32 %v779, %v925
  %v930 = vadd.f32 %v780, %v926
  %932 = vrot.lane.b32.xlu0 %v623, 96
  %v933 = vpop.permute.xlu0 %932
  %v935 = vsel %vm638, %v933, 0
  %v938 = vsel %vm638, %v623, 0
  %940 = vmatprep.subr.bf16.mxu0 0
  %941 = vmatpush1.bf16.xpose.msra.mxu0 %v938
  %942 = vmatprep.subr.bf16.mxu0 0
  %943 = vmatpush1.bf16.xpose.msra.mxu0 0
  %944 = vmatprep.subr.bf16.mxu0 0
  %945 = vmatpush1.bf16.xpose.msra.mxu0 0
  %946 = vmatprep.subr.bf16.mxu0 0
  %947 = vmatpush1.bf16.xpose.msra.mxu0 0
  %948 = vmatprep.subr.bf16.mxu0 0
  %949 = vmatpush1.bf16.xpose.msra.mxu0 0
  %950 = vmatprep.subr.bf16.mxu0 0
  %951 = vmatpush1.bf16.xpose.msra.mxu0 0
  %952 = vmatprep.subr.bf16.mxu0 0
  %953 = vmatpush1.bf16.xpose.msra.mxu0 0
  %954 = vmatprep.subr.bf16.mxu0 0
  %955 = vmatpush1.bf16.xpose.msra.mxu0 0
  %956 = vmatprep.subr.bf16.mxu0 0
  %957 = vmatpush1.bf16.xpose.msra.mxu0 0
  %958 = vmatprep.subr.bf16.mxu0 0
  %959 = vmatpush1.bf16.xpose.msra.mxu0 0
  %960 = vmatprep.subr.bf16.mxu0 0
  %961 = vmatpush1.bf16.xpose.msra.mxu0 0
  %962 = vmatprep.subr.bf16.mxu0 0
  %963 = vmatpush1.bf16.xpose.msra.mxu0 0
  %964 = vmatprep.subr.bf16.mxu0 0
  %965 = vmatpush1.bf16.xpose.msra.mxu0 0
  %966 = vmatprep.subr.bf16.mxu0 0
  %967 = vmatpush1.bf16.xpose.msra.mxu0 0
  %968 = vmatprep.subr.bf16.mxu0 0
  %969 = vmatpush1.bf16.xpose.msra.mxu0 0
  %970 = vmatprep.subr.bf16.mxu0 0
  %971 = vmatpush1.bf16.xpose.msra.mxu0 0
  %972 = vmatprep.mubr.bf16.mxu0 0
  %973 = vmatmul.mubr.bf16.gmra.mrb[0].mxu0 %v935
  %v974 = vpop.f32.mrb[0].mxu0
  %v975 = vadd.f32 0.0, %v974
  %v976 = vpop.f32.mrb[0].mxu0
  %v977 = vpop.f32.mrb[0].mxu0
  %v978 = vadd.f32 0.0, %v977
  %v979 = vpop.f32.mrb[0].mxu0
  %980 = vdwg.mxu0
  %982 = vrot.lane.b32.xlu0 %v631, 96
  %v983 = vpop.permute.xlu0 %982
  %v985 = vsel %vm638, %v983, 0
  %v988 = vsel %vm638, %v631, 0
  %990 = vmatprep.subr.bf16.mxu0 0
  %991 = vmatpush1.bf16.xpose.msra.mxu0 %v988
  %992 = vmatprep.subr.bf16.mxu0 0
  %993 = vmatpush1.bf16.xpose.msra.mxu0 0
  %994 = vmatprep.subr.bf16.mxu0 0
  %995 = vmatpush1.bf16.xpose.msra.mxu0 0
  %996 = vmatprep.subr.bf16.mxu0 0
  %997 = vmatpush1.bf16.xpose.msra.mxu0 0
  %998 = vmatprep.subr.bf16.mxu0 0
  %999 = vmatpush1.bf16.xpose.msra.mxu0 0
  %1000 = vmatprep.subr.bf16.mxu0 0
  %1001 = vmatpush1.bf16.xpose.msra.mxu0 0
  %1002 = vmatprep.subr.bf16.mxu0 0
  %1003 = vmatpush1.bf16.xpose.msra.mxu0 0
  %1004 = vmatprep.subr.bf16.mxu0 0
  %1005 = vmatpush1.bf16.xpose.msra.mxu0 0
  %1006 = vmatprep.subr.bf16.mxu0 0
  %1007 = vmatpush1.bf16.xpose.msra.mxu0 0
  %1008 = vmatprep.subr.bf16.mxu0 0
  %1009 = vmatpush1.bf16.xpose.msra.mxu0 0
  %1010 = vmatprep.subr.bf16.mxu0 0
  %1011 = vmatpush1.bf16.xpose.msra.mxu0 0
  %1012 = vmatprep.subr.bf16.mxu0 0
  %1013 = vmatpush1.bf16.xpose.msra.mxu0 0
  %1014 = vmatprep.subr.bf16.mxu0 0
  %1015 = vmatpush1.bf16.xpose.msra.mxu0 0
  %1016 = vmatprep.subr.bf16.mxu0 0
  %1017 = vmatpush1.bf16.xpose.msra.mxu0 0
  %1018 = vmatprep.subr.bf16.mxu0 0
  %1019 = vmatpush1.bf16.xpose.msra.mxu0 0
  %1020 = vmatprep.subr.bf16.mxu0 0
  %1021 = vmatpush1.bf16.xpose.msra.mxu0 0
  %1022 = vmatprep.mubr.bf16.mxu0 0
  %1023 = vmatmul.mubr.bf16.gmra.mrb[0].mxu0 %v985
  %v1024 = vpop.f32.mrb[0].mxu0
  %v1025 = vadd.f32 0.0, %v1024
  %v1026 = vpop.f32.mrb[0].mxu0
  %v1027 = vpop.f32.mrb[0].mxu0
  %v1028 = vadd.f32 0.0, %v1027
  %v1029 = vpop.f32.mrb[0].mxu0
  %1030 = vdwg.mxu0
  %v1031 = vsel %vm736, %v975, -inf
  %1032 = vmax.xlane.f32.xlu0 %v1031
  %v1033 = vpop.xlane.xlu0 %1032
  %v1034 = vsel %vm736, %v978, -inf
  %1035 = vmax.xlane.f32.xlu0 %v1034
  %v1036 = vpop.xlane.xlu0 %1035
  %v1037 = vsel %vm736, %v1025, -inf
  %1038 = vmax.xlane.f32.xlu0 %v1037
  %v1039 = vpop.xlane.xlu0 %1038
  %v1040 = vsel %vm736, %v1028, -inf
  %1041 = vmax.xlane.f32.xlu0 %v1040
  %v1042 = vpop.xlane.xlu0 %1041
  %v1043 = vsub.f32 %v975, %v1033
  %v1044 = vsub.f32 %v978, %v1036
  %v1045 = vsub.f32 %v1025, %v1039
  %v1046 = vsub.f32 %v1028, %v1042
  %v1047 = vmul.f32 %v1043, 1.442695
  %v1048 = vpow.pop %v1047
  %v1049 = vmul.f32 %v1044, 1.442695
  %v1050 = vpow.pop %v1049
  %v1051 = vmul.f32 %v1045, 1.442695
  %v1052 = vpow.pop %v1051
  %v1053 = vmul.f32 %v1046, 1.442695
  %v1054 = vpow.pop %v1053
  %v1055 = vsel %vm736, %v1048, 0.0
  %1056 = vadd.xlane.f32.xlu0 %v1055
  %v1057 = vpop.xlane.xlu0 %1056
  %v1058 = vsel %vm736, %v1050, 0.0
  %1059 = vadd.xlane.f32.xlu0 %v1058
  %v1060 = vpop.xlane.xlu0 %1059
  %v1061 = vsel %vm736, %v1052, 0.0
  %1062 = vadd.xlane.f32.xlu0 %v1061
  %v1063 = vpop.xlane.xlu0 %1062
  %v1064 = vsel %vm736, %v1054, 0.0
  %1065 = vadd.xlane.f32.xlu0 %v1064
  %v1066 = vpop.xlane.xlu0 %1065
  %v1067 = vrcp.pop %v1057
  %v1068 = vrcp.pop %v1060
  %v1069 = vrcp.pop %v1063
  %v1070 = vrcp.pop %v1066
  %v1071 = vmul.f32 %v1048, %v1067
  %v1072 = vmul.f32 %v1050, %v1068
  %v1073 = vmul.f32 %v1052, %v1069
  %v1074 = vmul.f32 %v1054, %v1070
  %v1075 = vadd.f32 %v927, %v1071
  %v1076 = vadd.f32 %v928, %v1072
  %v1077 = vadd.f32 %v929, %v1073
  %v1078 = vadd.f32 %v930, %v1074
  %v1079 = vld [vmem:[%s1] sm:$0xff]
  %v1080 = vld [vmem:[%s1 + $0x8] sm:$0xff]
  %v1081 = vadd.f32 %v1075, %v1079
  %v1082 = vadd.f32 %v1076, %v1080
  %v1083 = vadd.f32 %v1077, %v1079
  %v1084 = vadd.f32 %v1078, %v1080
  %1085 = vrot.lane.b32.xlu0 %v623, 32
  %v1086 = vpop.permute.xlu0 %1085
  %1087 = vrot.lane.b32.xlu0 %v623, 64
  %v1088 = vpop.permute.xlu0 %1087
  %v1090 = vsel %vm638, %v1086, 0
  %v1093 = vsel %vm638, %v1088, 0
  %1095 = vmatprep.subr.bf16.mxu0 0
  %1096 = vmatpush1.bf16.xpose.msra.mxu0 %v1093
  %1097 = vmatprep.subr.bf16.mxu0 0
  %1098 = vmatpush1.bf16.xpose.msra.mxu0 0
  %1099 = vmatprep.subr.bf16.mxu0 0
  %1100 = vmatpush1.bf16.xpose.msra.mxu0 0
  %1101 = vmatprep.subr.bf16.mxu0 0
  %1102 = vmatpush1.bf16.xpose.msra.mxu0 0
  %1103 = vmatprep.subr.bf16.mxu0 0
  %1104 = vmatpush1.bf16.xpose.msra.mxu0 0
  %1105 = vmatprep.subr.bf16.mxu0 0
  %1106 = vmatpush1.bf16.xpose.msra.mxu0 0
  %1107 = vmatprep.subr.bf16.mxu0 0
  %1108 = vmatpush1.bf16.xpose.msra.mxu0 0
  %1109 = vmatprep.subr.bf16.mxu0 0
  %1110 = vmatpush1.bf16.xpose.msra.mxu0 0
  %1111 = vmatprep.subr.bf16.mxu0 0
  %1112 = vmatpush1.bf16.xpose.msra.mxu0 0
  %1113 = vmatprep.subr.bf16.mxu0 0
  %1114 = vmatpush1.bf16.xpose.msra.mxu0 0
  %1115 = vmatprep.subr.bf16.mxu0 0
  %1116 = vmatpush1.bf16.xpose.msra.mxu0 0
  %1117 = vmatprep.subr.bf16.mxu0 0
  %1118 = vmatpush1.bf16.xpose.msra.mxu0 0
  %1119 = vmatprep.subr.bf16.mxu0 0
  %1120 = vmatpush1.bf16.xpose.msra.mxu0 0
  %1121 = vmatprep.subr.bf16.mxu0 0
  %1122 = vmatpush1.bf16.xpose.msra.mxu0 0
  %1123 = vmatprep.subr.bf16.mxu0 0
  %1124 = vmatpush1.bf16.xpose.msra.mxu0 0
  %1125 = vmatprep.subr.bf16.mxu0 0
  %1126 = vmatpush1.bf16.xpose.msra.mxu0 0
  %1127 = vmatprep.mubr.bf16.mxu0 0
  %1128 = vmatmul.mubr.bf16.gmra.mrb[0].mxu0 %v1090
  %v1129 = vpop.f32.mrb[0].mxu0
  %v1130 = vadd.f32 0.0, %v1129
  %v1131 = vpop.f32.mrb[0].mxu0
  %v1132 = vpop.f32.mrb[0].mxu0
  %v1133 = vadd.f32 0.0, %v1132
  %v1134 = vpop.f32.mrb[0].mxu0
  %1135 = vdwg.mxu0
  %1136 = vrot.lane.b32.xlu0 %v631, 32
  %v1137 = vpop.permute.xlu0 %1136
  %1138 = vrot.lane.b32.xlu0 %v631, 64
  %v1139 = vpop.permute.xlu0 %1138
  %v1141 = vsel %vm638, %v1137, 0
  %v1144 = vsel %vm638, %v1139, 0
  %1146 = vmatprep.subr.bf16.mxu0 0
  %1147 = vmatpush1.bf16.xpose.msra.mxu0 %v1144
  %1148 = vmatprep.subr.bf16.mxu0 0
  %1149 = vmatpush1.bf16.xpose.msra.mxu0 0
  %1150 = vmatprep.subr.bf16.mxu0 0
  %1151 = vmatpush1.bf16.xpose.msra.mxu0 0
  %1152 = vmatprep.subr.bf16.mxu0 0
  %1153 = vmatpush1.bf16.xpose.msra.mxu0 0
  %1154 = vmatprep.subr.bf16.mxu0 0
  %1155 = vmatpush1.bf16.xpose.msra.mxu0 0
  %1156 = vmatprep.subr.bf16.mxu0 0
  %1157 = vmatpush1.bf16.xpose.msra.mxu0 0
  %1158 = vmatprep.subr.bf16.mxu0 0
  %1159 = vmatpush1.bf16.xpose.msra.mxu0 0
  %1160 = vmatprep.subr.bf16.mxu0 0
  %1161 = vmatpush1.bf16.xpose.msra.mxu0 0
  %1162 = vmatprep.subr.bf16.mxu0 0
  %1163 = vmatpush1.bf16.xpose.msra.mxu0 0
  %1164 = vmatprep.subr.bf16.mxu0 0
  %1165 = vmatpush1.bf16.xpose.msra.mxu0 0
  %1166 = vmatprep.subr.bf16.mxu0 0
  %1167 = vmatpush1.bf16.xpose.msra.mxu0 0
  %1168 = vmatprep.subr.bf16.mxu0 0
  %1169 = vmatpush1.bf16.xpose.msra.mxu0 0
  %1170 = vmatprep.subr.bf16.mxu0 0
  %1171 = vmatpush1.bf16.xpose.msra.mxu0 0
  %1172 = vmatprep.subr.bf16.mxu0 0
  %1173 = vmatpush1.bf16.xpose.msra.mxu0 0
  %1174 = vmatprep.subr.bf16.mxu0 0
  %1175 = vmatpush1.bf16.xpose.msra.mxu0 0
  %1176 = vmatprep.subr.bf16.mxu0 0
  %1177 = vmatpush1.bf16.xpose.msra.mxu0 0
  %1178 = vmatprep.mubr.bf16.mxu0 0
  %1179 = vmatmul.mubr.bf16.gmra.mrb[0].mxu0 %v1141
  %v1180 = vpop.f32.mrb[0].mxu0
  %v1181 = vadd.f32 0.0, %v1180
  %v1182 = vpop.f32.mrb[0].mxu0
  %v1183 = vpop.f32.mrb[0].mxu0
  %v1184 = vadd.f32 0.0, %v1183
  %v1185 = vpop.f32.mrb[0].mxu0
  %1186 = vdwg.mxu0
  %v1187 = vsel %vm736, %v1130, -inf
  %1188 = vmax.xlane.f32.xlu0 %v1187
  %v1189 = vpop.xlane.xlu0 %1188
  %v1190 = vsel %vm736, %v1133, -inf
  %1191 = vmax.xlane.f32.xlu0 %v1190
  %v1192 = vpop.xlane.xlu0 %1191
  %v1193 = vsel %vm736, %v1181, -inf
  %1194 = vmax.xlane.f32.xlu0 %v1193
  %v1195 = vpop.xlane.xlu0 %1194
  %v1196 = vsel %vm736, %v1184, -inf
  %1197 = vmax.xlane.f32.xlu0 %v1196
  %v1198 = vpop.xlane.xlu0 %1197
  %v1199 = vsub.f32 %v1130, %v1189
  %v1200 = vsub.f32 %v1133, %v1192
  %v1201 = vsub.f32 %v1181, %v1195
  %v1202 = vsub.f32 %v1184, %v1198
  %v1203 = vmul.f32 %v1199, 1.442695
  %v1204 = vpow.pop %v1203
  %v1205 = vmul.f32 %v1200, 1.442695
  %v1206 = vpow.pop %v1205
  %v1207 = vmul.f32 %v1201, 1.442695
  %v1208 = vpow.pop %v1207
  %v1209 = vmul.f32 %v1202, 1.442695
  %v1210 = vpow.pop %v1209
  %v1211 = vsel %vm736, %v1204, 0.0
  %1212 = vadd.xlane.f32.xlu0 %v1211
  %v1213 = vpop.xlane.xlu0 %1212
  %v1214 = vsel %vm736, %v1206, 0.0
  %1215 = vadd.xlane.f32.xlu0 %v1214
  %v1216 = vpop.xlane.xlu0 %1215
  %v1217 = vsel %vm736, %v1208, 0.0
  %1218 = vadd.xlane.f32.xlu0 %v1217
  %v1219 = vpop.xlane.xlu0 %1218
  %v1220 = vsel %vm736, %v1210, 0.0
  %1221 = vadd.xlane.f32.xlu0 %v1220
  %v1222 = vpop.xlane.xlu0 %1221
  %v1223 = vrcp.pop %v1213
  %v1224 = vrcp.pop %v1216
  %v1225 = vrcp.pop %v1219
  %v1226 = vrcp.pop %v1222
  %v1227 = vmul.f32 %v1204, %v1223
  %v1228 = vmul.f32 %v1206, %v1224
  %v1229 = vmul.f32 %v1208, %v1225
  %v1230 = vmul.f32 %v1210, %v1226
  %1232 = vrot.lane.b32.xlu0 %v624, 96
  %v1233 = vpop.permute.xlu0 %1232
  %v1235 = vsel %vm638, %v1233, 0
  %v1238 = vsel %vm638, %v624, 0
  %1240 = vmatprep.subr.bf16.mxu0 0
  %1241 = vmatpush1.bf16.xpose.msra.mxu0 %v1238
  %1242 = vmatprep.subr.bf16.mxu0 0
  %1243 = vmatpush1.bf16.xpose.msra.mxu0 0
  %1244 = vmatprep.subr.bf16.mxu0 0
  %1245 = vmatpush1.bf16.xpose.msra.mxu0 0
  %1246 = vmatprep.subr.bf16.mxu0 0
  %1247 = vmatpush1.bf16.xpose.msra.mxu0 0
  %1248 = vmatprep.subr.bf16.mxu0 0
  %1249 = vmatpush1.bf16.xpose.msra.mxu0 0
  %1250 = vmatprep.subr.bf16.mxu0 0
  %1251 = vmatpush1.bf16.xpose.msra.mxu0 0
  %1252 = vmatprep.subr.bf16.mxu0 0
  %1253 = vmatpush1.bf16.xpose.msra.mxu0 0
  %1254 = vmatprep.subr.bf16.mxu0 0
  %1255 = vmatpush1.bf16.xpose.msra.mxu0 0
  %1256 = vmatprep.subr.bf16.mxu0 0
  %1257 = vmatpush1.bf16.xpose.msra.mxu0 0
  %1258 = vmatprep.subr.bf16.mxu0 0
  %1259 = vmatpush1.bf16.xpose.msra.mxu0 0
  %1260 = vmatprep.subr.bf16.mxu0 0
  %1261 = vmatpush1.bf16.xpose.msra.mxu0 0
  %1262 = vmatprep.subr.bf16.mxu0 0
  %1263 = vmatpush1.bf16.xpose.msra.mxu0 0
  %1264 = vmatprep.subr.bf16.mxu0 0
  %1265 = vmatpush1.bf16.xpose.msra.mxu0 0
  %1266 = vmatprep.subr.bf16.mxu0 0
  %1267 = vmatpush1.bf16.xpose.msra.mxu0 0
  %1268 = vmatprep.subr.bf16.mxu0 0
  %1269 = vmatpush1.bf16.xpose.msra.mxu0 0
  %1270 = vmatprep.subr.bf16.mxu0 0
  %1271 = vmatpush1.bf16.xpose.msra.mxu0 0
  %1272 = vmatprep.mubr.bf16.mxu0 0
  %1273 = vmatmul.mubr.bf16.gmra.mrb[0].mxu0 %v1235
  %v1274 = vpop.f32.mrb[0].mxu0
  %v1275 = vadd.f32 0.0, %v1274
  %v1276 = vpop.f32.mrb[0].mxu0
  %v1277 = vpop.f32.mrb[0].mxu0
  %v1278 = vadd.f32 0.0, %v1277
  %v1279 = vpop.f32.mrb[0].mxu0
  %1280 = vdwg.mxu0
  %1282 = vrot.lane.b32.xlu0 %v632, 96
  %v1283 = vpop.permute.xlu0 %1282
  %v1285 = vsel %vm638, %v1283, 0
  %v1288 = vsel %vm638, %v632, 0
  %1290 = vmatprep.subr.bf16.mxu0 0
  %1291 = vmatpush1.bf16.xpose.msra.mxu0 %v1288
  %1292 = vmatprep.subr.bf16.mxu0 0
  %1293 = vmatpush1.bf16.xpose.msra.mxu0 0
  %1294 = vmatprep.subr.bf16.mxu0 0
  %1295 = vmatpush1.bf16.xpose.msra.mxu0 0
  %1296 = vmatprep.subr.bf16.mxu0 0
  %1297 = vmatpush1.bf16.xpose.msra.mxu0 0
  %1298 = vmatprep.subr.bf16.mxu0 0
  %1299 = vmatpush1.bf16.xpose.msra.mxu0 0
  %1300 = vmatprep.subr.bf16.mxu0 0
  %1301 = vmatpush1.bf16.xpose.msra.mxu0 0
  %1302 = vmatprep.subr.bf16.mxu0 0
  %1303 = vmatpush1.bf16.xpose.msra.mxu0 0
  %1304 = vmatprep.subr.bf16.mxu0 0
  %1305 = vmatpush1.bf16.xpose.msra.mxu0 0
  %1306 = vmatprep.subr.bf16.mxu0 0
  %1307 = vmatpush1.bf16.xpose.msra.mxu0 0
  %1308 = vmatprep.subr.bf16.mxu0 0
  %1309 = vmatpush1.bf16.xpose.msra.mxu0 0
  %1310 = vmatprep.subr.bf16.mxu0 0
  %1311 = vmatpush1.bf16.xpose.msra.mxu0 0
  %1312 = vmatprep.subr.bf16.mxu0 0
  %1313 = vmatpush1.bf16.xpose.msra.mxu0 0
  %1314 = vmatprep.subr.bf16.mxu0 0
  %1315 = vmatpush1.bf16.xpose.msra.mxu0 0
  %1316 = vmatprep.subr.bf16.mxu0 0
  %1317 = vmatpush1.bf16.xpose.msra.mxu0 0
  %1318 = vmatprep.subr.bf16.mxu0 0
  %1319 = vmatpush1.bf16.xpose.msra.mxu0 0
  %1320 = vmatprep.subr.bf16.mxu0 0
  %1321 = vmatpush1.bf16.xpose.msra.mxu0 0
  %1322 = vmatprep.mubr.bf16.mxu0 0
  %1323 = vmatmul.mubr.bf16.gmra.mrb[0].mxu0 %v1285
  %v1324 = vpop.f32.mrb[0].mxu0
  %v1325 = vadd.f32 0.0, %v1324
  %v1326 = vpop.f32.mrb[0].mxu0
  %v1327 = vpop.f32.mrb[0].mxu0
  %v1328 = vadd.f32 0.0, %v1327
  %v1329 = vpop.f32.mrb[0].mxu0
  %1330 = vdwg.mxu0
  %v1331 = vsel %vm736, %v1275, -inf
  %1332 = vmax.xlane.f32.xlu0 %v1331
  %v1333 = vpop.xlane.xlu0 %1332
  %v1334 = vsel %vm736, %v1278, -inf
  %1335 = vmax.xlane.f32.xlu0 %v1334
  %v1336 = vpop.xlane.xlu0 %1335
  %v1337 = vsel %vm736, %v1325, -inf
  %1338 = vmax.xlane.f32.xlu0 %v1337
  %v1339 = vpop.xlane.xlu0 %1338
  %v1340 = vsel %vm736, %v1328, -inf
  %1341 = vmax.xlane.f32.xlu0 %v1340
  %v1342 = vpop.xlane.xlu0 %1341
  %v1343 = vsub.f32 %v1275, %v1333
  %v1344 = vsub.f32 %v1278, %v1336
  %v1345 = vsub.f32 %v1325, %v1339
  %v1346 = vsub.f32 %v1328, %v1342
  %v1347 = vmul.f32 %v1343, 1.442695
  %v1348 = vpow.pop %v1347
  %v1349 = vmul.f32 %v1344, 1.442695
  %v1350 = vpow.pop %v1349
  %v1351 = vmul.f32 %v1345, 1.442695
  %v1352 = vpow.pop %v1351
  %v1353 = vmul.f32 %v1346, 1.442695
  %v1354 = vpow.pop %v1353
  %v1355 = vsel %vm736, %v1348, 0.0
  %1356 = vadd.xlane.f32.xlu0 %v1355
  %v1357 = vpop.xlane.xlu0 %1356
  %v1358 = vsel %vm736, %v1350, 0.0
  %1359 = vadd.xlane.f32.xlu0 %v1358
  %v1360 = vpop.xlane.xlu0 %1359
  %v1361 = vsel %vm736, %v1352, 0.0
  %1362 = vadd.xlane.f32.xlu0 %v1361
  %v1363 = vpop.xlane.xlu0 %1362
  %v1364 = vsel %vm736, %v1354, 0.0
  %1365 = vadd.xlane.f32.xlu0 %v1364
  %v1366 = vpop.xlane.xlu0 %1365
  %v1367 = vrcp.pop %v1357
  %v1368 = vrcp.pop %v1360
  %v1369 = vrcp.pop %v1363
  %v1370 = vrcp.pop %v1366
  %v1371 = vmul.f32 %v1348, %v1367
  %v1372 = vmul.f32 %v1350, %v1368
  %v1373 = vmul.f32 %v1352, %v1369
  %v1374 = vmul.f32 %v1354, %v1370
  %v1375 = vadd.f32 %v1227, %v1371
  %v1376 = vadd.f32 %v1228, %v1372
  %v1377 = vadd.f32 %v1229, %v1373
  %v1378 = vadd.f32 %v1230, %v1374
  %1379 = vrot.lane.b32.xlu0 %v624, 32
  %v1380 = vpop.permute.xlu0 %1379
  %1381 = vrot.lane.b32.xlu0 %v624, 64
  %v1382 = vpop.permute.xlu0 %1381
  %v1384 = vsel %vm638, %v1380, 0
  %v1387 = vsel %vm638, %v1382, 0
  %1389 = vmatprep.subr.bf16.mxu0 0
  %1390 = vmatpush1.bf16.xpose.msra.mxu0 %v1387
  %1391 = vmatprep.subr.bf16.mxu0 0
  %1392 = vmatpush1.bf16.xpose.msra.mxu0 0
  %1393 = vmatprep.subr.bf16.mxu0 0
  %1394 = vmatpush1.bf16.xpose.msra.mxu0 0
  %1395 = vmatprep.subr.bf16.mxu0 0
  %1396 = vmatpush1.bf16.xpose.msra.mxu0 0
  %1397 = vmatprep.subr.bf16.mxu0 0
  %1398 = vmatpush1.bf16.xpose.msra.mxu0 0
  %1399 = vmatprep.subr.bf16.mxu0 0
  %1400 = vmatpush1.bf16.xpose.msra.mxu0 0
  %1401 = vmatprep.subr.bf16.mxu0 0
  %1402 = vmatpush1.bf16.xpose.msra.mxu0 0
  %1403 = vmatprep.subr.bf16.mxu0 0
  %1404 = vmatpush1.bf16.xpose.msra.mxu0 0
  %1405 = vmatprep.subr.bf16.mxu0 0
  %1406 = vmatpush1.bf16.xpose.msra.mxu0 0
  %1407 = vmatprep.subr.bf16.mxu0 0
  %1408 = vmatpush1.bf16.xpose.msra.mxu0 0
  %1409 = vmatprep.subr.bf16.mxu0 0
  %1410 = vmatpush1.bf16.xpose.msra.mxu0 0
  %1411 = vmatprep.subr.bf16.mxu0 0
  %1412 = vmatpush1.bf16.xpose.msra.mxu0 0
  %1413 = vmatprep.subr.bf16.mxu0 0
  %1414 = vmatpush1.bf16.xpose.msra.mxu0 0
  %1415 = vmatprep.subr.bf16.mxu0 0
  %1416 = vmatpush1.bf16.xpose.msra.mxu0 0
  %1417 = vmatprep.subr.bf16.mxu0 0
  %1418 = vmatpush1.bf16.xpose.msra.mxu0 0
  %1419 = vmatprep.subr.bf16.mxu0 0
  %1420 = vmatpush1.bf16.xpose.msra.mxu0 0
  %1421 = vmatprep.mubr.bf16.mxu0 0
  %1422 = vmatmul.mubr.bf16.gmra.mrb[0].mxu0 %v1384
  %v1423 = vpop.f32.mrb[0].mxu0
  %v1424 = vadd.f32 0.0, %v1423
  %v1425 = vpop.f32.mrb[0].mxu0
  %v1426 = vpop.f32.mrb[0].mxu0
  %v1427 = vadd.f32 0.0, %v1426
  %v1428 = vpop.f32.mrb[0].mxu0
  %1429 = vdwg.mxu0
  %1430 = vrot.lane.b32.xlu0 %v632, 32
  %v1431 = vpop.permute.xlu0 %1430
  %1432 = vrot.lane.b32.xlu0 %v632, 64
  %v1433 = vpop.permute.xlu0 %1432
  %v1435 = vsel %vm638, %v1431, 0
  %v1438 = vsel %vm638, %v1433, 0
  %1440 = vmatprep.subr.bf16.mxu0 0
  %1441 = vmatpush1.bf16.xpose.msra.mxu0 %v1438
  %1442 = vmatprep.subr.bf16.mxu0 0
  %1443 = vmatpush1.bf16.xpose.msra.mxu0 0
  %1444 = vmatprep.subr.bf16.mxu0 0
  %1445 = vmatpush1.bf16.xpose.msra.mxu0 0
  %1446 = vmatprep.subr.bf16.mxu0 0
  %1447 = vmatpush1.bf16.xpose.msra.mxu0 0
  %1448 = vmatprep.subr.bf16.mxu0 0
  %1449 = vmatpush1.bf16.xpose.msra.mxu0 0
  %1450 = vmatprep.subr.bf16.mxu0 0
  %1451 = vmatpush1.bf16.xpose.msra.mxu0 0
  %1452 = vmatprep.subr.bf16.mxu0 0
  %1453 = vmatpush1.bf16.xpose.msra.mxu0 0
  %1454 = vmatprep.subr.bf16.mxu0 0
  %1455 = vmatpush1.bf16.xpose.msra.mxu0 0
  %1456 = vmatprep.subr.bf16.mxu0 0
  %1457 = vmatpush1.bf16.xpose.msra.mxu0 0
  %1458 = vmatprep.subr.bf16.mxu0 0
  %1459 = vmatpush1.bf16.xpose.msra.mxu0 0
  %1460 = vmatprep.subr.bf16.mxu0 0
  %1461 = vmatpush1.bf16.xpose.msra.mxu0 0
  %1462 = vmatprep.subr.bf16.mxu0 0
  %1463 = vmatpush1.bf16.xpose.msra.mxu0 0
  %1464 = vmatprep.subr.bf16.mxu0 0
  %1465 = vmatpush1.bf16.xpose.msra.mxu0 0
  %1466 = vmatprep.subr.bf16.mxu0 0
  %1467 = vmatpush1.bf16.xpose.msra.mxu0 0
  %1468 = vmatprep.subr.bf16.mxu0 0
  %1469 = vmatpush1.bf16.xpose.msra.mxu0 0
  %1470 = vmatprep.subr.bf16.mxu0 0
  %1471 = vmatpush1.bf16.xpose.msra.mxu0 0
  %1472 = vmatprep.mubr.bf16.mxu0 0
  %1473 = vmatmul.mubr.bf16.gmra.mrb[0].mxu0 %v1435
  %v1474 = vpop.f32.mrb[0].mxu0
  %v1475 = vadd.f32 0.0, %v1474
  %v1476 = vpop.f32.mrb[0].mxu0
  %v1477 = vpop.f32.mrb[0].mxu0
  %v1478 = vadd.f32 0.0, %v1477
  %v1479 = vpop.f32.mrb[0].mxu0
  %1480 = vdwg.mxu0
  %v1481 = vsel %vm736, %v1424, -inf
  %1482 = vmax.xlane.f32.xlu0 %v1481
  %v1483 = vpop.xlane.xlu0 %1482
  %v1484 = vsel %vm736, %v1427, -inf
  %1485 = vmax.xlane.f32.xlu0 %v1484
  %v1486 = vpop.xlane.xlu0 %1485
  %v1487 = vsel %vm736, %v1475, -inf
  %1488 = vmax.xlane.f32.xlu0 %v1487
  %v1489 = vpop.xlane.xlu0 %1488
  %v1490 = vsel %vm736, %v1478, -inf
  %1491 = vmax.xlane.f32.xlu0 %v1490
  %v1492 = vpop.xlane.xlu0 %1491
  %v1493 = vsub.f32 %v1424, %v1483
  %v1494 = vsub.f32 %v1427, %v1486
  %v1495 = vsub.f32 %v1475, %v1489
  %v1496 = vsub.f32 %v1478, %v1492
  %v1497 = vmul.f32 %v1493, 1.442695
  %v1498 = vpow.pop %v1497
  %v1499 = vmul.f32 %v1494, 1.442695
  %v1500 = vpow.pop %v1499
  %v1501 = vmul.f32 %v1495, 1.442695
  %v1502 = vpow.pop %v1501
  %v1503 = vmul.f32 %v1496, 1.442695
  %v1504 = vpow.pop %v1503
  %v1505 = vsel %vm736, %v1498, 0.0
  %1506 = vadd.xlane.f32.xlu0 %v1505
  %v1507 = vpop.xlane.xlu0 %1506
  %v1508 = vsel %vm736, %v1500, 0.0
  %1509 = vadd.xlane.f32.xlu0 %v1508
  %v1510 = vpop.xlane.xlu0 %1509
  %v1511 = vsel %vm736, %v1502, 0.0
  %1512 = vadd.xlane.f32.xlu0 %v1511
  %v1513 = vpop.xlane.xlu0 %1512
  %v1514 = vsel %vm736, %v1504, 0.0
  %1515 = vadd.xlane.f32.xlu0 %v1514
  %v1516 = vpop.xlane.xlu0 %1515
  %v1517 = vrcp.pop %v1507
  %v1518 = vrcp.pop %v1510
  %v1519 = vrcp.pop %v1513
  %v1520 = vrcp.pop %v1516
  %v1521 = vmul.f32 %v1498, %v1517
  %v1522 = vmul.f32 %v1500, %v1518
  %v1523 = vmul.f32 %v1502, %v1519
  %v1524 = vmul.f32 %v1504, %v1520
  %v1525 = vadd.f32 %v1375, %v1521
  %v1526 = vadd.f32 %v1376, %v1522
  %v1527 = vadd.f32 %v1377, %v1523
  %v1528 = vadd.f32 %v1378, %v1524
  %s1529 = scalar_lea.vmem %s1, 16
  %v1530 = vld [vmem:[%s1529] sm:$0xff]
  %v1531 = vld [vmem:[%s1529 + $0x8] sm:$0xff]
  %v1532 = vadd.f32 %v1525, %v1530
  %v1533 = vadd.f32 %v1526, %v1531
  %v1534 = vadd.f32 %v1527, %v1530
  %v1535 = vadd.f32 %v1528, %v1531
  %1537 = vrot.lane.b32.xlu0 %v625, 96
  %v1538 = vpop.permute.xlu0 %1537
  %v1540 = vsel %vm638, %v1538, 0
  %v1543 = vsel %vm638, %v625, 0
  %1545 = vmatprep.subr.bf16.mxu0 0
  %1546 = vmatpush1.bf16.xpose.msra.mxu0 %v1543
  %1547 = vmatprep.subr.bf16.mxu0 0
  %1548 = vmatpush1.bf16.xpose.msra.mxu0 0
  %1549 = vmatprep.subr.bf16.mxu0 0
  %1550 = vmatpush1.bf16.xpose.msra.mxu0 0
  %1551 = vmatprep.subr.bf16.mxu0 0
  %1552 = vmatpush1.bf16.xpose.msra.mxu0 0
  %1553 = vmatprep.subr.bf16.mxu0 0
  %1554 = vmatpush1.bf16.xpose.msra.mxu0 0
  %1555 = vmatprep.subr.bf16.mxu0 0
  %1556 = vmatpush1.bf16.xpose.msra.mxu0 0
  %1557 = vmatprep.subr.bf16.mxu0 0
  %1558 = vmatpush1.bf16.xpose.msra.mxu0 0
  %1559 = vmatprep.subr.bf16.mxu0 0
  %1560 = vmatpush1.bf16.xpose.msra.mxu0 0
  %1561 = vmatprep.subr.bf16.mxu0 0
  %1562 = vmatpush1.bf16.xpose.msra.mxu0 0
  %1563 = vmatprep.subr.bf16.mxu0 0
  %1564 = vmatpush1.bf16.xpose.msra.mxu0 0
  %1565 = vmatprep.subr.bf16.mxu0 0
  %1566 = vmatpush1.bf16.xpose.msra.mxu0 0
  %1567 = vmatprep.subr.bf16.mxu0 0
  %1568 = vmatpush1.bf16.xpose.msra.mxu0 0
  %1569 = vmatprep.subr.bf16.mxu0 0
  %1570 = vmatpush1.bf16.xpose.msra.mxu0 0
  %1571 = vmatprep.subr.bf16.mxu0 0
  %1572 = vmatpush1.bf16.xpose.msra.mxu0 0
  %1573 = vmatprep.subr.bf16.mxu0 0
  %1574 = vmatpush1.bf16.xpose.msra.mxu0 0
  %1575 = vmatprep.subr.bf16.mxu0 0
  %1576 = vmatpush1.bf16.xpose.msra.mxu0 0
  %1577 = vmatprep.mubr.bf16.mxu0 0
  %1578 = vmatmul.mubr.bf16.gmra.mrb[0].mxu0 %v1540
  %v1579 = vpop.f32.mrb[0].mxu0
  %v1580 = vadd.f32 0.0, %v1579
  %v1581 = vpop.f32.mrb[0].mxu0
  %v1582 = vpop.f32.mrb[0].mxu0
  %v1583 = vadd.f32 0.0, %v1582
  %v1584 = vpop.f32.mrb[0].mxu0
  %1585 = vdwg.mxu0
  %1587 = vrot.lane.b32.xlu0 %v633, 96
  %v1588 = vpop.permute.xlu0 %1587
  %v1590 = vsel %vm638, %v1588, 0
  %v1593 = vsel %vm638, %v633, 0
  %1595 = vmatprep.subr.bf16.mxu0 0
  %1596 = vmatpush1.bf16.xpose.msra.mxu0 %v1593
  %1597 = vmatprep.subr.bf16.mxu0 0
  %1598 = vmatpush1.bf16.xpose.msra.mxu0 0
  %1599 = vmatprep.subr.bf16.mxu0 0
  %1600 = vmatpush1.bf16.xpose.msra.mxu0 0
  %1601 = vmatprep.subr.bf16.mxu0 0
  %1602 = vmatpush1.bf16.xpose.msra.mxu0 0
  %1603 = vmatprep.subr.bf16.mxu0 0
  %1604 = vmatpush1.bf16.xpose.msra.mxu0 0
  %1605 = vmatprep.subr.bf16.mxu0 0
  %1606 = vmatpush1.bf16.xpose.msra.mxu0 0
  %1607 = vmatprep.subr.bf16.mxu0 0
  %1608 = vmatpush1.bf16.xpose.msra.mxu0 0
  %1609 = vmatprep.subr.bf16.mxu0 0
  %1610 = vmatpush1.bf16.xpose.msra.mxu0 0
  %1611 = vmatprep.subr.bf16.mxu0 0
  %1612 = vmatpush1.bf16.xpose.msra.mxu0 0
  %1613 = vmatprep.subr.bf16.mxu0 0
  %1614 = vmatpush1.bf16.xpose.msra.mxu0 0
  %1615 = vmatprep.subr.bf16.mxu0 0
  %1616 = vmatpush1.bf16.xpose.msra.mxu0 0
  %1617 = vmatprep.subr.bf16.mxu0 0
  %1618 = vmatpush1.bf16.xpose.msra.mxu0 0
  %1619 = vmatprep.subr.bf16.mxu0 0
  %1620 = vmatpush1.bf16.xpose.msra.mxu0 0
  %1621 = vmatprep.subr.bf16.mxu0 0
  %1622 = vmatpush1.bf16.xpose.msra.mxu0 0
  %1623 = vmatprep.subr.bf16.mxu0 0
  %1624 = vmatpush1.bf16.xpose.msra.mxu0 0
  %1625 = vmatprep.subr.bf16.mxu0 0
  %1626 = vmatpush1.bf16.xpose.msra.mxu0 0
  %1627 = vmatprep.mubr.bf16.mxu0 0
  %1628 = vmatmul.mubr.bf16.gmra.mrb[0].mxu0 %v1590
  %v1629 = vpop.f32.mrb[0].mxu0
  %v1630 = vadd.f32 0.0, %v1629
  %v1631 = vpop.f32.mrb[0].mxu0
  %v1632 = vpop.f32.mrb[0].mxu0
  %v1633 = vadd.f32 0.0, %v1632
  %v1634 = vpop.f32.mrb[0].mxu0
  %1635 = vdwg.mxu0
  %v1636 = vsel %vm736, %v1580, -inf
  %1637 = vmax.xlane.f32.xlu0 %v1636
  %v1638 = vpop.xlane.xlu0 %1637
  %v1639 = vsel %vm736, %v1583, -inf
  %1640 = vmax.xlane.f32.xlu0 %v1639
  %v1641 = vpop.xlane.xlu0 %1640
  %v1642 = vsel %vm736, %v1630, -inf
  %1643 = vmax.xlane.f32.xlu0 %v1642
  %v1644 = vpop.xlane.xlu0 %1643
  %v1645 = vsel %vm736, %v1633, -inf
  %1646 = vmax.xlane.f32.xlu0 %v1645
  %v1647 = vpop.xlane.xlu0 %1646
  %v1648 = vsub.f32 %v1580, %v1638
  %v1649 = vsub.f32 %v1583, %v1641
  %v1650 = vsub.f32 %v1630, %v1644
  %v1651 = vsub.f32 %v1633, %v1647
  %v1652 = vmul.f32 %v1648, 1.442695
  %v1653 = vpow.pop %v1652
  %v1654 = vmul.f32 %v1649, 1.442695
  %v1655 = vpow.pop %v1654
  %v1656 = vmul.f32 %v1650, 1.442695
  %v1657 = vpow.pop %v1656
  %v1658 = vmul.f32 %v1651, 1.442695
  %v1659 = vpow.pop %v1658
  %v1660 = vsel %vm736, %v1653, 0.0
  %1661 = vadd.xlane.f32.xlu0 %v1660
  %v1662 = vpop.xlane.xlu0 %1661
  %v1663 = vsel %vm736, %v1655, 0.0
  %1664 = vadd.xlane.f32.xlu0 %v1663
  %v1665 = vpop.xlane.xlu0 %1664
  %v1666 = vsel %vm736, %v1657, 0.0
  %1667 = vadd.xlane.f32.xlu0 %v1666
  %v1668 = vpop.xlane.xlu0 %1667
  %v1669 = vsel %vm736, %v1659, 0.0
  %1670 = vadd.xlane.f32.xlu0 %v1669
  %v1671 = vpop.xlane.xlu0 %1670
  %v1672 = vrcp.pop %v1662
  %v1673 = vrcp.pop %v1665
  %v1674 = vrcp.pop %v1668
  %v1675 = vrcp.pop %v1671
  %v1676 = vmul.f32 %v1653, %v1672
  %v1677 = vmul.f32 %v1655, %v1673
  %v1678 = vmul.f32 %v1657, %v1674
  %v1679 = vmul.f32 %v1659, %v1675
  %1680 = vrot.lane.b32.xlu0 %v625, 32
  %v1681 = vpop.permute.xlu0 %1680
  %1682 = vrot.lane.b32.xlu0 %v625, 64
  %v1683 = vpop.permute.xlu0 %1682
  %v1685 = vsel %vm638, %v1681, 0
  %v1688 = vsel %vm638, %v1683, 0
  %1690 = vmatprep.subr.bf16.mxu0 0
  %1691 = vmatpush1.bf16.xpose.msra.mxu0 %v1688
  %1692 = vmatprep.subr.bf16.mxu0 0
  %1693 = vmatpush1.bf16.xpose.msra.mxu0 0
  %1694 = vmatprep.subr.bf16.mxu0 0
  %1695 = vmatpush1.bf16.xpose.msra.mxu0 0
  %1696 = vmatprep.subr.bf16.mxu0 0
  %1697 = vmatpush1.bf16.xpose.msra.mxu0 0
  %1698 = vmatprep.subr.bf16.mxu0 0
  %1699 = vmatpush1.bf16.xpose.msra.mxu0 0
  %1700 = vmatprep.subr.bf16.mxu0 0
  %1701 = vmatpush1.bf16.xpose.msra.mxu0 0
  %1702 = vmatprep.subr.bf16.mxu0 0
  %1703 = vmatpush1.bf16.xpose.msra.mxu0 0
  %1704 = vmatprep.subr.bf16.mxu0 0
  %1705 = vmatpush1.bf16.xpose.msra.mxu0 0
  %1706 = vmatprep.subr.bf16.mxu0 0
  %1707 = vmatpush1.bf16.xpose.msra.mxu0 0
  %1708 = vmatprep.subr.bf16.mxu0 0
  %1709 = vmatpush1.bf16.xpose.msra.mxu0 0
  %1710 = vmatprep.subr.bf16.mxu0 0
  %1711 = vmatpush1.bf16.xpose.msra.mxu0 0
  %1712 = vmatprep.subr.bf16.mxu0 0
  %1713 = vmatpush1.bf16.xpose.msra.mxu0 0
  %1714 = vmatprep.subr.bf16.mxu0 0
  %1715 = vmatpush1.bf16.xpose.msra.mxu0 0
  %1716 = vmatprep.subr.bf16.mxu0 0
  %1717 = vmatpush1.bf16.xpose.msra.mxu0 0
  %1718 = vmatprep.subr.bf16.mxu0 0
  %1719 = vmatpush1.bf16.xpose.msra.mxu0 0
  %1720 = vmatprep.subr.bf16.mxu0 0
  %1721 = vmatpush1.bf16.xpose.msra.mxu0 0
  %1722 = vmatprep.mubr.bf16.mxu0 0
  %1723 = vmatmul.mubr.bf16.gmra.mrb[0].mxu0 %v1685
  %v1724 = vpop.f32.mrb[0].mxu0
  %v1725 = vadd.f32 0.0, %v1724
  %v1726 = vpop.f32.mrb[0].mxu0
  %v1727 = vpop.f32.mrb[0].mxu0
  %v1728 = vadd.f32 0.0, %v1727
  %v1729 = vpop.f32.mrb[0].mxu0
  %1730 = vdwg.mxu0
  %1731 = vrot.lane.b32.xlu0 %v633, 32
  %v1732 = vpop.permute.xlu0 %1731
  %1733 = vrot.lane.b32.xlu0 %v633, 64
  %v1734 = vpop.permute.xlu0 %1733
  %v1736 = vsel %vm638, %v1732, 0
  %v1739 = vsel %vm638, %v1734, 0
  %1741 = vmatprep.subr.bf16.mxu0 0
  %1742 = vmatpush1.bf16.xpose.msra.mxu0 %v1739
  %1743 = vmatprep.subr.bf16.mxu0 0
  %1744 = vmatpush1.bf16.xpose.msra.mxu0 0
  %1745 = vmatprep.subr.bf16.mxu0 0
  %1746 = vmatpush1.bf16.xpose.msra.mxu0 0
  %1747 = vmatprep.subr.bf16.mxu0 0
  %1748 = vmatpush1.bf16.xpose.msra.mxu0 0
  %1749 = vmatprep.subr.bf16.mxu0 0
  %1750 = vmatpush1.bf16.xpose.msra.mxu0 0
  %1751 = vmatprep.subr.bf16.mxu0 0
  %1752 = vmatpush1.bf16.xpose.msra.mxu0 0
  %1753 = vmatprep.subr.bf16.mxu0 0
  %1754 = vmatpush1.bf16.xpose.msra.mxu0 0
  %1755 = vmatprep.subr.bf16.mxu0 0
  %1756 = vmatpush1.bf16.xpose.msra.mxu0 0
  %1757 = vmatprep.subr.bf16.mxu0 0
  %1758 = vmatpush1.bf16.xpose.msra.mxu0 0
  %1759 = vmatprep.subr.bf16.mxu0 0
  %1760 = vmatpush1.bf16.xpose.msra.mxu0 0
  %1761 = vmatprep.subr.bf16.mxu0 0
  %1762 = vmatpush1.bf16.xpose.msra.mxu0 0
  %1763 = vmatprep.subr.bf16.mxu0 0
  %1764 = vmatpush1.bf16.xpose.msra.mxu0 0
  %1765 = vmatprep.subr.bf16.mxu0 0
  %1766 = vmatpush1.bf16.xpose.msra.mxu0 0
  %1767 = vmatprep.subr.bf16.mxu0 0
  %1768 = vmatpush1.bf16.xpose.msra.mxu0 0
  %1769 = vmatprep.subr.bf16.mxu0 0
  %1770 = vmatpush1.bf16.xpose.msra.mxu0 0
  %1771 = vmatprep.subr.bf16.mxu0 0
  %1772 = vmatpush1.bf16.xpose.msra.mxu0 0
  %1773 = vmatprep.mubr.bf16.mxu0 0
  %1774 = vmatmul.mubr.bf16.gmra.mrb[0].mxu0 %v1736
  %v1775 = vpop.f32.mrb[0].mxu0
  %v1776 = vadd.f32 0.0, %v1775
  %v1777 = vpop.f32.mrb[0].mxu0
  %v1778 = vpop.f32.mrb[0].mxu0
  %v1779 = vadd.f32 0.0, %v1778
  %v1780 = vpop.f32.mrb[0].mxu0
  %1781 = vdwg.mxu0
  %v1782 = vsel %vm736, %v1725, -inf
  %1783 = vmax.xlane.f32.xlu0 %v1782
  %v1784 = vpop.xlane.xlu0 %1783
  %v1785 = vsel %vm736, %v1728, -inf
  %1786 = vmax.xlane.f32.xlu0 %v1785
  %v1787 = vpop.xlane.xlu0 %1786
  %v1788 = vsel %vm736, %v1776, -inf
  %1789 = vmax.xlane.f32.xlu0 %v1788
  %v1790 = vpop.xlane.xlu0 %1789
  %v1791 = vsel %vm736, %v1779, -inf
  %1792 = vmax.xlane.f32.xlu0 %v1791
  %v1793 = vpop.xlane.xlu0 %1792
  %v1794 = vsub.f32 %v1725, %v1784
  %v1795 = vsub.f32 %v1728, %v1787
  %v1796 = vsub.f32 %v1776, %v1790
  %v1797 = vsub.f32 %v1779, %v1793
  %v1798 = vmul.f32 %v1794, 1.442695
  %v1799 = vpow.pop %v1798
  %v1800 = vmul.f32 %v1795, 1.442695
  %v1801 = vpow.pop %v1800
  %v1802 = vmul.f32 %v1796, 1.442695
  %v1803 = vpow.pop %v1802
  %v1804 = vmul.f32 %v1797, 1.442695
  %v1805 = vpow.pop %v1804
  %v1806 = vsel %vm736, %v1799, 0.0
  %1807 = vadd.xlane.f32.xlu0 %v1806
  %v1808 = vpop.xlane.xlu0 %1807
  %v1809 = vsel %vm736, %v1801, 0.0
  %1810 = vadd.xlane.f32.xlu0 %v1809
  %v1811 = vpop.xlane.xlu0 %1810
  %v1812 = vsel %vm736, %v1803, 0.0
  %1813 = vadd.xlane.f32.xlu0 %v1812
  %v1814 = vpop.xlane.xlu0 %1813
  %v1815 = vsel %vm736, %v1805, 0.0
  %1816 = vadd.xlane.f32.xlu0 %v1815
  %v1817 = vpop.xlane.xlu0 %1816
  %v1818 = vrcp.pop %v1808
  %v1819 = vrcp.pop %v1811
  %v1820 = vrcp.pop %v1814
  %v1821 = vrcp.pop %v1817
  %v1822 = vmul.f32 %v1799, %v1818
  %v1823 = vmul.f32 %v1801, %v1819
  %v1824 = vmul.f32 %v1803, %v1820
  %v1825 = vmul.f32 %v1805, %v1821
  %v1826 = vadd.f32 %v1676, %v1822
  %v1827 = vadd.f32 %v1677, %v1823
  %v1828 = vadd.f32 %v1678, %v1824
  %v1829 = vadd.f32 %v1679, %v1825
  %1831 = vrot.lane.b32.xlu0 %v626, 96
  %v1832 = vpop.permute.xlu0 %1831
  %v1834 = vsel %vm638, %v1832, 0
  %v1837 = vsel %vm638, %v626, 0
  %1839 = vmatprep.subr.bf16.mxu0 0
  %1840 = vmatpush1.bf16.xpose.msra.mxu0 %v1837
  %1841 = vmatprep.subr.bf16.mxu0 0
  %1842 = vmatpush1.bf16.xpose.msra.mxu0 0
  %1843 = vmatprep.subr.bf16.mxu0 0
  %1844 = vmatpush1.bf16.xpose.msra.mxu0 0
  %1845 = vmatprep.subr.bf16.mxu0 0
  %1846 = vmatpush1.bf16.xpose.msra.mxu0 0
  %1847 = vmatprep.subr.bf16.mxu0 0
  %1848 = vmatpush1.bf16.xpose.msra.mxu0 0
  %1849 = vmatprep.subr.bf16.mxu0 0
  %1850 = vmatpush1.bf16.xpose.msra.mxu0 0
  %1851 = vmatprep.subr.bf16.mxu0 0
  %1852 = vmatpush1.bf16.xpose.msra.mxu0 0
  %1853 = vmatprep.subr.bf16.mxu0 0
  %1854 = vmatpush1.bf16.xpose.msra.mxu0 0
  %1855 = vmatprep.subr.bf16.mxu0 0
  %1856 = vmatpush1.bf16.xpose.msra.mxu0 0
  %1857 = vmatprep.subr.bf16.mxu0 0
  %1858 = vmatpush1.bf16.xpose.msra.mxu0 0
  %1859 = vmatprep.subr.bf16.mxu0 0
  %1860 = vmatpush1.bf16.xpose.msra.mxu0 0
  %1861 = vmatprep.subr.bf16.mxu0 0
  %1862 = vmatpush1.bf16.xpose.msra.mxu0 0
  %1863 = vmatprep.subr.bf16.mxu0 0
  %1864 = vmatpush1.bf16.xpose.msra.mxu0 0
  %1865 = vmatprep.subr.bf16.mxu0 0
  %1866 = vmatpush1.bf16.xpose.msra.mxu0 0
  %1867 = vmatprep.subr.bf16.mxu0 0
  %1868 = vmatpush1.bf16.xpose.msra.mxu0 0
  %1869 = vmatprep.subr.bf16.mxu0 0
  %1870 = vmatpush1.bf16.xpose.msra.mxu0 0
  %1871 = vmatprep.mubr.bf16.mxu0 0
  %1872 = vmatmul.mubr.bf16.gmra.mrb[0].mxu0 %v1834
  %v1873 = vpop.f32.mrb[0].mxu0
  %v1874 = vadd.f32 0.0, %v1873
  %v1875 = vpop.f32.mrb[0].mxu0
  %v1876 = vpop.f32.mrb[0].mxu0
  %v1877 = vadd.f32 0.0, %v1876
  %v1878 = vpop.f32.mrb[0].mxu0
  %1879 = vdwg.mxu0
  %1881 = vrot.lane.b32.xlu0 %v634, 96
  %v1882 = vpop.permute.xlu0 %1881
  %v1884 = vsel %vm638, %v1882, 0
  %v1887 = vsel %vm638, %v634, 0
  %1889 = vmatprep.subr.bf16.mxu0 0
  %1890 = vmatpush1.bf16.xpose.msra.mxu0 %v1887
  %1891 = vmatprep.subr.bf16.mxu0 0
  %1892 = vmatpush1.bf16.xpose.msra.mxu0 0
  %1893 = vmatprep.subr.bf16.mxu0 0
  %1894 = vmatpush1.bf16.xpose.msra.mxu0 0
  %1895 = vmatprep.subr.bf16.mxu0 0
  %1896 = vmatpush1.bf16.xpose.msra.mxu0 0
  %1897 = vmatprep.subr.bf16.mxu0 0
  %1898 = vmatpush1.bf16.xpose.msra.mxu0 0
  %1899 = vmatprep.subr.bf16.mxu0 0
  %1900 = vmatpush1.bf16.xpose.msra.mxu0 0
  %1901 = vmatprep.subr.bf16.mxu0 0
  %1902 = vmatpush1.bf16.xpose.msra.mxu0 0
  %1903 = vmatprep.subr.bf16.mxu0 0
  %1904 = vmatpush1.bf16.xpose.msra.mxu0 0
  %1905 = vmatprep.subr.bf16.mxu0 0
  %1906 = vmatpush1.bf16.xpose.msra.mxu0 0
  %1907 = vmatprep.subr.bf16.mxu0 0
  %1908 = vmatpush1.bf16.xpose.msra.mxu0 0
  %1909 = vmatprep.subr.bf16.mxu0 0
  %1910 = vmatpush1.bf16.xpose.msra.mxu0 0
  %1911 = vmatprep.subr.bf16.mxu0 0
  %1912 = vmatpush1.bf16.xpose.msra.mxu0 0
  %1913 = vmatprep.subr.bf16.mxu0 0
  %1914 = vmatpush1.bf16.xpose.msra.mxu0 0
  %1915 = vmatprep.subr.bf16.mxu0 0
  %1916 = vmatpush1.bf16.xpose.msra.mxu0 0
  %1917 = vmatprep.subr.bf16.mxu0 0
  %1918 = vmatpush1.bf16.xpose.msra.mxu0 0
  %1919 = vmatprep.subr.bf16.mxu0 0
  %1920 = vmatpush1.bf16.xpose.msra.mxu0 0
  %1921 = vmatprep.mubr.bf16.mxu0 0
  %1922 = vmatmul.mubr.bf16.gmra.mrb[0].mxu0 %v1884
  %v1923 = vpop.f32.mrb[0].mxu0
  %v1924 = vadd.f32 0.0, %v1923
  %v1925 = vpop.f32.mrb[0].mxu0
  %v1926 = vpop.f32.mrb[0].mxu0
  %v1927 = vadd.f32 0.0, %v1926
  %v1928 = vpop.f32.mrb[0].mxu0
  %1929 = vdwg.mxu0
  %v1930 = vsel %vm736, %v1874, -inf
  %1931 = vmax.xlane.f32.xlu0 %v1930
  %v1932 = vpop.xlane.xlu0 %1931
  %v1933 = vsel %vm736, %v1877, -inf
  %1934 = vmax.xlane.f32.xlu0 %v1933
  %v1935 = vpop.xlane.xlu0 %1934
  %v1936 = vsel %vm736, %v1924, -inf
  %1937 = vmax.xlane.f32.xlu0 %v1936
  %v1938 = vpop.xlane.xlu0 %1937
  %v1939 = vsel %vm736, %v1927, -inf
  %1940 = vmax.xlane.f32.xlu0 %v1939
  %v1941 = vpop.xlane.xlu0 %1940
  %v1942 = vsub.f32 %v1874, %v1932
  %v1943 = vsub.f32 %v1877, %v1935
  %v1944 = vsub.f32 %v1924, %v1938
  %v1945 = vsub.f32 %v1927, %v1941
  %v1946 = vmul.f32 %v1942, 1.442695
  %v1947 = vpow.pop %v1946
  %v1948 = vmul.f32 %v1943, 1.442695
  %v1949 = vpow.pop %v1948
  %v1950 = vmul.f32 %v1944, 1.442695
  %v1951 = vpow.pop %v1950
  %v1952 = vmul.f32 %v1945, 1.442695
  %v1953 = vpow.pop %v1952
  %v1954 = vsel %vm736, %v1947, 0.0
  %1955 = vadd.xlane.f32.xlu0 %v1954
  %v1956 = vpop.xlane.xlu0 %1955
  %v1957 = vsel %vm736, %v1949, 0.0
  %1958 = vadd.xlane.f32.xlu0 %v1957
  %v1959 = vpop.xlane.xlu0 %1958
  %v1960 = vsel %vm736, %v1951, 0.0
  %1961 = vadd.xlane.f32.xlu0 %v1960
  %v1962 = vpop.xlane.xlu0 %1961
  %v1963 = vsel %vm736, %v1953, 0.0
  %1964 = vadd.xlane.f32.xlu0 %v1963
  %v1965 = vpop.xlane.xlu0 %1964
  %v1966 = vrcp.pop %v1956
  %v1967 = vrcp.pop %v1959
  %v1968 = vrcp.pop %v1962
  %v1969 = vrcp.pop %v1965
  %v1970 = vmul.f32 %v1947, %v1966
  %v1971 = vmul.f32 %v1949, %v1967
  %v1972 = vmul.f32 %v1951, %v1968
  %v1973 = vmul.f32 %v1953, %v1969
  %v1974 = vadd.f32 %v1826, %v1970
  %v1975 = vadd.f32 %v1827, %v1971
  %v1976 = vadd.f32 %v1828, %v1972
  %v1977 = vadd.f32 %v1829, %v1973
  %s1978 = scalar_lea.vmem %s1, 32
  %v1979 = vld [vmem:[%s1978] sm:$0xff]
  %v1980 = vld [vmem:[%s1978 + $0x8] sm:$0xff]
  %v1981 = vadd.f32 %v1974, %v1979
  %v1982 = vadd.f32 %v1975, %v1980
  %v1983 = vadd.f32 %v1976, %v1979
  %v1984 = vadd.f32 %v1977, %v1980
  %1989 = vrot.lane.b32.xlu0 %v1532, 16
  %v1990 = vpop.permute.xlu0 %1989
  %1991 = vrot.lane.b32.xlu0 %v1533, 16
  %v1992 = vpop.permute.xlu0 %1991
  %1993 = vrot.lane.b32.xlu0 %v1534, 16
  %v1994 = vpop.permute.xlu0 %1993
  %1995 = vrot.lane.b32.xlu0 %v1535, 16
  %v1996 = vpop.permute.xlu0 %1995
  %2005 = vrot.lane.b32.xlu0 %v1981, 32
  %v2006 = vpop.permute.xlu0 %2005
  %2007 = vrot.lane.b32.xlu0 %v1982, 32
  %v2008 = vpop.permute.xlu0 %2007
  %2009 = vrot.lane.b32.xlu0 %v1983, 32
  %v2010 = vpop.permute.xlu0 %2009
  %2011 = vrot.lane.b32.xlu0 %v1984, 32
  %v2012 = vpop.permute.xlu0 %2011
  %v2017 = vsel %vm736, %v1081, %v1990
  %v2018 = vsel %vm736, %v1082, %v1992
  %v2019 = vsel %vm736, %v1083, %v1994
  %v2020 = vsel %vm736, %v1084, %v1996
  %v2021 = vsel %vm638, %v2017, %v2006
  %v2022 = vsel %vm638, %v2018, %v2008
  %v2023 = vsel %vm638, %v2019, %v2010
  %v2024 = vsel %vm638, %v2020, %v2012
  %v2025 = vpack.c.bf16 %v2022, %v2021
  %v2026 = vpack.c.bf16 %v2024, %v2023
  %vm2027 = vcmask 392192
  %v2029 = vsel %vm2027, %v2025, 0
  %2031 = vmatprep.subr.bf16.mxu0 0
  %2032 = vmatpush1.bf16.msra.mxu0 %v619
  %2033 = vmatprep.subr.bf16.mxu0 0
  %2034 = vmatpush1.bf16.msra.mxu0 %v620
  %2035 = vmatprep.subr.bf16.mxu0 0
  %2036 = vmatpush1.bf16.msra.mxu0 %v621
  %2037 = vmatprep.subr.bf16.mxu0 0
  %2038 = vmatpush1.bf16.msra.mxu0 0
  %2039 = vmatprep.subr.bf16.mxu0 0
  %2040 = vmatpush1.bf16.msra.mxu0 0
  %2041 = vmatprep.subr.bf16.mxu0 0
  %2042 = vmatpush1.bf16.msra.mxu0 0
  %2043 = vmatprep.subr.bf16.mxu0 0
  %2044 = vmatpush1.bf16.msra.mxu0 0
  %2045 = vmatprep.subr.bf16.mxu0 0
  %2046 = vmatpush1.bf16.msra.mxu0 0
  %2047 = vmatprep.subr.bf16.mxu0 0
  %2048 = vmatpush1.bf16.msra.mxu0 0
  %2049 = vmatprep.subr.bf16.mxu0 0
  %2050 = vmatpush1.bf16.msra.mxu0 0
  %2051 = vmatprep.subr.bf16.mxu0 0
  %2052 = vmatpush1.bf16.msra.mxu0 0
  %2053 = vmatprep.subr.bf16.mxu0 0
  %2054 = vmatpush1.bf16.msra.mxu0 0
  %2055 = vmatprep.subr.bf16.mxu0 0
  %2056 = vmatpush1.bf16.msra.mxu0 0
  %2057 = vmatprep.subr.bf16.mxu0 0
  %2058 = vmatpush1.bf16.msra.mxu0 0
  %2059 = vmatprep.subr.bf16.mxu0 0
  %2060 = vmatpush1.bf16.msra.mxu0 0
  %2061 = vmatprep.subr.bf16.mxu0 0
  %2062 = vmatpush1.bf16.msra.mxu0 0
  %2063 = vmatprep.mubr.bf16.mxu0 0
  %2064 = vmatmul.mubr.bf16.gmra.mrb[0].mxu0 %v2029
  %v2065 = vpop.f32.mrb[0].mxu0
  %v2066 = vadd.f32 0.0, %v2065
  %v2067 = vpop.f32.mrb[0].mxu0
  %v2068 = vpop.f32.mrb[0].mxu0
  %v2069 = vadd.f32 0.0, %v2068
  %v2070 = vpop.f32.mrb[0].mxu0
  %2071 = vdwg.mxu0
  %v2073 = vsel %vm2027, %v2026, 0
  %2075 = vmatprep.subr.bf16.mxu0 0
  %2076 = vmatpush1.bf16.msra.mxu0 %v627
  %2077 = vmatprep.subr.bf16.mxu0 0
  %2078 = vmatpush1.bf16.msra.mxu0 %v628
  %2079 = vmatprep.subr.bf16.mxu0 0
  %2080 = vmatpush1.bf16.msra.mxu0 %v629
  %2081 = vmatprep.subr.bf16.mxu0 0
  %2082 = vmatpush1.bf16.msra.mxu0 0
  %2083 = vmatprep.subr.bf16.mxu0 0
  %2084 = vmatpush1.bf16.msra.mxu0 0
  %2085 = vmatprep.subr.bf16.mxu0 0
  %2086 = vmatpush1.bf16.msra.mxu0 0
  %2087 = vmatprep.subr.bf16.mxu0 0
  %2088 = vmatpush1.bf16.msra.mxu0 0
  %2089 = vmatprep.subr.bf16.mxu0 0
  %2090 = vmatpush1.bf16.msra.mxu0 0
  %2091 = vmatprep.subr.bf16.mxu0 0
  %2092 = vmatpush1.bf16.msra.mxu0 0
  %2093 = vmatprep.subr.bf16.mxu0 0
  %2094 = vmatpush1.bf16.msra.mxu0 0
  %2095 = vmatprep.subr.bf16.mxu0 0
  %2096 = vmatpush1.bf16.msra.mxu0 0
  %2097 = vmatprep.subr.bf16.mxu0 0
  %2098 = vmatpush1.bf16.msra.mxu0 0
  %2099 = vmatprep.subr.bf16.mxu0 0
  %2100 = vmatpush1.bf16.msra.mxu0 0
  %2101 = vmatprep.subr.bf16.mxu0 0
  %2102 = vmatpush1.bf16.msra.mxu0 0
  %2103 = vmatprep.subr.bf16.mxu0 0
  %2104 = vmatpush1.bf16.msra.mxu0 0
  %2105 = vmatprep.subr.bf16.mxu0 0
  %2106 = vmatpush1.bf16.msra.mxu0 0
  %2107 = vmatprep.mubr.bf16.mxu0 0
  %2108 = vmatmul.mubr.bf16.gmra.mrb[0].mxu0 %v2073
  %v2109 = vpop.f32.mrb[0].mxu0
  %v2110 = vadd.f32 0.0, %v2109
  %v2111 = vpop.f32.mrb[0].mxu0
  %v2112 = vpop.f32.mrb[0].mxu0
  %v2113 = vadd.f32 0.0, %v2112
  %v2114 = vpop.f32.mrb[0].mxu0
  %2115 = vdwg.mxu0
  %v2116 = vpack.c.bf16 %v2069, %v2066
  %v2117 = vpack.c.bf16 %v2113, %v2110
  %v2120 = vunpack.c.l.b16 %v2116
  %v2121 = vunpack.c.h.b16 %v2116
  %v2122 = vunpack.c.l.b16 %v2117
  %v2123 = vunpack.c.h.b16 %v2117
  %v2124 = vpack.c.b16 %v2120, %v2120
  %v2125 = vpack.c.b16 %v2121, %v2121
  %v2126 = vpack.c.b16 %v2122, %v2122
  %v2127 = vpack.c.b16 %v2123, %v2123
  %2132 = vst [vmem:[%s3] sm:$0xf] %v2124
  %2133 = vst [vmem:[%s3 + $0x4] sm:$0xf] %v2125
  %2134 = vst [vmem:[%s3 + $0x8] sm:$0xf] %v2126
  %2135 = vst [vmem:[%s3 + $0xc] sm:$0xf] %v2127
  %v2136 = vadd.f32 %v2066, %v2069
  %v2137 = vadd.f32 %v2136, %v2110
  %v2138 = vadd.f32 %v2137, %v2113
  %v2139 = vrot.slane %v2138, 4
  %v2140 = vadd.f32 %v2138, %v2139
  %v2141 = vrot.slane %v2140, 2
  %v2142 = vadd.f32 %v2140, %v2141
  %v2143 = vrot.slane %v2142, 1
  %v2144 = vadd.f32 %v2142, %v2143
  %2145 = vst [vmem:[%s4] sm:$0x1] %v2144
  %v2146 = vmul.f32 %v2066, %v2066
  %v2147 = vmul.f32 %v2069, %v2069
  %v2148 = vmul.f32 %v2110, %v2110
  %v2149 = vmul.f32 %v2113, %v2113
  %v2150 = vadd.f32 %v2146, %v2147
  %v2151 = vadd.f32 %v2150, %v2148
  %v2152 = vadd.f32 %v2151, %v2149
  %v2153 = vrot.slane %v2152, 4
  %v2154 = vadd.f32 %v2152, %v2153
  %v2155 = vrot.slane %v2154, 2
  %v2156 = vadd.f32 %v2154, %v2155
  %v2157 = vrot.slane %v2156, 1
  %v2158 = vadd.f32 %v2156, %v2157
  %2159 = vst [vmem:[%s4 + $0x1] sm:$0x1] %v2158
  // Predicated region
  $region14: #{tcn_gcn_unit_34_forward.3} parent=0 // pred_check
    _
  $region15: #{tcn_gcn_unit_34_forward.3} parent=0 // pred_check_branch
    %2161 = sbr.rel (0) target = $region17
  $region16: #{tcn_gcn_unit_34_forward.3} parent=0 // pred_region
    _
  $region17: #{tcn_gcn_unit_34_forward.3} parent=0 // pred_fallthru
    _
  // Predicated region
  $region18: #{tcn_gcn_unit_34_forward.3} parent=0 // pred_check
    _
  $region19: #{tcn_gcn_unit_34_forward.3} parent=0 // pred_check_branch
    %2163 = sbr.rel (0) target = $region21
  $region20: #{tcn_gcn_unit_34_forward.3} parent=0 // pred_region
    _
  $region21: #{tcn_gcn_unit_34_forward.3} parent=0 // pred_fallthru
    _
  // Predicated region
  $region22: #{tcn_gcn_unit_34_forward.3} parent=0 // pred_check
    _
  $region23: #{tcn_gcn_unit_34_forward.3} parent=0 // pred_check_branch
    %2165 = sbr.rel (0) target = $region25
  $region24: #{tcn_gcn_unit_34_forward.3} parent=0 // pred_region
    _
  $region25: #{tcn_gcn_unit_34_forward.3} parent=0 // pred_fallthru
    _
  // Predicated region
  $region26: #{tcn_gcn_unit_34_forward.3} parent=0 // pred_check
    _
  $region27: #{tcn_gcn_unit_34_forward.3} parent=0 // pred_check_branch
    %2167 = sbr.rel (0) target = $region29
  $region28: #{tcn_gcn_unit_34_forward.3} parent=0 // pred_region
    _
  $region29: #{tcn_gcn_unit_34_forward.3} parent=0 // pred_fallthru
    _

</llo_original>
